<compile_context>
chip_gen: v7x
topology: tpu7x:2x2x1
jax: 0.10.0
libtpu: 0.0.40
codegen_flags: <defaults>
</compile_context>

<pallas_src>
import functools
import inspect
import math

import jax
import jax.numpy as jnp
from jax import lax
from jax.experimental import pallas as pl
from jax.experimental.pallas import tpu as pltpu


def _round_up(n, m):
    return ((n + m - 1) // m) * m


# Feature-detect pipeline_mode / Buffered so the script still runs on older
# jax versions (falls back to default double-buffering of the resident refs).
_HAS_BUFFERED = hasattr(pl, "Buffered") and (
    "pipeline_mode" in inspect.signature(pl.BlockSpec).parameters
)


def _resident_spec(block_shape):
    """BlockSpec for an array whose block never changes across the grid."""
    if _HAS_BUFFERED:
        return pl.BlockSpec(block_shape, lambda i: (0, 0),
                            pipeline_mode=pl.Buffered(1))
    return pl.BlockSpec(block_shape, lambda i: (0, 0))


def _pick_hidden_chunk(H):
    """Largest lane-aligned chunk of H that divides it (128-multiple)."""
    for hc in (512, 384, 256, 128):
        if H % hc == 0:
            return hc
    return H  # fall back to un-chunked


def _mlp_kernel(x_ref, w1_ref, b1_ref, w2_ref, b2_ref, o_ref,
                *, hc, n_chunks, approx_gelu):
    # x_ref : (tm, D)  f32  token tile (cast to bf16 in-kernel, once per tile)
    # w1_ref: (D, H)   bf16 c_fc weight, pre-transposed   (resident, 1-buffered)
    # b1_ref: (1, H)   f32  c_fc bias                     (resident)
    # w2_ref: (H, D)   bf16 c_proj weight, pre-transposed (resident, 1-buffered)
    # b2_ref: (1, D)   f32  c_proj bias                   (resident)
    # o_ref : (tm, D)  output tile (original activation dtype)
    tm = x_ref.shape[0]
    D = o_ref.shape[-1]

    # In-kernel bf16 cast (hoisted out of the chunk loop).
    x_bf = x_ref[...].astype(jnp.bfloat16)

    acc = jnp.zeros((tm, D), jnp.float32)
    inv_sqrt2 = 1.0 / math.sqrt(2.0)
    c_tanh = math.sqrt(2.0 / math.pi)

    # Static (unrolled) chunk loop over the hidden dimension.
    for c in range(n_chunks):
        lo, hi = c * hc, (c + 1) * hc
        # Static, lane/sublane-aligned slices of the resident refs (views).
        h = jnp.dot(x_bf, w1_ref[:, lo:hi],
                    preferred_element_type=jnp.float32)
        h = h + b1_ref[:, lo:hi]

        if approx_gelu:
            # tanh-approx GELU: transcendental goes to the EUP slot.
            inner = c_tanh * (h + 0.044715 * (h * h * h))
            g = 0.5 * h * (1.0 + jnp.tanh(inner))
        else:
            # Exact (erf) GELU, matching torch.nn.GELU() default.
            g = 0.5 * h * (1.0 + lax.erf(h * inv_sqrt2))

        acc = acc + jnp.dot(g.astype(jnp.bfloat16), w2_ref[lo:hi, :],
                            preferred_element_type=jnp.float32)

    y = acc + b2_ref[...]
    # dropout (eval mode) == identity
    o_ref[...] = y.astype(o_ref.dtype)


def prepare_params(w_fc, b_fc, w_proj, b_proj):
    """One-time conversion from PyTorch nn.Linear layout to kernel layout.

    w_fc:(4D, D), b_fc:(4D,), w_proj:(D, 4D), b_proj:(D,)
      -> w1:(D, 4D) bf16, b1:(1, 4D) f32, w2:(4D, D) bf16, b2:(1, D) f32
    """
    H, D = w_fc.shape
    w1 = jnp.asarray(w_fc).T.astype(jnp.bfloat16)       # (D, H)
    w2 = jnp.asarray(w_proj).T.astype(jnp.bfloat16)     # (H, D)
    b1 = jnp.asarray(b_fc, jnp.float32).reshape(1, H)
    b2 = jnp.asarray(b_proj, jnp.float32).reshape(1, D)
    return w1, b1, w2, b2


def _pick_tm(M, tm_max):
    # Keep >= 2 grid steps when M allows it (v7x: 2 TensorCores share the
    # 'parallel' axis); rows stay a multiple of 16.
    tm = min(tm_max, _round_up(pl.cdiv(M, 2), 16))
    return max(tm, 16)


@functools.partial(jax.jit, static_argnames=("tm_max", "approx_gelu"))
def mlp_forward(x, w1, b1, w2, b2, *, tm_max=512, approx_gelu=False):
    """x: (..., n_embd) float. w1/b1/w2/b2 from prepare_params()."""
    orig_shape = x.shape
    out_dtype = x.dtype
    D = orig_shape[-1]
    H = w1.shape[1]

    x2 = x.reshape(-1, D)                  # (M, D) tokens-major, f32
    M = x2.shape[0]

    tm = _pick_tm(M, tm_max)
    Mp = _round_up(M, tm)
    if Mp != M:
        x2 = jnp.pad(x2, ((0, Mp - M), (0, 0)))

    hc = _pick_hidden_chunk(H)
    n_chunks = H // hc

    grid = (Mp // tm,)

    kernel = functools.partial(_mlp_kernel, hc=hc, n_chunks=n_chunks,
                               approx_gelu=approx_gelu)

    flops = 2 * Mp * D * H * 2                          # two matmuls
    bytes_accessed = (Mp * D * x2.dtype.itemsize        # x (f32 in)
                      + Mp * D * jnp.dtype(out_dtype).itemsize   # out
                      + 2 * D * H * 2                   # W1 + W2 (bf16)
                      + (H + D) * 4)                    # biases (f32)

    out = pl.pallas_call(
        kernel,
        out_shape=jax.ShapeDtypeStruct((Mp, D), out_dtype),
        grid_spec=pltpu.PrefetchScalarGridSpec(
            num_scalar_prefetch=0,
            grid=grid,
            in_specs=[
                pl.BlockSpec((tm, D), lambda i: (i, 0)),   # x tile (pipelined)
                _resident_spec((D, H)),                    # W1 (resident)
                _resident_spec((1, H)),                    # b1 (resident)
                _resident_spec((H, D)),                    # W2 (resident)
                _resident_spec((1, D)),                    # b2 (resident)
            ],
            out_specs=pl.BlockSpec((tm, D), lambda i: (i, 0)),
        ),
        compiler_params=pltpu.CompilerParams(
            dimension_semantics=("parallel",),
            vmem_limit_bytes=32 * 1024 * 1024,
        ),
        cost_estimate=pl.CostEstimate(
            flops=int(flops),
            transcendentals=int(Mp * H),   # erf/tanh over the (M, 4D) hidden
            bytes_accessed=int(bytes_accessed),
        ),
    )(x2, w1, b1, w2, b2)

    out = out[:M]
    return out.reshape(orig_shape)


def _reference(x, w_fc, b_fc, w_proj, b_proj):
    h = jnp.dot(x, w_fc.T) + b_fc
    h = 0.5 * h * (1.0 + lax.erf(h / math.sqrt(2.0)))
    return jnp.dot(h, w_proj.T) + b_proj


if __name__ == "__main__":
    # GPTConfig: n_embd=384 -> hidden = 4*384 = 1536
    n_embd = 384
    hidden = 4 * n_embd
    batch, seq = 2, 8

    key = jax.random.PRNGKey(0)
    k_x, k_w1, k_b1, k_w2, k_b2 = jax.random.split(key, 5)

    x = jax.random.normal(k_x, (batch, seq, n_embd), dtype=jnp.float32)

    # Deterministic init mimicking nn.Linear defaults: U(-1/sqrt(fan_in), +)
    lim1 = 1.0 / math.sqrt(n_embd)
    lim2 = 1.0 / math.sqrt(hidden)
    w_fc = jax.random.uniform(k_w1, (hidden, n_embd), jnp.float32, -lim1, lim1)
    b_fc = jax.random.uniform(k_b1, (hidden,), jnp.float32, -lim1, lim1)
    w_proj = jax.random.uniform(k_w2, (n_embd, hidden), jnp.float32, -lim2, lim2)
    b_proj = jax.random.uniform(k_b2, (n_embd,), jnp.float32, -lim2, lim2)

    # One-time parameter prep (transpose + bf16 cast), hoisted out of forward.
    w1, b1, w2, b2 = prepare_params(w_fc, b_fc, w_proj, b_proj)

    ref = _reference(x, w_fc, b_fc, w_proj, b_proj)

    # Default path: exact erf GELU (torch.nn.GELU() semantics).
    out = jax.block_until_ready(mlp_forward(x, w1, b1, w2, b2))
    assert out.shape == (batch, seq, n_embd)
    # bf16 MXU operands (f32 accumulation) => looser tolerance vs f32 reference
    assert jnp.allclose(out, ref, atol=3e-2, rtol=3e-2), "exact-gelu mismatch"

    # Fast path: tanh-approx GELU (EUP-routed transcendental), gated by flag.
    out_fast = jax.block_until_ready(
        mlp_forward(x, w1, b1, w2, b2, approx_gelu=True))
    assert jnp.allclose(out_fast, ref, atol=3e-2, rtol=3e-2), \
        "approx-gelu mismatch"

    print("KERNEL_OK")
</pallas_src>

<mosaic_0001>
module attributes {stable_mosaic.version = 11 : i64} {
  func.func @_mlp_kernel(%arg0: i32, %arg1: memref<16x384xf32, #tpu.memory_space<vmem>>, %arg2: memref<384x1536xbf16, #tpu.memory_space<vmem>>, %arg3: memref<1x1536xf32, #tpu.memory_space<vmem>>, %arg4: memref<1536x384xbf16, #tpu.memory_space<vmem>>, %arg5: memref<1x384xf32, #tpu.memory_space<vmem>>, %arg6: memref<16x384xf32, #tpu.memory_space<vmem>>) attributes {dimension_semantics = [#tpu.dimension_semantics<parallel>], iteration_bounds = array<i64: 1>, scalar_prefetch = 0 : i64, scratch_operands = 0 : i64, tpu.core_type = #tpu.core_type<tc>, window_params = [{transform_indices = @transform_0, window_bounds = array<i64: 16, 384>}, {pipeline_mode = #tpu.pipeline_mode<synchronous>, transform_indices = @transform_1, window_bounds = array<i64: 384, 1536>}, {pipeline_mode = #tpu.pipeline_mode<synchronous>, transform_indices = @transform_2, window_bounds = array<i64: 1, 1536>}, {pipeline_mode = #tpu.pipeline_mode<synchronous>, transform_indices = @transform_3, window_bounds = array<i64: 1536, 384>}, {pipeline_mode = #tpu.pipeline_mode<synchronous>, transform_indices = @transform_4, window_bounds = array<i64: 1, 384>}, {transform_indices = @transform_5, window_bounds = array<i64: 16, 384>}]} {
    %c0 = arith.constant 0 : index
    %c0_0 = arith.constant 0 : index
    %0 = vector.load %arg1[%c0, %c0_0] : memref<16x384xf32, #tpu.memory_space<vmem>>, vector<16x384xf32>
    %1 = arith.truncf %0 : vector<16x384xf32> to vector<16x384xbf16>
    %cst = arith.constant 0.000000e+00 : f32
    %2 = vector.broadcast %cst : f32 to vector<16x384xf32>
    %c0_1 = arith.constant 0 : index
    %c0_2 = arith.constant 0 : index
    %3 = vector.load %arg2[%c0_1, %c0_2] : memref<384x1536xbf16, #tpu.memory_space<vmem>>, vector<384x512xbf16>
    %cst_3 = arith.constant dense<0.000000e+00> : vector<16x512xf32>
    %4 = tpu.matmul %1, %3, %cst_3 {dimension_numbers = #tpu.dot_dimension_numbers<[1], [0], [0], [1], [0, 0, 1, 1], [], []>} : vector<16x384xbf16>, vector<384x512xbf16>, vector<16x512xf32> -> vector<16x512xf32>
    %c0_4 = arith.constant 0 : index
    %c0_5 = arith.constant 0 : index
    %5 = vector.load %arg3[%c0_4, %c0_5] : memref<1x1536xf32, #tpu.memory_space<vmem>>, vector<1x512xf32>
    %6 = vector.broadcast %5 : vector<1x512xf32> to vector<16x512xf32>
    %7 = arith.addf %4, %6 : vector<16x512xf32>
    %cst_6 = arith.constant 5.000000e-01 : f32
    %8 = vector.broadcast %cst_6 : f32 to vector<16x512xf32>
    %9 = arith.mulf %8, %7 : vector<16x512xf32>
    %cst_7 = arith.constant 0.707106769 : f32
    %10 = vector.broadcast %cst_7 : f32 to vector<16x512xf32>
    %11 = arith.mulf %7, %10 : vector<16x512xf32>
    %12 = math.erf %11 : vector<16x512xf32>
    %cst_8 = arith.constant 1.000000e+00 : f32
    %13 = vector.broadcast %cst_8 : f32 to vector<16x512xf32>
    %14 = arith.addf %13, %12 : vector<16x512xf32>
    %15 = arith.mulf %9, %14 : vector<16x512xf32>
    %16 = arith.truncf %15 : vector<16x512xf32> to vector<16x512xbf16>
    %c0_9 = arith.constant 0 : index
    %c0_10 = arith.constant 0 : index
    %17 = vector.load %arg4[%c0_9, %c0_10] : memref<1536x384xbf16, #tpu.memory_space<vmem>>, vector<512x384xbf16>
    %cst_11 = arith.constant dense<0.000000e+00> : vector<16x384xf32>
    %18 = tpu.matmul %16, %17, %cst_11 {dimension_numbers = #tpu.dot_dimension_numbers<[1], [0], [0], [1], [0, 0, 1, 1], [], []>} : vector<16x512xbf16>, vector<512x384xbf16>, vector<16x384xf32> -> vector<16x384xf32>
    %19 = arith.addf %2, %18 : vector<16x384xf32>
    %c0_12 = arith.constant 0 : index
    %c512 = arith.constant 512 : index
    %20 = vector.load %arg2[%c0_12, %c512] : memref<384x1536xbf16, #tpu.memory_space<vmem>>, vector<384x512xbf16>
    %cst_13 = arith.constant dense<0.000000e+00> : vector<16x512xf32>
    %21 = tpu.matmul %1, %20, %cst_13 {dimension_numbers = #tpu.dot_dimension_numbers<[1], [0], [0], [1], [0, 0, 1, 1], [], []>} : vector<16x384xbf16>, vector<384x512xbf16>, vector<16x512xf32> -> vector<16x512xf32>
    %c0_14 = arith.constant 0 : index
    %c512_15 = arith.constant 512 : index
    %22 = vector.load %arg3[%c0_14, %c512_15] : memref<1x1536xf32, #tpu.memory_space<vmem>>, vector<1x512xf32>
    %23 = vector.broadcast %22 : vector<1x512xf32> to vector<16x512xf32>
    %24 = arith.addf %21, %23 : vector<16x512xf32>
    %cst_16 = arith.constant 5.000000e-01 : f32
    %25 = vector.broadcast %cst_16 : f32 to vector<16x512xf32>
    %26 = arith.mulf %25, %24 : vector<16x512xf32>
    %cst_17 = arith.constant 0.707106769 : f32
    %27 = vector.broadcast %cst_17 : f32 to vector<16x512xf32>
    %28 = arith.mulf %24, %27 : vector<16x512xf32>
    %29 = math.erf %28 : vector<16x512xf32>
    %cst_18 = arith.constant 1.000000e+00 : f32
    %30 = vector.broadcast %cst_18 : f32 to vector<16x512xf32>
    %31 = arith.addf %30, %29 : vector<16x512xf32>
    %32 = arith.mulf %26, %31 : vector<16x512xf32>
    %33 = arith.truncf %32 : vector<16x512xf32> to vector<16x512xbf16>
    %c512_19 = arith.constant 512 : index
    %c0_20 = arith.constant 0 : index
    %34 = vector.load %arg4[%c512_19, %c0_20] : memref<1536x384xbf16, #tpu.memory_space<vmem>>, vector<512x384xbf16>
    %cst_21 = arith.constant dense<0.000000e+00> : vector<16x384xf32>
    %35 = tpu.matmul %33, %34, %cst_21 {dimension_numbers = #tpu.dot_dimension_numbers<[1], [0], [0], [1], [0, 0, 1, 1], [], []>} : vector<16x512xbf16>, vector<512x384xbf16>, vector<16x384xf32> -> vector<16x384xf32>
    %36 = arith.addf %19, %35 : vector<16x384xf32>
    %c0_22 = arith.constant 0 : index
    %c1024 = arith.constant 1024 : index
    %37 = vector.load %arg2[%c0_22, %c1024] : memref<384x1536xbf16, #tpu.memory_space<vmem>>, vector<384x512xbf16>
    %cst_23 = arith.constant dense<0.000000e+00> : vector<16x512xf32>
    %38 = tpu.matmul %1, %37, %cst_23 {dimension_numbers = #tpu.dot_dimension_numbers<[1], [0], [0], [1], [0, 0, 1, 1], [], []>} : vector<16x384xbf16>, vector<384x512xbf16>, vector<16x512xf32> -> vector<16x512xf32>
    %c0_24 = arith.constant 0 : index
    %c1024_25 = arith.constant 1024 : index
    %39 = vector.load %arg3[%c0_24, %c1024_25] : memref<1x1536xf32, #tpu.memory_space<vmem>>, vector<1x512xf32>
    %40 = vector.broadcast %39 : vector<1x512xf32> to vector<16x512xf32>
    %41 = arith.addf %38, %40 : vector<16x512xf32>
    %cst_26 = arith.constant 5.000000e-01 : f32
    %42 = vector.broadcast %cst_26 : f32 to vector<16x512xf32>
    %43 = arith.mulf %42, %41 : vector<16x512xf32>
    %cst_27 = arith.constant 0.707106769 : f32
    %44 = vector.broadcast %cst_27 : f32 to vector<16x512xf32>
    %45 = arith.mulf %41, %44 : vector<16x512xf32>
    %46 = math.erf %45 : vector<16x512xf32>
    %cst_28 = arith.constant 1.000000e+00 : f32
    %47 = vector.broadcast %cst_28 : f32 to vector<16x512xf32>
    %48 = arith.addf %47, %46 : vector<16x512xf32>
    %49 = arith.mulf %43, %48 : vector<16x512xf32>
    %50 = arith.truncf %49 : vector<16x512xf32> to vector<16x512xbf16>
    %c1024_29 = arith.constant 1024 : index
    %c0_30 = arith.constant 0 : index
    %51 = vector.load %arg4[%c1024_29, %c0_30] : memref<1536x384xbf16, #tpu.memory_space<vmem>>, vector<512x384xbf16>
    %cst_31 = arith.constant dense<0.000000e+00> : vector<16x384xf32>
    %52 = tpu.matmul %50, %51, %cst_31 {dimension_numbers = #tpu.dot_dimension_numbers<[1], [0], [0], [1], [0, 0, 1, 1], [], []>} : vector<16x512xbf16>, vector<512x384xbf16>, vector<16x384xf32> -> vector<16x384xf32>
    %53 = arith.addf %36, %52 : vector<16x384xf32>
    %c0_32 = arith.constant 0 : index
    %c0_33 = arith.constant 0 : index
    %54 = vector.load %arg5[%c0_32, %c0_33] : memref<1x384xf32, #tpu.memory_space<vmem>>, vector<1x384xf32>
    %55 = vector.broadcast %54 : vector<1x384xf32> to vector<16x384xf32>
    %56 = arith.addf %53, %55 : vector<16x384xf32>
    %c0_34 = arith.constant 0 : index
    %c0_35 = arith.constant 0 : index
    %57 = vector.load %arg6[%c0_34, %c0_35] : memref<16x384xf32, #tpu.memory_space<vmem>>, vector<16x384xf32>
    tpu.vector_store %arg6[%c0_34, %c0_35], %56 {strides = array<i32>} : memref<16x384xf32, #tpu.memory_space<vmem>>, vector<16x384xf32>,
    return
  }
  func.func @transform_0(%arg0: i32) -> (i32, i32) {
    %c0_i32 = arith.constant 0 : i32
    %c0_i32_0 = arith.constant 0 : i32
    return %arg0, %c0_i32 : i32, i32
  }
  func.func @transform_1(%arg0: i32) -> (i32, i32) {
    %c0_i32 = arith.constant 0 : i32
    %c0_i32_0 = arith.constant 0 : i32
    %c0_i32_1 = arith.constant 0 : i32
    return %c0_i32, %c0_i32_0 : i32, i32
  }
  func.func @transform_2(%arg0: i32) -> (i32, i32) {
    %c0_i32 = arith.constant 0 : i32
    %c0_i32_0 = arith.constant 0 : i32
    %c0_i32_1 = arith.constant 0 : i32
    return %c0_i32, %c0_i32_0 : i32, i32
  }
  func.func @transform_3(%arg0: i32) -> (i32, i32) {
    %c0_i32 = arith.constant 0 : i32
    %c0_i32_0 = arith.constant 0 : i32
    %c0_i32_1 = arith.constant 0 : i32
    return %c0_i32, %c0_i32_0 : i32, i32
  }
  func.func @transform_4(%arg0: i32) -> (i32, i32) {
    %c0_i32 = arith.constant 0 : i32
    %c0_i32_0 = arith.constant 0 : i32
    %c0_i32_1 = arith.constant 0 : i32
    return %c0_i32, %c0_i32_0 : i32, i32
  }
  func.func @transform_5(%arg0: i32) -> (i32, i32) {
    %c0_i32 = arith.constant 0 : i32
    %c0_i32_0 = arith.constant 0 : i32
    return %arg0, %c0_i32 : i32, i32
  }
}

</mosaic_0001>

<llo_original>
// kernel: mlp_forward.1
$region0: #{mlp_forward.1}
  #allocation0 [shape = 'u32[]', space=smem, size = 0x4, offset = 0x4, fixed_abs, tag = 'smem constant byte address 0x4 - core index']
  #allocation1 [shape = 'u32[144,128]{1,0:T(1,128)}', space=vmem, size = 0x12000, scoped, tag = 'internal scratch']
  %s0 = inlined_call_operand.hbm [shape: f32[16,384], index: 0, kind: input, shape index: {}]
  %s1 = inlined_call_operand.hbm [shape: bf16[384,1536], index: 1, kind: input, shape index: {}]
  %s2 = inlined_call_operand.hbm [shape: f32[1,1536], index: 2, kind: input, shape index: {}]
  %s3 = inlined_call_operand.hbm [shape: bf16[1536,384], index: 3, kind: input, shape index: {}]
  %s4 = inlined_call_operand.hbm [shape: f32[1,384], index: 4, kind: input, shape index: {}]
  %s5 = inlined_call_operand.hbm [shape: f32[16,384], index: 5, kind: output, shape index: {}]
  %s6 = sld [smem:[#allocation0]]
  $region50: #{mlp_forward.1} parent=0
    _
  %s8 = ssub.s32 1, %s6
  %s9 = scalar_select 0, %s8, %s6
  $region1: #{mlp_forward.1} parent=0
    #allocation2 [shape = 'u8[24576]{0}', space=vmem, size = 0x6000, scoped, tag = 'input window, operand 0, single buffered']
    #allocation3 [shape = 's32[1]{0}', space=sflag, size = 0x4, scoped, tag = 'scoped memory for mlp_forward.1']
    #allocation4 [shape = 's32[1]{0}', space=sflag, size = 0x4, scoped, tag = 'scoped memory for mlp_forward.1']
    #allocation5 [shape = 'u8[1179648]{0}', space=vmem, size = 0x120000, scoped, tag = 'input window, operand 1, single buffered']
    #allocation6 [shape = 's32[1]{0}', space=sflag, size = 0x4, scoped, tag = 'scoped memory for mlp_forward.1']
    #allocation7 [shape = 'u8[6144]{0}', space=vmem, size = 0x1800, scoped, tag = 'input window, operand 2, single buffered']
    #allocation8 [shape = 'u8[1179648]{0}', space=vmem, size = 0x120000, scoped, tag = 'input window, operand 3, single buffered']
    #allocation9 [shape = 's32[1]{0}', space=sflag, size = 0x4, scoped, tag = 'scoped memory for mlp_forward.1']
    #allocation10 [shape = 'u8[1536]{0}', space=vmem, size = 0x800, scoped, tag = 'input window, operand 4, single buffered']
    #allocation11 [shape = 'u8[24576]{0}', space=vmem, size = 0x6000, scoped, tag = 'output window, operand 0, single buffered']
    %10 = vsyncpa [#allocation3], 0
    %11 = vsyncpa [#allocation6], 0
    %12 = vsyncpa [#allocation9], 0
    %13 = vsyncpa [#allocation4], 0
    // Predicated region
    $region2: #{mlp_forward.1} parent=1 // pred_check
      _
    $region3: #{mlp_forward.1} parent=1 // pred_check_branch
      %15 = sbr.rel (0) target = $region5
    $region4: #{mlp_forward.1} parent=1 // pred_region
      %s17 = ssub.s32 768, 768
      %18 = vsyncadd [#allocation3], %s17
      %s19 = sshll.u32 [#allocation2], 4
      %s20 = int_to_ptr.vmem [resolvable:$true] %s19
      %25 = dma.hbm_to_vmem [thread:$0]  %s0, 768, %s20, [#allocation3], 384, 384, 24
    $region5: #{mlp_forward.1} parent=1 // pred_fallthru
      _
    // Predicated region
    $region6: #{mlp_forward.1} parent=1 // pred_check
      _
    $region7: #{mlp_forward.1} parent=1 // pred_check_branch
      %27 = sbr.rel (0) target = $region9
    $region8: #{mlp_forward.1} parent=1 // pred_region
      %s29 = ssub.s32 36864, 36864
      %30 = vsyncadd [#allocation6], %s29
      %s31 = sshll.u32 [#allocation5], 4
      %s32 = int_to_ptr.vmem [resolvable:$true] %s31
      %37 = dma.hbm_to_vmem [thread:$0]  %s1, 36864, %s32, [#allocation6], 768, 768, 48
    $region9: #{mlp_forward.1} parent=1 // pred_fallthru
      _
    // Predicated region
    $region10: #{mlp_forward.1} parent=1 // pred_check
      _
    $region11: #{mlp_forward.1} parent=1 // pred_check_branch
      %39 = sbr.rel (0) target = $region13
    $region12: #{mlp_forward.1} parent=1 // pred_region
      %s41 = ssub.s32 192, 192
      %42 = vsyncadd [#allocation6], %s41
      %s44 = sshll.u32 [#allocation7], 4
      %s45 = int_to_ptr.vmem [resolvable:$true] %s44
      %47 = dma.hbm_to_vmem [thread:$0]  %s2, 192, %s45, [#allocation6]
    $region13: #{mlp_forward.1} parent=1 // pred_fallthru
      _
    // Predicated region
    $region14: #{mlp_forward.1} parent=1 // pred_check
      _
    $region15: #{mlp_forward.1} parent=1 // pred_check_branch
      %49 = sbr.rel (0) target = $region17
    $region16: #{mlp_forward.1} parent=1 // pred_region
      %s51 = ssub.s32 36864, 36864
      %52 = vsyncadd [#allocation9], %s51
      %s53 = sshll.u32 [#allocation8], 4
      %s54 = int_to_ptr.vmem [resolvable:$true] %s53
      %59 = dma.hbm_to_vmem [thread:$0]  %s3, 36864, %s54, [#allocation9], 192, 192, 12
    $region17: #{mlp_forward.1} parent=1 // pred_fallthru
      _
    // Predicated region
    $region18: #{mlp_forward.1} parent=1 // pred_check
      _
    $region19: #{mlp_forward.1} parent=1 // pred_check_branch
      %61 = sbr.rel (0) target = $region21
    $region20: #{mlp_forward.1} parent=1 // pred_region
      %s63 = ssub.s32 48, 48
      %64 = vsyncadd [#allocation9], %s63
      %s66 = sshll.u32 [#allocation10], 4
      %s67 = int_to_ptr.vmem [resolvable:$true] %s66
      %69 = dma.hbm_to_vmem [thread:$0]  %s4, 48, %s67, [#allocation9]
    $region21: #{mlp_forward.1} parent=1 // pred_fallthru
      _
    // Predicated region
    $region22: #{mlp_forward.1} parent=1 // pred_check
      _
    $region23: #{mlp_forward.1} parent=1 // pred_check_branch
      %71 = sbr.rel (0) target = $region25
    $region24: #{mlp_forward.1} parent=1 // pred_region
      %72 = dma.done [#allocation3], 768
    $region25: #{mlp_forward.1} parent=1 // pred_fallthru
      _
    // Predicated region
    $region26: #{mlp_forward.1} parent=1 // pred_check
      _
    $region27: #{mlp_forward.1} parent=1 // pred_check_branch
      %74 = sbr.rel (0) target = $region29
    $region28: #{mlp_forward.1} parent=1 // pred_region
      %75 = dma.done [#allocation6], 36864
    $region29: #{mlp_forward.1} parent=1 // pred_fallthru
      _
    // Predicated region
    $region30: #{mlp_forward.1} parent=1 // pred_check
      _
    $region31: #{mlp_forward.1} parent=1 // pred_check_branch
      %77 = sbr.rel (0) target = $region33
    $region32: #{mlp_forward.1} parent=1 // pred_region
      %78 = dma.done [#allocation6], 192
    $region33: #{mlp_forward.1} parent=1 // pred_fallthru
      _
    // Predicated region
    $region34: #{mlp_forward.1} parent=1 // pred_check
      _
    $region35: #{mlp_forward.1} parent=1 // pred_check_branch
      %80 = sbr.rel (0) target = $region37
    $region36: #{mlp_forward.1} parent=1 // pred_region
      %81 = dma.done [#allocation9], 36864
    $region37: #{mlp_forward.1} parent=1 // pred_fallthru
      _
    // Predicated region
    $region38: #{mlp_forward.1} parent=1 // pred_check
      _
    $region39: #{mlp_forward.1} parent=1 // pred_check_branch
      %83 = sbr.rel (0) target = $region41
    $region40: #{mlp_forward.1} parent=1 // pred_region
      %84 = dma.done [#allocation9], 48
    $region41: #{mlp_forward.1} parent=1 // pred_fallthru
      _
    %v86 = vld [vmem:[#allocation2] sm:$0xff]
    %v87 = vld [vmem:[#allocation2 + $0x8] sm:$0xff]
    %v88 = vld [vmem:[#allocation2 + $0x10] sm:$0xff]
    %v89 = vld [vmem:[#allocation2 + $0x18] sm:$0xff]
    %v90 = vld [vmem:[#allocation2 + $0x20] sm:$0xff]
    %v91 = vld [vmem:[#allocation2 + $0x28] sm:$0xff]
    %v92 = vpack.c.bf16 %v89, %v86
    %v93 = vpack.c.bf16 %v90, %v87
    %v94 = vpack.c.bf16 %v91, %v88
    %v95 = vld [vmem:[#allocation5] sm:$0xff]
    %v96 = vld [vmem:[#allocation5 + $0x8] sm:$0xff]
    %v97 = vld [vmem:[#allocation5 + $0x30] sm:$0xff]
    %v98 = vld [vmem:[#allocation5 + $0x38] sm:$0xff]
    %v99 = vld [vmem:[#allocation5 + $0x60] sm:$0xff]
    %v100 = vld [vmem:[#allocation5 + $0x68] sm:$0xff]
    %v101 = vld [vmem:[#allocation5 + $0x90] sm:$0xff]
    %v102 = vld [vmem:[#allocation5 + $0x98] sm:$0xff]
    %v103 = vld [vmem:[#allocation5 + $0xc0] sm:$0xff]
    %v104 = vld [vmem:[#allocation5 + $0xc8] sm:$0xff]
    %v105 = vld [vmem:[#allocation5 + $0xf0] sm:$0xff]
    %v106 = vld [vmem:[#allocation5 + $0xf8] sm:$0xff]
    %v107 = vld [vmem:[#allocation5 + $0x120] sm:$0xff]
    %v108 = vld [vmem:[#allocation5 + $0x128] sm:$0xff]
    %v109 = vld [vmem:[#allocation5 + $0x150] sm:$0xff]
    %v110 = vld [vmem:[#allocation5 + $0x158] sm:$0xff]
    %v111 = vld [vmem:[#allocation5 + $0x180] sm:$0xff]
    %v112 = vld [vmem:[#allocation5 + $0x188] sm:$0xff]
    %v113 = vld [vmem:[#allocation5 + $0x1b0] sm:$0xff]
    %v114 = vld [vmem:[#allocation5 + $0x1b8] sm:$0xff]
    %v115 = vld [vmem:[#allocation5 + $0x1e0] sm:$0xff]
    %v116 = vld [vmem:[#allocation5 + $0x1e8] sm:$0xff]
    %v117 = vld [vmem:[#allocation5 + $0x210] sm:$0xff]
    %v118 = vld [vmem:[#allocation5 + $0x218] sm:$0xff]
    %v119 = vld [vmem:[#allocation5 + $0x240] sm:$0xff]
    %v120 = vld [vmem:[#allocation5 + $0x248] sm:$0xff]
    %v121 = vld [vmem:[#allocation5 + $0x270] sm:$0xff]
    %v122 = vld [vmem:[#allocation5 + $0x278] sm:$0xff]
    %v123 = vld [vmem:[#allocation5 + $0x2a0] sm:$0xff]
    %v124 = vld [vmem:[#allocation5 + $0x2a8] sm:$0xff]
    %v125 = vld [vmem:[#allocation5 + $0x2d0] sm:$0xff]
    %v126 = vld [vmem:[#allocation5 + $0x2d8] sm:$0xff]
    %v127 = vld [vmem:[#allocation5 + $0x300] sm:$0xff]
    %v128 = vld [vmem:[#allocation5 + $0x308] sm:$0xff]
    %v129 = vld [vmem:[#allocation5 + $0x330] sm:$0xff]
    %v130 = vld [vmem:[#allocation5 + $0x338] sm:$0xff]
    %v131 = vld [vmem:[#allocation5 + $0x360] sm:$0xff]
    %v132 = vld [vmem:[#allocation5 + $0x368] sm:$0xff]
    %v133 = vld [vmem:[#allocation5 + $0x390] sm:$0xff]
    %v134 = vld [vmem:[#allocation5 + $0x398] sm:$0xff]
    %v135 = vld [vmem:[#allocation5 + $0x3c0] sm:$0xff]
    %v136 = vld [vmem:[#allocation5 + $0x3c8] sm:$0xff]
    %v137 = vld [vmem:[#allocation5 + $0x3f0] sm:$0xff]
    %v138 = vld [vmem:[#allocation5 + $0x3f8] sm:$0xff]
    %v139 = vld [vmem:[#allocation5 + $0x420] sm:$0xff]
    %v140 = vld [vmem:[#allocation5 + $0x428] sm:$0xff]
    %v141 = vld [vmem:[#allocation5 + $0x450] sm:$0xff]
    %v142 = vld [vmem:[#allocation5 + $0x458] sm:$0xff]
    %v143 = vld [vmem:[#allocation5 + $0x480] sm:$0xff]
    %v144 = vld [vmem:[#allocation5 + $0x488] sm:$0xff]
    %v145 = vld [vmem:[#allocation5 + $0x4b0] sm:$0xff]
    %v146 = vld [vmem:[#allocation5 + $0x4b8] sm:$0xff]
    %v147 = vld [vmem:[#allocation5 + $0x4e0] sm:$0xff]
    %v148 = vld [vmem:[#allocation5 + $0x4e8] sm:$0xff]
    %v149 = vld [vmem:[#allocation5 + $0x510] sm:$0xff]
    %v150 = vld [vmem:[#allocation5 + $0x518] sm:$0xff]
    %v151 = vld [vmem:[#allocation5 + $0x540] sm:$0xff]
    %v152 = vld [vmem:[#allocation5 + $0x548] sm:$0xff]
    %v153 = vld [vmem:[#allocation5 + $0x570] sm:$0xff]
    %v154 = vld [vmem:[#allocation5 + $0x578] sm:$0xff]
    %v155 = vld [vmem:[#allocation5 + $0x5a0] sm:$0xff]
    %v156 = vld [vmem:[#allocation5 + $0x5a8] sm:$0xff]
    %v157 = vld [vmem:[#allocation5 + $0x5d0] sm:$0xff]
    %v158 = vld [vmem:[#allocation5 + $0x5d8] sm:$0xff]
    %v159 = vld [vmem:[#allocation5 + $0x600] sm:$0xff]
    %v160 = vld [vmem:[#allocation5 + $0x608] sm:$0xff]
    %v161 = vld [vmem:[#allocation5 + $0x630] sm:$0xff]
    %v162 = vld [vmem:[#allocation5 + $0x638] sm:$0xff]
    %v163 = vld [vmem:[#allocation5 + $0x660] sm:$0xff]
    %v164 = vld [vmem:[#allocation5 + $0x668] sm:$0xff]
    %v165 = vld [vmem:[#allocation5 + $0x690] sm:$0xff]
    %v166 = vld [vmem:[#allocation5 + $0x698] sm:$0xff]
    %v167 = vld [vmem:[#allocation5 + $0x6c0] sm:$0xff]
    %v168 = vld [vmem:[#allocation5 + $0x6c8] sm:$0xff]
    %v169 = vld [vmem:[#allocation5 + $0x6f0] sm:$0xff]
    %v170 = vld [vmem:[#allocation5 + $0x6f8] sm:$0xff]
    %v171 = vld [vmem:[#allocation5 + $0x720] sm:$0xff]
    %v172 = vld [vmem:[#allocation5 + $0x728] sm:$0xff]
    %v173 = vld [vmem:[#allocation5 + $0x750] sm:$0xff]
    %v174 = vld [vmem:[#allocation5 + $0x758] sm:$0xff]
    %v175 = vld [vmem:[#allocation5 + $0x780] sm:$0xff]
    %v176 = vld [vmem:[#allocation5 + $0x788] sm:$0xff]
    %v177 = vld [vmem:[#allocation5 + $0x7b0] sm:$0xff]
    %v178 = vld [vmem:[#allocation5 + $0x7b8] sm:$0xff]
    %v179 = vld [vmem:[#allocation5 + $0x7e0] sm:$0xff]
    %v180 = vld [vmem:[#allocation5 + $0x7e8] sm:$0xff]
    %v181 = vld [vmem:[#allocation5 + $0x810] sm:$0xff]
    %v182 = vld [vmem:[#allocation5 + $0x818] sm:$0xff]
    %v183 = vld [vmem:[#allocation5 + $0x840] sm:$0xff]
    %v184 = vld [vmem:[#allocation5 + $0x848] sm:$0xff]
    %v185 = vld [vmem:[#allocation5 + $0x870] sm:$0xff]
    %v186 = vld [vmem:[#allocation5 + $0x878] sm:$0xff]
    %v187 = vld [vmem:[#allocation5 + $0x8a0] sm:$0xff]
    %v188 = vld [vmem:[#allocation5 + $0x8a8] sm:$0xff]
    %v189 = vld [vmem:[#allocation5 + $0x8d0] sm:$0xff]
    %v190 = vld [vmem:[#allocation5 + $0x8d8] sm:$0xff]
    %v191 = vld [vmem:[#allocation7] sm:$0xf]
    %v193 = vlaneseq
    %v194 = vshrl.u32 %v193, 7
    %v195 = vsub.s32 0, %v194
    %v196 = vrot.slane %v191, %v195
    %v197 = vlaneseq
    %v198 = vshrl.u32 %v197, 7
    %v199 = vsub.s32 1, %v198
    %v200 = vrot.slane %v191, %v199
    %v201 = vlaneseq
    %v202 = vshrl.u32 %v201, 7
    %v203 = vsub.s32 2, %v202
    %v204 = vrot.slane %v191, %v203
    %v205 = vlaneseq
    %v206 = vshrl.u32 %v205, 7
    %v207 = vsub.s32 3, %v206
    %v208 = vrot.slane %v191, %v207
    %v309 = vunpack.c.l.b16 %v95
    %v310 = vunpack.c.h.b16 %v95
    %v311 = vunpack.c.l.b16 %v96
    %v312 = vunpack.c.h.b16 %v96
    %v313 = vunpack.c.l.b16 %v97
    %v314 = vunpack.c.h.b16 %v97
    %v315 = vunpack.c.l.b16 %v98
    %v316 = vunpack.c.h.b16 %v98
    %v317 = vunpack.c.l.b16 %v99
    %v318 = vunpack.c.h.b16 %v99
    %v319 = vunpack.c.l.b16 %v100
    %v320 = vunpack.c.h.b16 %v100
    %v321 = vunpack.c.l.b16 %v101
    %v322 = vunpack.c.h.b16 %v101
    %v323 = vunpack.c.l.b16 %v102
    %v324 = vunpack.c.h.b16 %v102
    %v325 = vunpack.c.l.b16 %v103
    %v326 = vunpack.c.h.b16 %v103
    %v327 = vunpack.c.l.b16 %v104
    %v328 = vunpack.c.h.b16 %v104
    %v329 = vunpack.c.l.b16 %v105
    %v330 = vunpack.c.h.b16 %v105
    %v331 = vunpack.c.l.b16 %v106
    %v332 = vunpack.c.h.b16 %v106
    %v333 = vunpack.c.l.b16 %v107
    %v334 = vunpack.c.h.b16 %v107
    %v335 = vunpack.c.l.b16 %v108
    %v336 = vunpack.c.h.b16 %v108
    %v337 = vunpack.c.l.b16 %v109
    %v338 = vunpack.c.h.b16 %v109
    %v339 = vunpack.c.l.b16 %v110
    %v340 = vunpack.c.h.b16 %v110
    %v341 = vunpack.c.l.b16 %v111
    %v342 = vunpack.c.h.b16 %v111
    %v343 = vunpack.c.l.b16 %v112
    %v344 = vunpack.c.h.b16 %v112
    %v345 = vunpack.c.l.b16 %v113
    %v346 = vunpack.c.h.b16 %v113
    %v347 = vunpack.c.l.b16 %v114
    %v348 = vunpack.c.h.b16 %v114
    %v349 = vunpack.c.l.b16 %v115
    %v350 = vunpack.c.h.b16 %v115
    %v351 = vunpack.c.l.b16 %v116
    %v352 = vunpack.c.h.b16 %v116
    %v353 = vunpack.c.l.b16 %v117
    %v354 = vunpack.c.h.b16 %v117
    %v355 = vunpack.c.l.b16 %v118
    %v356 = vunpack.c.h.b16 %v118
    %v357 = vunpack.c.l.b16 %v119
    %v358 = vunpack.c.h.b16 %v119
    %v359 = vunpack.c.l.b16 %v120
    %v360 = vunpack.c.h.b16 %v120
    %v361 = vunpack.c.l.b16 %v121
    %v362 = vunpack.c.h.b16 %v121
    %v363 = vunpack.c.l.b16 %v122
    %v364 = vunpack.c.h.b16 %v122
    %v365 = vunpack.c.l.b16 %v123
    %v366 = vunpack.c.h.b16 %v123
    %v367 = vunpack.c.l.b16 %v124
    %v368 = vunpack.c.h.b16 %v124
    %v369 = vunpack.c.l.b16 %v125
    %v370 = vunpack.c.h.b16 %v125
    %v371 = vunpack.c.l.b16 %v126
    %v372 = vunpack.c.h.b16 %v126
    %v373 = vunpack.c.l.b16 %v127
    %v374 = vunpack.c.h.b16 %v127
    %v375 = vunpack.c.l.b16 %v128
    %v376 = vunpack.c.h.b16 %v128
    %v377 = vunpack.c.l.b16 %v129
    %v378 = vunpack.c.h.b16 %v129
    %v379 = vunpack.c.l.b16 %v130
    %v380 = vunpack.c.h.b16 %v130
    %v381 = vunpack.c.l.b16 %v131
    %v382 = vunpack.c.h.b16 %v131
    %v383 = vunpack.c.l.b16 %v132
    %v384 = vunpack.c.h.b16 %v132
    %v385 = vunpack.c.l.b16 %v133
    %v386 = vunpack.c.h.b16 %v133
    %v387 = vunpack.c.l.b16 %v134
    %v388 = vunpack.c.h.b16 %v134
    %v389 = vunpack.c.l.b16 %v135
    %v390 = vunpack.c.h.b16 %v135
    %v391 = vunpack.c.l.b16 %v136
    %v392 = vunpack.c.h.b16 %v136
    %v393 = vunpack.c.l.b16 %v137
    %v394 = vunpack.c.h.b16 %v137
    %v395 = vunpack.c.l.b16 %v138
    %v396 = vunpack.c.h.b16 %v138
    %v397 = vunpack.c.l.b16 %v139
    %v398 = vunpack.c.h.b16 %v139
    %v399 = vunpack.c.l.b16 %v140
    %v400 = vunpack.c.h.b16 %v140
    %v401 = vunpack.c.l.b16 %v141
    %v402 = vunpack.c.h.b16 %v141
    %v403 = vunpack.c.l.b16 %v142
    %v404 = vunpack.c.h.b16 %v142
    %v405 = vunpack.c.l.b16 %v143
    %v406 = vunpack.c.h.b16 %v143
    %v407 = vunpack.c.l.b16 %v144
    %v408 = vunpack.c.h.b16 %v144
    %v409 = vunpack.c.l.b16 %v145
    %v410 = vunpack.c.h.b16 %v145
    %v411 = vunpack.c.l.b16 %v146
    %v412 = vunpack.c.h.b16 %v146
    %v413 = vunpack.c.l.b16 %v147
    %v414 = vunpack.c.h.b16 %v147
    %v415 = vunpack.c.l.b16 %v148
    %v416 = vunpack.c.h.b16 %v148
    %v417 = vunpack.c.l.b16 %v149
    %v418 = vunpack.c.h.b16 %v149
    %v419 = vunpack.c.l.b16 %v150
    %v420 = vunpack.c.h.b16 %v150
    %v421 = vunpack.c.l.b16 %v151
    %v422 = vunpack.c.h.b16 %v151
    %v423 = vunpack.c.l.b16 %v152
    %v424 = vunpack.c.h.b16 %v152
    %v425 = vunpack.c.l.b16 %v153
    %v426 = vunpack.c.h.b16 %v153
    %v427 = vunpack.c.l.b16 %v154
    %v428 = vunpack.c.h.b16 %v154
    %v429 = vunpack.c.l.b16 %v155
    %v430 = vunpack.c.h.b16 %v155
    %v431 = vunpack.c.l.b16 %v156
    %v432 = vunpack.c.h.b16 %v156
    %v433 = vunpack.c.l.b16 %v157
    %v434 = vunpack.c.h.b16 %v157
    %v435 = vunpack.c.l.b16 %v158
    %v436 = vunpack.c.h.b16 %v158
    %v437 = vunpack.c.l.b16 %v159
    %v438 = vunpack.c.h.b16 %v159
    %v439 = vunpack.c.l.b16 %v160
    %v440 = vunpack.c.h.b16 %v160
    %v441 = vunpack.c.l.b16 %v161
    %v442 = vunpack.c.h.b16 %v161
    %v443 = vunpack.c.l.b16 %v162
    %v444 = vunpack.c.h.b16 %v162
    %v445 = vunpack.c.l.b16 %v163
    %v446 = vunpack.c.h.b16 %v163
    %v447 = vunpack.c.l.b16 %v164
    %v448 = vunpack.c.h.b16 %v164
    %v449 = vunpack.c.l.b16 %v165
    %v450 = vunpack.c.h.b16 %v165
    %v451 = vunpack.c.l.b16 %v166
    %v452 = vunpack.c.h.b16 %v166
    %v453 = vunpack.c.l.b16 %v167
    %v454 = vunpack.c.h.b16 %v167
    %v455 = vunpack.c.l.b16 %v168
    %v456 = vunpack.c.h.b16 %v168
    %v457 = vunpack.c.l.b16 %v169
    %v458 = vunpack.c.h.b16 %v169
    %v459 = vunpack.c.l.b16 %v170
    %v460 = vunpack.c.h.b16 %v170
    %v461 = vunpack.c.l.b16 %v171
    %v462 = vunpack.c.h.b16 %v171
    %v463 = vunpack.c.l.b16 %v172
    %v464 = vunpack.c.h.b16 %v172
    %v465 = vunpack.c.l.b16 %v173
    %v466 = vunpack.c.h.b16 %v173
    %v467 = vunpack.c.l.b16 %v174
    %v468 = vunpack.c.h.b16 %v174
    %v469 = vunpack.c.l.b16 %v175
    %v470 = vunpack.c.h.b16 %v175
    %v471 = vunpack.c.l.b16 %v176
    %v472 = vunpack.c.h.b16 %v176
    %v473 = vunpack.c.l.b16 %v177
    %v474 = vunpack.c.h.b16 %v177
    %v475 = vunpack.c.l.b16 %v178
    %v476 = vunpack.c.h.b16 %v178
    %v477 = vunpack.c.l.b16 %v179
    %v478 = vunpack.c.h.b16 %v179
    %v479 = vunpack.c.l.b16 %v180
    %v480 = vunpack.c.h.b16 %v180
    %v481 = vunpack.c.l.b16 %v181
    %v482 = vunpack.c.h.b16 %v181
    %v483 = vunpack.c.l.b16 %v182
    %v484 = vunpack.c.h.b16 %v182
    %v485 = vunpack.c.l.b16 %v183
    %v486 = vunpack.c.h.b16 %v183
    %v487 = vunpack.c.l.b16 %v184
    %v488 = vunpack.c.h.b16 %v184
    %v489 = vunpack.c.l.b16 %v185
    %v490 = vunpack.c.h.b16 %v185
    %v491 = vunpack.c.l.b16 %v186
    %v492 = vunpack.c.h.b16 %v186
    %v493 = vunpack.c.l.b16 %v187
    %v494 = vunpack.c.h.b16 %v187
    %v495 = vunpack.c.l.b16 %v188
    %v496 = vunpack.c.h.b16 %v188
    %v497 = vunpack.c.l.b16 %v189
    %v498 = vunpack.c.h.b16 %v189
    %v499 = vunpack.c.l.b16 %v190
    %v500 = vunpack.c.h.b16 %v190
    %v501 = vpack.c.b16 %v313, %v309
    %v502 = vpack.c.b16 %v314, %v310
    %v503 = vpack.c.b16 %v315, %v311
    %v504 = vpack.c.b16 %v316, %v312
    %v505 = vpack.c.b16 %v321, %v317
    %v506 = vpack.c.b16 %v322, %v318
    %v507 = vpack.c.b16 %v323, %v319
    %v508 = vpack.c.b16 %v324, %v320
    %v509 = vpack.c.b16 %v329, %v325
    %v510 = vpack.c.b16 %v330, %v326
    %v511 = vpack.c.b16 %v331, %v327
    %v512 = vpack.c.b16 %v332, %v328
    %v513 = vpack.c.b16 %v337, %v333
    %v514 = vpack.c.b16 %v338, %v334
    %v515 = vpack.c.b16 %v339, %v335
    %v516 = vpack.c.b16 %v340, %v336
    %v517 = vpack.c.b16 %v345, %v341
    %v518 = vpack.c.b16 %v346, %v342
    %v519 = vpack.c.b16 %v347, %v343
    %v520 = vpack.c.b16 %v348, %v344
    %v521 = vpack.c.b16 %v353, %v349
    %v522 = vpack.c.b16 %v354, %v350
    %v523 = vpack.c.b16 %v355, %v351
    %v524 = vpack.c.b16 %v356, %v352
    %v525 = vpack.c.b16 %v361, %v357
    %v526 = vpack.c.b16 %v362, %v358
    %v527 = vpack.c.b16 %v363, %v359
    %v528 = vpack.c.b16 %v364, %v360
    %v529 = vpack.c.b16 %v369, %v365
    %v530 = vpack.c.b16 %v370, %v366
    %v531 = vpack.c.b16 %v371, %v367
    %v532 = vpack.c.b16 %v372, %v368
    %v533 = vpack.c.b16 %v377, %v373
    %v534 = vpack.c.b16 %v378, %v374
    %v535 = vpack.c.b16 %v379, %v375
    %v536 = vpack.c.b16 %v380, %v376
    %v537 = vpack.c.b16 %v385, %v381
    %v538 = vpack.c.b16 %v386, %v382
    %v539 = vpack.c.b16 %v387, %v383
    %v540 = vpack.c.b16 %v388, %v384
    %v541 = vpack.c.b16 %v393, %v389
    %v542 = vpack.c.b16 %v394, %v390
    %v543 = vpack.c.b16 %v395, %v391
    %v544 = vpack.c.b16 %v396, %v392
    %v545 = vpack.c.b16 %v401, %v397
    %v546 = vpack.c.b16 %v402, %v398
    %v547 = vpack.c.b16 %v403, %v399
    %v548 = vpack.c.b16 %v404, %v400
    %v549 = vpack.c.b16 %v409, %v405
    %v550 = vpack.c.b16 %v410, %v406
    %v551 = vpack.c.b16 %v411, %v407
    %v552 = vpack.c.b16 %v412, %v408
    %v553 = vpack.c.b16 %v417, %v413
    %v554 = vpack.c.b16 %v418, %v414
    %v555 = vpack.c.b16 %v419, %v415
    %v556 = vpack.c.b16 %v420, %v416
    %v557 = vpack.c.b16 %v425, %v421
    %v558 = vpack.c.b16 %v426, %v422
    %v559 = vpack.c.b16 %v427, %v423
    %v560 = vpack.c.b16 %v428, %v424
    %v561 = vpack.c.b16 %v433, %v429
    %v562 = vpack.c.b16 %v434, %v430
    %v563 = vpack.c.b16 %v435, %v431
    %v564 = vpack.c.b16 %v436, %v432
    %v565 = vpack.c.b16 %v441, %v437
    %v566 = vpack.c.b16 %v442, %v438
    %v567 = vpack.c.b16 %v443, %v439
    %v568 = vpack.c.b16 %v444, %v440
    %v569 = vpack.c.b16 %v449, %v445
    %v570 = vpack.c.b16 %v450, %v446
    %v571 = vpack.c.b16 %v451, %v447
    %v572 = vpack.c.b16 %v452, %v448
    %v573 = vpack.c.b16 %v457, %v453
    %v574 = vpack.c.b16 %v458, %v454
    %v575 = vpack.c.b16 %v459, %v455
    %v576 = vpack.c.b16 %v460, %v456
    %v577 = vpack.c.b16 %v465, %v461
    %v578 = vpack.c.b16 %v466, %v462
    %v579 = vpack.c.b16 %v467, %v463
    %v580 = vpack.c.b16 %v468, %v464
    %v581 = vpack.c.b16 %v473, %v469
    %v582 = vpack.c.b16 %v474, %v470
    %v583 = vpack.c.b16 %v475, %v471
    %v584 = vpack.c.b16 %v476, %v472
    %v585 = vpack.c.b16 %v481, %v477
    %v586 = vpack.c.b16 %v482, %v478
    %v587 = vpack.c.b16 %v483, %v479
    %v588 = vpack.c.b16 %v484, %v480
    %v589 = vpack.c.b16 %v489, %v485
    %v590 = vpack.c.b16 %v490, %v486
    %v591 = vpack.c.b16 %v491, %v487
    %v592 = vpack.c.b16 %v492, %v488
    %v593 = vpack.c.b16 %v497, %v493
    %v594 = vpack.c.b16 %v498, %v494
    %v595 = vpack.c.b16 %v499, %v495
    %v596 = vpack.c.b16 %v500, %v496
    %693 = vmatprep.subr.bf16.mxu0 %v502
    %694 = vmatpush1.bf16.msra.mxu0 %v501
    %695 = vmatprep.subr.bf16.mxu0 %v506
    %696 = vmatpush1.bf16.msra.mxu0 %v505
    %697 = vmatprep.subr.bf16.mxu0 %v510
    %698 = vmatpush1.bf16.msra.mxu0 %v509
    %699 = vmatprep.subr.bf16.mxu0 %v514
    %700 = vmatpush1.bf16.msra.mxu0 %v513
    %701 = vmatprep.subr.bf16.mxu0 %v518
    %702 = vmatpush1.bf16.msra.mxu0 %v517
    %703 = vmatprep.subr.bf16.mxu0 %v522
    %704 = vmatpush1.bf16.msra.mxu0 %v521
    %705 = vmatprep.subr.bf16.mxu0 %v526
    %706 = vmatpush1.bf16.msra.mxu0 %v525
    %707 = vmatprep.subr.bf16.mxu0 %v530
    %708 = vmatpush1.bf16.msra.mxu0 %v529
    %709 = vmatprep.subr.bf16.mxu0 %v534
    %710 = vmatpush1.bf16.msra.mxu0 %v533
    %711 = vmatprep.subr.bf16.mxu0 %v538
    %712 = vmatpush1.bf16.msra.mxu0 %v537
    %713 = vmatprep.subr.bf16.mxu0 %v542
    %714 = vmatpush1.bf16.msra.mxu0 %v541
    %715 = vmatprep.subr.bf16.mxu0 %v546
    %716 = vmatpush1.bf16.msra.mxu0 %v545
    %717 = vmatprep.subr.bf16.mxu0 %v550
    %718 = vmatpush1.bf16.msra.mxu0 %v549
    %719 = vmatprep.subr.bf16.mxu0 %v554
    %720 = vmatpush1.bf16.msra.mxu0 %v553
    %721 = vmatprep.subr.bf16.mxu0 %v558
    %722 = vmatpush1.bf16.msra.mxu0 %v557
    %723 = vmatprep.subr.bf16.mxu0 %v562
    %724 = vmatpush1.bf16.msra.mxu0 %v561
    %725 = vmatprep.mubr.bf16.mxu0 %v93
    %726 = vmatmul.mubr.bf16.gmra.mrb[0].mxu0 %v92
    %v727 = vpop.f32.mrb[0].mxu0
    %v728 = vadd.f32 %v196, %v727
    %v729 = vpop.f32.mrb[0].mxu0
    %v730 = vadd.f32 %v200, %v729
    %v731 = vpop.f32.mrb[0].mxu0
    %v732 = vadd.f32 %v196, %v731
    %v733 = vpop.f32.mrb[0].mxu0
    %v734 = vadd.f32 %v200, %v733
    %735 = vdwg.mxu0
    %736 = vmatprep.subr.bf16.mxu0 %v566
    %737 = vmatpush1.bf16.msra.mxu0 %v565
    %738 = vmatprep.subr.bf16.mxu0 %v570
    %739 = vmatpush1.bf16.msra.mxu0 %v569
    %740 = vmatprep.subr.bf16.mxu0 %v574
    %741 = vmatpush1.bf16.msra.mxu0 %v573
    %742 = vmatprep.subr.bf16.mxu0 %v578
    %743 = vmatpush1.bf16.msra.mxu0 %v577
    %744 = vmatprep.subr.bf16.mxu0 %v582
    %745 = vmatpush1.bf16.msra.mxu0 %v581
    %746 = vmatprep.subr.bf16.mxu0 %v586
    %747 = vmatpush1.bf16.msra.mxu0 %v585
    %748 = vmatprep.subr.bf16.mxu0 %v590
    %749 = vmatpush1.bf16.msra.mxu0 %v589
    %750 = vmatprep.subr.bf16.mxu0 %v594
    %751 = vmatpush1.bf16.msra.mxu0 %v593
    %752 = vmatprep.subr.bf16.mxu0 0
    %753 = vmatpush1.bf16.msra.mxu0 0
    %754 = vmatprep.subr.bf16.mxu0 0
    %755 = vmatpush1.bf16.msra.mxu0 0
    %756 = vmatprep.subr.bf16.mxu0 0
    %757 = vmatpush1.bf16.msra.mxu0 0
    %758 = vmatprep.subr.bf16.mxu0 0
    %759 = vmatpush1.bf16.msra.mxu0 0
    %760 = vmatprep.subr.bf16.mxu0 0
    %761 = vmatpush1.bf16.msra.mxu0 0
    %762 = vmatprep.subr.bf16.mxu0 0
    %763 = vmatpush1.bf16.msra.mxu0 0
    %764 = vmatprep.subr.bf16.mxu0 0
    %765 = vmatpush1.bf16.msra.mxu0 0
    %766 = vmatprep.subr.bf16.mxu0 0
    %767 = vmatpush1.bf16.msra.mxu0 0
    %768 = vmatprep.mubr.bf16.mxu0 0
    %769 = vmatmul.mubr.bf16.gmra.mrb[0].mxu0 %v94
    %v770 = vpop.f32.mrb[0].mxu0
    %v771 = vadd.f32 %v728, %v770
    %v772 = vpop.f32.mrb[0].mxu0
    %v773 = vadd.f32 %v730, %v772
    %v774 = vpop.f32.mrb[0].mxu0
    %v775 = vadd.f32 %v732, %v774
    %v776 = vpop.f32.mrb[0].mxu0
    %v777 = vadd.f32 %v734, %v776
    %778 = vdwg.mxu0
    %779 = vmatprep.subr.bf16.mxu0 %v504
    %780 = vmatpush1.bf16.msra.mxu0 %v503
    %781 = vmatprep.subr.bf16.mxu0 %v508
    %782 = vmatpush1.bf16.msra.mxu0 %v507
    %783 = vmatprep.subr.bf16.mxu0 %v512
    %784 = vmatpush1.bf16.msra.mxu0 %v511
    %785 = vmatprep.subr.bf16.mxu0 %v516
    %786 = vmatpush1.bf16.msra.mxu0 %v515
    %787 = vmatprep.subr.bf16.mxu0 %v520
    %788 = vmatpush1.bf16.msra.mxu0 %v519
    %789 = vmatprep.subr.bf16.mxu0 %v524
    %790 = vmatpush1.bf16.msra.mxu0 %v523
    %791 = vmatprep.subr.bf16.mxu0 %v528
    %792 = vmatpush1.bf16.msra.mxu0 %v527
    %793 = vmatprep.subr.bf16.mxu0 %v532
    %794 = vmatpush1.bf16.msra.mxu0 %v531
    %795 = vmatprep.subr.bf16.mxu0 %v536
    %796 = vmatpush1.bf16.msra.mxu0 %v535
    %797 = vmatprep.subr.bf16.mxu0 %v540
    %798 = vmatpush1.bf16.msra.mxu0 %v539
    %799 = vmatprep.subr.bf16.mxu0 %v544
    %800 = vmatpush1.bf16.msra.mxu0 %v543
    %801 = vmatprep.subr.bf16.mxu0 %v548
    %802 = vmatpush1.bf16.msra.mxu0 %v547
    %803 = vmatprep.subr.bf16.mxu0 %v552
    %804 = vmatpush1.bf16.msra.mxu0 %v551
    %805 = vmatprep.subr.bf16.mxu0 %v556
    %806 = vmatpush1.bf16.msra.mxu0 %v555
    %807 = vmatprep.subr.bf16.mxu0 %v560
    %808 = vmatpush1.bf16.msra.mxu0 %v559
    %809 = vmatprep.subr.bf16.mxu0 %v564
    %810 = vmatpush1.bf16.msra.mxu0 %v563
    %811 = vmatprep.mubr.bf16.mxu0 %v93
    %812 = vmatmul.mubr.bf16.gmra.mrb[0].mxu0 %v92
    %v813 = vpop.f32.mrb[0].mxu0
    %v814 = vadd.f32 %v204, %v813
    %v815 = vpop.f32.mrb[0].mxu0
    %v816 = vadd.f32 %v208, %v815
    %v817 = vpop.f32.mrb[0].mxu0
    %v818 = vadd.f32 %v204, %v817
    %v819 = vpop.f32.mrb[0].mxu0
    %v820 = vadd.f32 %v208, %v819
    %821 = vdwg.mxu0
    %822 = vmatprep.subr.bf16.mxu0 %v568
    %823 = vmatpush1.bf16.msra.mxu0 %v567
    %824 = vmatprep.subr.bf16.mxu0 %v572
    %825 = vmatpush1.bf16.msra.mxu0 %v571
    %826 = vmatprep.subr.bf16.mxu0 %v576
    %827 = vmatpush1.bf16.msra.mxu0 %v575
    %828 = vmatprep.subr.bf16.mxu0 %v580
    %829 = vmatpush1.bf16.msra.mxu0 %v579
    %830 = vmatprep.subr.bf16.mxu0 %v584
    %831 = vmatpush1.bf16.msra.mxu0 %v583
    %832 = vmatprep.subr.bf16.mxu0 %v588
    %833 = vmatpush1.bf16.msra.mxu0 %v587
    %834 = vmatprep.subr.bf16.mxu0 %v592
    %835 = vmatpush1.bf16.msra.mxu0 %v591
    %836 = vmatprep.subr.bf16.mxu0 %v596
    %837 = vmatpush1.bf16.msra.mxu0 %v595
    %838 = vmatprep.subr.bf16.mxu0 0
    %839 = vmatpush1.bf16.msra.mxu0 0
    %840 = vmatprep.subr.bf16.mxu0 0
    %841 = vmatpush1.bf16.msra.mxu0 0
    %842 = vmatprep.subr.bf16.mxu0 0
    %843 = vmatpush1.bf16.msra.mxu0 0
    %844 = vmatprep.subr.bf16.mxu0 0
    %845 = vmatpush1.bf16.msra.mxu0 0
    %846 = vmatprep.subr.bf16.mxu0 0
    %847 = vmatpush1.bf16.msra.mxu0 0
    %848 = vmatprep.subr.bf16.mxu0 0
    %849 = vmatpush1.bf16.msra.mxu0 0
    %850 = vmatprep.subr.bf16.mxu0 0
    %851 = vmatpush1.bf16.msra.mxu0 0
    %852 = vmatprep.subr.bf16.mxu0 0
    %853 = vmatpush1.bf16.msra.mxu0 0
    %854 = vmatprep.mubr.bf16.mxu0 0
    %855 = vmatmul.mubr.bf16.gmra.mrb[0].mxu0 %v94
    %v856 = vpop.f32.mrb[0].mxu0
    %v857 = vadd.f32 %v814, %v856
    %v858 = vpop.f32.mrb[0].mxu0
    %v859 = vadd.f32 %v816, %v858
    %v860 = vpop.f32.mrb[0].mxu0
    %v861 = vadd.f32 %v818, %v860
    %v862 = vpop.f32.mrb[0].mxu0
    %v863 = vadd.f32 %v820, %v862
    %864 = vdwg.mxu0
    %v865 = vmul.f32 %v771, 0.5
    %v866 = vmul.f32 %v773, 0.5
    %v867 = vmul.f32 %v857, 0.5
    %v868 = vmul.f32 %v859, 0.5
    %v869 = vmul.f32 %v775, 0.5
    %v870 = vmul.f32 %v777, 0.5
    %v871 = vmul.f32 %v861, 0.5
    %v872 = vmul.f32 %v863, 0.5
    %v873 = vmul.f32 %v771, 0.70710677
    %v874 = vmul.f32 %v773, 0.70710677
    %v875 = vmul.f32 %v857, 0.70710677
    %v876 = vmul.f32 %v859, 0.70710677
    %v877 = vmul.f32 %v775, 0.70710677
    %v878 = vmul.f32 %v777, 0.70710677
    %v879 = vmul.f32 %v861, 0.70710677
    %v880 = vmul.f32 %v863, 0.70710677
    %v881 = verf.f32.pop %v873
    %v882 = verf.f32.pop %v874
    %v883 = verf.f32.pop %v875
    %v884 = verf.f32.pop %v876
    %v885 = verf.f32.pop %v877
    %v886 = verf.f32.pop %v878
    %v887 = verf.f32.pop %v879
    %v888 = verf.f32.pop %v880
    %v889 = vadd.f32 %v881, 1.0
    %v890 = vadd.f32 %v882, 1.0
    %v891 = vadd.f32 %v883, 1.0
    %v892 = vadd.f32 %v884, 1.0
    %v893 = vadd.f32 %v885, 1.0
    %v894 = vadd.f32 %v886, 1.0
    %v895 = vadd.f32 %v887, 1.0
    %v896 = vadd.f32 %v888, 1.0
    %v897 = vmul.f32 %v865, %v889
    %v898 = vmul.f32 %v866, %v890
    %v899 = vmul.f32 %v867, %v891
    %v900 = vmul.f32 %v868, %v892
    %v901 = vmul.f32 %v869, %v893
    %v902 = vmul.f32 %v870, %v894
    %v903 = vmul.f32 %v871, %v895
    %v904 = vmul.f32 %v872, %v896
    %v905 = vpack.c.bf16 %v901, %v897
    %v906 = vpack.c.bf16 %v902, %v898
    %v907 = vpack.c.bf16 %v903, %v899
    %v908 = vpack.c.bf16 %v904, %v900
    %v909 = vld [vmem:[#allocation8] sm:$0xff]
    %v910 = vld [vmem:[#allocation8 + $0x8] sm:$0xf]
    %v911 = vld [vmem:[#allocation8 + $0xc] sm:$0xff]
    %v912 = vld [vmem:[#allocation8 + $0x14] sm:$0xf]
    %v913 = vld [vmem:[#allocation8 + $0x18] sm:$0xff]
    %v914 = vld [vmem:[#allocation8 + $0x20] sm:$0xf]
    %v915 = vld [vmem:[#allocation8 + $0x24] sm:$0xff]
    %v916 = vld [vmem:[#allocation8 + $0x2c] sm:$0xf]
    %v917 = vld [vmem:[#allocation8 + $0x30] sm:$0xff]
    %v918 = vld [vmem:[#allocation8 + $0x38] sm:$0xf]
    %v919 = vld [vmem:[#allocation8 + $0x3c] sm:$0xff]
    %v920 = vld [vmem:[#allocation8 + $0x44] sm:$0xf]
    %v921 = vld [vmem:[#allocation8 + $0x48] sm:$0xff]
    %v922 = vld [vmem:[#allocation8 + $0x50] sm:$0xf]
    %v923 = vld [vmem:[#allocation8 + $0x54] sm:$0xff]
    %v924 = vld [vmem:[#allocation8 + $0x5c] sm:$0xf]
    %v925 = vld [vmem:[#allocation8 + $0x60] sm:$0xff]
    %v926 = vld [vmem:[#allocation8 + $0x68] sm:$0xf]
    %v927 = vld [vmem:[#allocation8 + $0x6c] sm:$0xff]
    %v928 = vld [vmem:[#allocation8 + $0x74] sm:$0xf]
    %v929 = vld [vmem:[#allocation8 + $0x78] sm:$0xff]
    %v930 = vld [vmem:[#allocation8 + $0x80] sm:$0xf]
    %v931 = vld [vmem:[#allocation8 + $0x84] sm:$0xff]
    %v932 = vld [vmem:[#allocation8 + $0x8c] sm:$0xf]
    %v933 = vld [vmem:[#allocation8 + $0x90] sm:$0xff]
    %v934 = vld [vmem:[#allocation8 + $0x98] sm:$0xf]
    %v935 = vld [vmem:[#allocation8 + $0x9c] sm:$0xff]
    %v936 = vld [vmem:[#allocation8 + $0xa4] sm:$0xf]
    %v937 = vld [vmem:[#allocation8 + $0xa8] sm:$0xff]
    %v938 = vld [vmem:[#allocation8 + $0xb0] sm:$0xf]
    %v939 = vld [vmem:[#allocation8 + $0xb4] sm:$0xff]
    %v940 = vld [vmem:[#allocation8 + $0xbc] sm:$0xf]
    %v941 = vld [vmem:[#allocation8 + $0xc0] sm:$0xff]
    %v942 = vld [vmem:[#allocation8 + $0xc8] sm:$0xf]
    %v943 = vld [vmem:[#allocation8 + $0xcc] sm:$0xff]
    %v944 = vld [vmem:[#allocation8 + $0xd4] sm:$0xf]
    %v945 = vld [vmem:[#allocation8 + $0xd8] sm:$0xff]
    %v946 = vld [vmem:[#allocation8 + $0xe0] sm:$0xf]
    %v947 = vld [vmem:[#allocation8 + $0xe4] sm:$0xff]
    %v948 = vld [vmem:[#allocation8 + $0xec] sm:$0xf]
    %v949 = vld [vmem:[#allocation8 + $0xf0] sm:$0xff]
    %v950 = vld [vmem:[#allocation8 + $0xf8] sm:$0xf]
    %v951 = vld [vmem:[#allocation8 + $0xfc] sm:$0xff]
    %v952 = vld [vmem:[#allocation8 + $0x104] sm:$0xf]
    %v953 = vld [vmem:[#allocation8 + $0x108] sm:$0xff]
    %v954 = vld [vmem:[#allocation8 + $0x110] sm:$0xf]
    %v955 = vld [vmem:[#allocation8 + $0x114] sm:$0xff]
    %v956 = vld [vmem:[#allocation8 + $0x11c] sm:$0xf]
    %v957 = vld [vmem:[#allocation8 + $0x120] sm:$0xff]
    %v958 = vld [vmem:[#allocation8 + $0x128] sm:$0xf]
    %v959 = vld [vmem:[#allocation8 + $0x12c] sm:$0xff]
    %v960 = vld [vmem:[#allocation8 + $0x134] sm:$0xf]
    %v961 = vld [vmem:[#allocation8 + $0x138] sm:$0xff]
    %v962 = vld [vmem:[#allocation8 + $0x140] sm:$0xf]
    %v963 = vld [vmem:[#allocation8 + $0x144] sm:$0xff]
    %v964 = vld [vmem:[#allocation8 + $0x14c] sm:$0xf]
    %v965 = vld [vmem:[#allocation8 + $0x150] sm:$0xff]
    %v966 = vld [vmem:[#allocation8 + $0x158] sm:$0xf]
    %v967 = vld [vmem:[#allocation8 + $0x15c] sm:$0xff]
    %v968 = vld [vmem:[#allocation8 + $0x164] sm:$0xf]
    %v969 = vld [vmem:[#allocation8 + $0x168] sm:$0xff]
    %v970 = vld [vmem:[#allocation8 + $0x170] sm:$0xf]
    %v971 = vld [vmem:[#allocation8 + $0x174] sm:$0xff]
    %v972 = vld [vmem:[#allocation8 + $0x17c] sm:$0xf]
    %v973 = vld [vmem:[#allocation8 + $0x180] sm:$0xff]
    %v974 = vld [vmem:[#allocation8 + $0x188] sm:$0xf]
    %v975 = vld [vmem:[#allocation8 + $0x18c] sm:$0xff]
    %v976 = vld [vmem:[#allocation8 + $0x194] sm:$0xf]
    %v977 = vld [vmem:[#allocation8 + $0x198] sm:$0xff]
    %v978 = vld [vmem:[#allocation8 + $0x1a0] sm:$0xf]
    %v979 = vld [vmem:[#allocation8 + $0x1a4] sm:$0xff]
    %v980 = vld [vmem:[#allocation8 + $0x1ac] sm:$0xf]
    %v981 = vld [vmem:[#allocation8 + $0x1b0] sm:$0xff]
    %v982 = vld [vmem:[#allocation8 + $0x1b8] sm:$0xf]
    %v983 = vld [vmem:[#allocation8 + $0x1bc] sm:$0xff]
    %v984 = vld [vmem:[#allocation8 + $0x1c4] sm:$0xf]
    %v985 = vld [vmem:[#allocation8 + $0x1c8] sm:$0xff]
    %v986 = vld [vmem:[#allocation8 + $0x1d0] sm:$0xf]
    %v987 = vld [vmem:[#allocation8 + $0x1d4] sm:$0xff]
    %v988 = vld [vmem:[#allocation8 + $0x1dc] sm:$0xf]
    %v989 = vld [vmem:[#allocation8 + $0x1e0] sm:$0xff]
    %v990 = vld [vmem:[#allocation8 + $0x1e8] sm:$0xf]
    %v991 = vld [vmem:[#allocation8 + $0x1ec] sm:$0xff]
    %v992 = vld [vmem:[#allocation8 + $0x1f4] sm:$0xf]
    %v993 = vld [vmem:[#allocation8 + $0x1f8] sm:$0xff]
    %v994 = vld [vmem:[#allocation8 + $0x200] sm:$0xf]
    %v995 = vld [vmem:[#allocation8 + $0x204] sm:$0xff]
    %v996 = vld [vmem:[#allocation8 + $0x20c] sm:$0xf]
    %v997 = vld [vmem:[#allocation8 + $0x210] sm:$0xff]
    %v998 = vld [vmem:[#allocation8 + $0x218] sm:$0xf]
    %v999 = vld [vmem:[#allocation8 + $0x21c] sm:$0xff]
    %v1000 = vld [vmem:[#allocation8 + $0x224] sm:$0xf]
    %v1001 = vld [vmem:[#allocation8 + $0x228] sm:$0xff]
    %v1002 = vld [vmem:[#allocation8 + $0x230] sm:$0xf]
    %v1003 = vld [vmem:[#allocation8 + $0x234] sm:$0xff]
    %v1004 = vld [vmem:[#allocation8 + $0x23c] sm:$0xf]
    %v1005 = vld [vmem:[#allocation8 + $0x240] sm:$0xff]
    %v1006 = vld [vmem:[#allocation8 + $0x248] sm:$0xf]
    %v1007 = vld [vmem:[#allocation8 + $0x24c] sm:$0xff]
    %v1008 = vld [vmem:[#allocation8 + $0x254] sm:$0xf]
    %v1009 = vld [vmem:[#allocation8 + $0x258] sm:$0xff]
    %v1010 = vld [vmem:[#allocation8 + $0x260] sm:$0xf]
    %v1011 = vld [vmem:[#allocation8 + $0x264] sm:$0xff]
    %v1012 = vld [vmem:[#allocation8 + $0x26c] sm:$0xf]
    %v1013 = vld [vmem:[#allocation8 + $0x270] sm:$0xff]
    %v1014 = vld [vmem:[#allocation8 + $0x278] sm:$0xf]
    %v1015 = vld [vmem:[#allocation8 + $0x27c] sm:$0xff]
    %v1016 = vld [vmem:[#allocation8 + $0x284] sm:$0xf]
    %v1017 = vld [vmem:[#allocation8 + $0x288] sm:$0xff]
    %v1018 = vld [vmem:[#allocation8 + $0x290] sm:$0xf]
    %v1019 = vld [vmem:[#allocation8 + $0x294] sm:$0xff]
    %v1020 = vld [vmem:[#allocation8 + $0x29c] sm:$0xf]
    %v1021 = vld [vmem:[#allocation8 + $0x2a0] sm:$0xff]
    %v1022 = vld [vmem:[#allocation8 + $0x2a8] sm:$0xf]
    %v1023 = vld [vmem:[#allocation8 + $0x2ac] sm:$0xff]
    %v1024 = vld [vmem:[#allocation8 + $0x2b4] sm:$0xf]
    %v1025 = vld [vmem:[#allocation8 + $0x2b8] sm:$0xff]
    %v1026 = vld [vmem:[#allocation8 + $0x2c0] sm:$0xf]
    %v1027 = vld [vmem:[#allocation8 + $0x2c4] sm:$0xff]
    %v1028 = vld [vmem:[#allocation8 + $0x2cc] sm:$0xf]
    %v1029 = vld [vmem:[#allocation8 + $0x2d0] sm:$0xff]
    %v1030 = vld [vmem:[#allocation8 + $0x2d8] sm:$0xf]
    %v1031 = vld [vmem:[#allocation8 + $0x2dc] sm:$0xff]
    %v1032 = vld [vmem:[#allocation8 + $0x2e4] sm:$0xf]
    %v1033 = vld [vmem:[#allocation8 + $0x2e8] sm:$0xff]
    %v1034 = vld [vmem:[#allocation8 + $0x2f0] sm:$0xf]
    %v1035 = vld [vmem:[#allocation8 + $0x2f4] sm:$0xff]
    %v1036 = vld [vmem:[#allocation8 + $0x2fc] sm:$0xf]
    %v1037 = vld [vmem:[#allocation5 + $0x10] sm:$0xff]
    %v1038 = vld [vmem:[#allocation5 + $0x18] sm:$0xff]
    %v1039 = vld [vmem:[#allocation5 + $0x40] sm:$0xff]
    %v1040 = vld [vmem:[#allocation5 + $0x48] sm:$0xff]
    %v1041 = vld [vmem:[#allocation5 + $0x70] sm:$0xff]
    %v1042 = vld [vmem:[#allocation5 + $0x78] sm:$0xff]
    %v1043 = vld [vmem:[#allocation5 + $0xa0] sm:$0xff]
    %v1044 = vld [vmem:[#allocation5 + $0xa8] sm:$0xff]
    %v1045 = vld [vmem:[#allocation5 + $0xd0] sm:$0xff]
    %v1046 = vld [vmem:[#allocation5 + $0xd8] sm:$0xff]
    %v1047 = vld [vmem:[#allocation5 + $0x100] sm:$0xff]
    %v1048 = vld [vmem:[#allocation5 + $0x108] sm:$0xff]
    %v1049 = vld [vmem:[#allocation5 + $0x130] sm:$0xff]
    %v1050 = vld [vmem:[#allocation5 + $0x138] sm:$0xff]
    %v1051 = vld [vmem:[#allocation5 + $0x160] sm:$0xff]
    %v1052 = vld [vmem:[#allocation5 + $0x168] sm:$0xff]
    %v1053 = vld [vmem:[#allocation5 + $0x190] sm:$0xff]
    %v1054 = vld [vmem:[#allocation5 + $0x198] sm:$0xff]
    %v1055 = vld [vmem:[#allocation5 + $0x1c0] sm:$0xff]
    %v1056 = vld [vmem:[#allocation5 + $0x1c8] sm:$0xff]
    %v1057 = vld [vmem:[#allocation5 + $0x1f0] sm:$0xff]
    %v1058 = vld [vmem:[#allocation5 + $0x1f8] sm:$0xff]
    %v1059 = vld [vmem:[#allocation5 + $0x220] sm:$0xff]
    %v1060 = vld [vmem:[#allocation5 + $0x228] sm:$0xff]
    %v1061 = vld [vmem:[#allocation5 + $0x250] sm:$0xff]
    %v1062 = vld [vmem:[#allocation5 + $0x258] sm:$0xff]
    %v1063 = vld [vmem:[#allocation5 + $0x280] sm:$0xff]
    %v1064 = vld [vmem:[#allocation5 + $0x288] sm:$0xff]
    %v1065 = vld [vmem:[#allocation5 + $0x2b0] sm:$0xff]
    %v1066 = vld [vmem:[#allocation5 + $0x2b8] sm:$0xff]
    %v1067 = vld [vmem:[#allocation5 + $0x2e0] sm:$0xff]
    %v1068 = vld [vmem:[#allocation5 + $0x2e8] sm:$0xff]
    %v1069 = vld [vmem:[#allocation5 + $0x310] sm:$0xff]
    %v1070 = vld [vmem:[#allocation5 + $0x318] sm:$0xff]
    %v1071 = vld [vmem:[#allocation5 + $0x340] sm:$0xff]
    %v1072 = vld [vmem:[#allocation5 + $0x348] sm:$0xff]
    %v1073 = vld [vmem:[#allocation5 + $0x370] sm:$0xff]
    %v1074 = vld [vmem:[#allocation5 + $0x378] sm:$0xff]
    %v1075 = vld [vmem:[#allocation5 + $0x3a0] sm:$0xff]
    %v1076 = vld [vmem:[#allocation5 + $0x3a8] sm:$0xff]
    %v1077 = vld [vmem:[#allocation5 + $0x3d0] sm:$0xff]
    %v1078 = vld [vmem:[#allocation5 + $0x3d8] sm:$0xff]
    %v1079 = vld [vmem:[#allocation5 + $0x400] sm:$0xff]
    %v1080 = vld [vmem:[#allocation5 + $0x408] sm:$0xff]
    %v1081 = vld [vmem:[#allocation5 + $0x430] sm:$0xff]
    %v1082 = vld [vmem:[#allocation5 + $0x438] sm:$0xff]
    %v1083 = vld [vmem:[#allocation5 + $0x460] sm:$0xff]
    %v1084 = vld [vmem:[#allocation5 + $0x468] sm:$0xff]
    %v1085 = vld [vmem:[#allocation5 + $0x490] sm:$0xff]
    %v1086 = vld [vmem:[#allocation5 + $0x498] sm:$0xff]
    %v1087 = vld [vmem:[#allocation5 + $0x4c0] sm:$0xff]
    %v1088 = vld [vmem:[#allocation5 + $0x4c8] sm:$0xff]
    %v1089 = vld [vmem:[#allocation5 + $0x4f0] sm:$0xff]
    %v1090 = vld [vmem:[#allocation5 + $0x4f8] sm:$0xff]
    %v1091 = vld [vmem:[#allocation5 + $0x520] sm:$0xff]
    %v1092 = vld [vmem:[#allocation5 + $0x528] sm:$0xff]
    %v1093 = vld [vmem:[#allocation5 + $0x550] sm:$0xff]
    %v1094 = vld [vmem:[#allocation5 + $0x558] sm:$0xff]
    %v1095 = vld [vmem:[#allocation5 + $0x580] sm:$0xff]
    %v1096 = vld [vmem:[#allocation5 + $0x588] sm:$0xff]
    %v1097 = vld [vmem:[#allocation5 + $0x5b0] sm:$0xff]
    %v1098 = vld [vmem:[#allocation5 + $0x5b8] sm:$0xff]
    %v1099 = vld [vmem:[#allocation5 + $0x5e0] sm:$0xff]
    %v1100 = vld [vmem:[#allocation5 + $0x5e8] sm:$0xff]
    %v1101 = vld [vmem:[#allocation5 + $0x610] sm:$0xff]
    %v1102 = vld [vmem:[#allocation5 + $0x618] sm:$0xff]
    %v1103 = vld [vmem:[#allocation5 + $0x640] sm:$0xff]
    %v1104 = vld [vmem:[#allocation5 + $0x648] sm:$0xff]
    %v1105 = vld [vmem:[#allocation5 + $0x670] sm:$0xff]
    %v1106 = vld [vmem:[#allocation5 + $0x678] sm:$0xff]
    %v1107 = vld [vmem:[#allocation5 + $0x6a0] sm:$0xff]
    %v1108 = vld [vmem:[#allocation5 + $0x6a8] sm:$0xff]
    %v1109 = vld [vmem:[#allocation5 + $0x6d0] sm:$0xff]
    %v1110 = vld [vmem:[#allocation5 + $0x6d8] sm:$0xff]
    %v1111 = vld [vmem:[#allocation5 + $0x700] sm:$0xff]
    %v1112 = vld [vmem:[#allocation5 + $0x708] sm:$0xff]
    %v1113 = vld [vmem:[#allocation5 + $0x730] sm:$0xff]
    %v1114 = vld [vmem:[#allocation5 + $0x738] sm:$0xff]
    %v1115 = vld [vmem:[#allocation5 + $0x760] sm:$0xff]
    %v1116 = vld [vmem:[#allocation5 + $0x768] sm:$0xff]
    %v1117 = vld [vmem:[#allocation5 + $0x790] sm:$0xff]
    %v1118 = vld [vmem:[#allocation5 + $0x798] sm:$0xff]
    %v1119 = vld [vmem:[#allocation5 + $0x7c0] sm:$0xff]
    %v1120 = vld [vmem:[#allocation5 + $0x7c8] sm:$0xff]
    %v1121 = vld [vmem:[#allocation5 + $0x7f0] sm:$0xff]
    %v1122 = vld [vmem:[#allocation5 + $0x7f8] sm:$0xff]
    %v1123 = vld [vmem:[#allocation5 + $0x820] sm:$0xff]
    %v1124 = vld [vmem:[#allocation5 + $0x828] sm:$0xff]
    %v1125 = vld [vmem:[#allocation5 + $0x850] sm:$0xff]
    %v1126 = vld [vmem:[#allocation5 + $0x858] sm:$0xff]
    %v1127 = vld [vmem:[#allocation5 + $0x880] sm:$0xff]
    %v1128 = vld [vmem:[#allocation5 + $0x888] sm:$0xff]
    %v1129 = vld [vmem:[#allocation5 + $0x8b0] sm:$0xff]
    %v1130 = vld [vmem:[#allocation5 + $0x8b8] sm:$0xff]
    %v1131 = vld [vmem:[#allocation5 + $0x8e0] sm:$0xff]
    %v1132 = vld [vmem:[#allocation5 + $0x8e8] sm:$0xff]
    %v1133 = vld [vmem:[#allocation7 + $0x4] sm:$0xf]
    %v1135 = vlaneseq
    %v1136 = vshrl.u32 %v1135, 7
    %v1137 = vsub.s32 0, %v1136
    %v1138 = vrot.slane %v1133, %v1137
    %v1139 = vlaneseq
    %v1140 = vshrl.u32 %v1139, 7
    %v1141 = vsub.s32 1, %v1140
    %v1142 = vrot.slane %v1133, %v1141
    %v1143 = vlaneseq
    %v1144 = vshrl.u32 %v1143, 7
    %v1145 = vsub.s32 2, %v1144
    %v1146 = vrot.slane %v1133, %v1145
    %v1147 = vlaneseq
    %v1148 = vshrl.u32 %v1147, 7
    %v1149 = vsub.s32 3, %v1148
    %v1150 = vrot.slane %v1133, %v1149
    %v1251 = vunpack.c.l.b16 %v1037
    %v1252 = vunpack.c.h.b16 %v1037
    %v1253 = vunpack.c.l.b16 %v1038
    %v1254 = vunpack.c.h.b16 %v1038
    %v1255 = vunpack.c.l.b16 %v1039
    %v1256 = vunpack.c.h.b16 %v1039
    %v1257 = vunpack.c.l.b16 %v1040
    %v1258 = vunpack.c.h.b16 %v1040
    %v1259 = vunpack.c.l.b16 %v1041
    %v1260 = vunpack.c.h.b16 %v1041
    %v1261 = vunpack.c.l.b16 %v1042
    %v1262 = vunpack.c.h.b16 %v1042
    %v1263 = vunpack.c.l.b16 %v1043
    %v1264 = vunpack.c.h.b16 %v1043
    %v1265 = vunpack.c.l.b16 %v1044
    %v1266 = vunpack.c.h.b16 %v1044
    %v1267 = vunpack.c.l.b16 %v1045
    %v1268 = vunpack.c.h.b16 %v1045
    %v1269 = vunpack.c.l.b16 %v1046
    %v1270 = vunpack.c.h.b16 %v1046
    %v1271 = vunpack.c.l.b16 %v1047
    %v1272 = vunpack.c.h.b16 %v1047
    %v1273 = vunpack.c.l.b16 %v1048
    %v1274 = vunpack.c.h.b16 %v1048
    %v1275 = vunpack.c.l.b16 %v1049
    %v1276 = vunpack.c.h.b16 %v1049
    %v1277 = vunpack.c.l.b16 %v1050
    %v1278 = vunpack.c.h.b16 %v1050
    %v1279 = vunpack.c.l.b16 %v1051
    %v1280 = vunpack.c.h.b16 %v1051
    %v1281 = vunpack.c.l.b16 %v1052
    %v1282 = vunpack.c.h.b16 %v1052
    %v1283 = vunpack.c.l.b16 %v1053
    %v1284 = vunpack.c.h.b16 %v1053
    %v1285 = vunpack.c.l.b16 %v1054
    %v1286 = vunpack.c.h.b16 %v1054
    %v1287 = vunpack.c.l.b16 %v1055
    %v1288 = vunpack.c.h.b16 %v1055
    %v1289 = vunpack.c.l.b16 %v1056
    %v1290 = vunpack.c.h.b16 %v1056
    %v1291 = vunpack.c.l.b16 %v1057
    %v1292 = vunpack.c.h.b16 %v1057
    %v1293 = vunpack.c.l.b16 %v1058
    %v1294 = vunpack.c.h.b16 %v1058
    %v1295 = vunpack.c.l.b16 %v1059
    %v1296 = vunpack.c.h.b16 %v1059
    %v1297 = vunpack.c.l.b16 %v1060
    %v1298 = vunpack.c.h.b16 %v1060
    %v1299 = vunpack.c.l.b16 %v1061
    %v1300 = vunpack.c.h.b16 %v1061
    %v1301 = vunpack.c.l.b16 %v1062
    %v1302 = vunpack.c.h.b16 %v1062
    %v1303 = vunpack.c.l.b16 %v1063
    %v1304 = vunpack.c.h.b16 %v1063
    %v1305 = vunpack.c.l.b16 %v1064
    %v1306 = vunpack.c.h.b16 %v1064
    %v1307 = vunpack.c.l.b16 %v1065
    %v1308 = vunpack.c.h.b16 %v1065
    %v1309 = vunpack.c.l.b16 %v1066
    %v1310 = vunpack.c.h.b16 %v1066
    %v1311 = vunpack.c.l.b16 %v1067
    %v1312 = vunpack.c.h.b16 %v1067
    %v1313 = vunpack.c.l.b16 %v1068
    %v1314 = vunpack.c.h.b16 %v1068
    %v1315 = vunpack.c.l.b16 %v1069
    %v1316 = vunpack.c.h.b16 %v1069
    %v1317 = vunpack.c.l.b16 %v1070
    %v1318 = vunpack.c.h.b16 %v1070
    %v1319 = vunpack.c.l.b16 %v1071
    %v1320 = vunpack.c.h.b16 %v1071
    %v1321 = vunpack.c.l.b16 %v1072
    %v1322 = vunpack.c.h.b16 %v1072
    %v1323 = vunpack.c.l.b16 %v1073
    %v1324 = vunpack.c.h.b16 %v1073
    %v1325 = vunpack.c.l.b16 %v1074
    %v1326 = vunpack.c.h.b16 %v1074
    %v1327 = vunpack.c.l.b16 %v1075
    %v1328 = vunpack.c.h.b16 %v1075
    %v1329 = vunpack.c.l.b16 %v1076
    %v1330 = vunpack.c.h.b16 %v1076
    %v1331 = vunpack.c.l.b16 %v1077
    %v1332 = vunpack.c.h.b16 %v1077
    %v1333 = vunpack.c.l.b16 %v1078
    %v1334 = vunpack.c.h.b16 %v1078
    %v1335 = vunpack.c.l.b16 %v1079
    %v1336 = vunpack.c.h.b16 %v1079
    %v1337 = vunpack.c.l.b16 %v1080
    %v1338 = vunpack.c.h.b16 %v1080
    %v1339 = vunpack.c.l.b16 %v1081
    %v1340 = vunpack.c.h.b16 %v1081
    %v1341 = vunpack.c.l.b16 %v1082
    %v1342 = vunpack.c.h.b16 %v1082
    %v1343 = vunpack.c.l.b16 %v1083
    %v1344 = vunpack.c.h.b16 %v1083
    %v1345 = vunpack.c.l.b16 %v1084
    %v1346 = vunpack.c.h.b16 %v1084
    %v1347 = vunpack.c.l.b16 %v1085
    %v1348 = vunpack.c.h.b16 %v1085
    %v1349 = vunpack.c.l.b16 %v1086
    %v1350 = vunpack.c.h.b16 %v1086
    %v1351 = vunpack.c.l.b16 %v1087
    %v1352 = vunpack.c.h.b16 %v1087
    %v1353 = vunpack.c.l.b16 %v1088
    %v1354 = vunpack.c.h.b16 %v1088
    %v1355 = vunpack.c.l.b16 %v1089
    %v1356 = vunpack.c.h.b16 %v1089
    %v1357 = vunpack.c.l.b16 %v1090
    %v1358 = vunpack.c.h.b16 %v1090
    %v1359 = vunpack.c.l.b16 %v1091
    %v1360 = vunpack.c.h.b16 %v1091
    %v1361 = vunpack.c.l.b16 %v1092
    %v1362 = vunpack.c.h.b16 %v1092
    %v1363 = vunpack.c.l.b16 %v1093
    %v1364 = vunpack.c.h.b16 %v1093
    %v1365 = vunpack.c.l.b16 %v1094
    %v1366 = vunpack.c.h.b16 %v1094
    %v1367 = vunpack.c.l.b16 %v1095
    %v1368 = vunpack.c.h.b16 %v1095
    %v1369 = vunpack.c.l.b16 %v1096
    %v1370 = vunpack.c.h.b16 %v1096
    %v1371 = vunpack.c.l.b16 %v1097
    %v1372 = vunpack.c.h.b16 %v1097
    %v1373 = vunpack.c.l.b16 %v1098
    %v1374 = vunpack.c.h.b16 %v1098
    %v1375 = vunpack.c.l.b16 %v1099
    %v1376 = vunpack.c.h.b16 %v1099
    %v1377 = vunpack.c.l.b16 %v1100
    %v1378 = vunpack.c.h.b16 %v1100
    %v1379 = vunpack.c.l.b16 %v1101
    %v1380 = vunpack.c.h.b16 %v1101
    %v1381 = vunpack.c.l.b16 %v1102
    %v1382 = vunpack.c.h.b16 %v1102
    %v1383 = vunpack.c.l.b16 %v1103
    %v1384 = vunpack.c.h.b16 %v1103
    %v1385 = vunpack.c.l.b16 %v1104
    %v1386 = vunpack.c.h.b16 %v1104
    %v1387 = vunpack.c.l.b16 %v1105
    %v1388 = vunpack.c.h.b16 %v1105
    %v1389 = vunpack.c.l.b16 %v1106
    %v1390 = vunpack.c.h.b16 %v1106
    %v1391 = vunpack.c.l.b16 %v1107
    %v1392 = vunpack.c.h.b16 %v1107
    %v1393 = vunpack.c.l.b16 %v1108
    %v1394 = vunpack.c.h.b16 %v1108
    %v1395 = vunpack.c.l.b16 %v1109
    %v1396 = vunpack.c.h.b16 %v1109
    %v1397 = vunpack.c.l.b16 %v1110
    %v1398 = vunpack.c.h.b16 %v1110
    %v1399 = vunpack.c.l.b16 %v1111
    %v1400 = vunpack.c.h.b16 %v1111
    %v1401 = vunpack.c.l.b16 %v1112
    %v1402 = vunpack.c.h.b16 %v1112
    %v1403 = vunpack.c.l.b16 %v1113
    %v1404 = vunpack.c.h.b16 %v1113
    %v1405 = vunpack.c.l.b16 %v1114
    %v1406 = vunpack.c.h.b16 %v1114
    %v1407 = vunpack.c.l.b16 %v1115
    %v1408 = vunpack.c.h.b16 %v1115
    %v1409 = vunpack.c.l.b16 %v1116
    %v1410 = vunpack.c.h.b16 %v1116
    %v1411 = vunpack.c.l.b16 %v1117
    %v1412 = vunpack.c.h.b16 %v1117
    %v1413 = vunpack.c.l.b16 %v1118
    %v1414 = vunpack.c.h.b16 %v1118
    %v1415 = vunpack.c.l.b16 %v1119
    %v1416 = vunpack.c.h.b16 %v1119
    %v1417 = vunpack.c.l.b16 %v1120
    %v1418 = vunpack.c.h.b16 %v1120
    %v1419 = vunpack.c.l.b16 %v1121
    %v1420 = vunpack.c.h.b16 %v1121
    %v1421 = vunpack.c.l.b16 %v1122
    %v1422 = vunpack.c.h.b16 %v1122
    %v1423 = vunpack.c.l.b16 %v1123
    %v1424 = vunpack.c.h.b16 %v1123
    %v1425 = vunpack.c.l.b16 %v1124
    %v1426 = vunpack.c.h.b16 %v1124
    %v1427 = vunpack.c.l.b16 %v1125
    %v1428 = vunpack.c.h.b16 %v1125
    %v1429 = vunpack.c.l.b16 %v1126
    %v1430 = vunpack.c.h.b16 %v1126
    %v1431 = vunpack.c.l.b16 %v1127
    %v1432 = vunpack.c.h.b16 %v1127
    %v1433 = vunpack.c.l.b16 %v1128
    %v1434 = vunpack.c.h.b16 %v1128
    %v1435 = vunpack.c.l.b16 %v1129
    %v1436 = vunpack.c.h.b16 %v1129
    %v1437 = vunpack.c.l.b16 %v1130
    %v1438 = vunpack.c.h.b16 %v1130
    %v1439 = vunpack.c.l.b16 %v1131
    %v1440 = vunpack.c.h.b16 %v1131
    %v1441 = vunpack.c.l.b16 %v1132
    %v1442 = vunpack.c.h.b16 %v1132
    %v1443 = vpack.c.b16 %v1255, %v1251
    %v1444 = vpack.c.b16 %v1256, %v1252
    %v1445 = vpack.c.b16 %v1257, %v1253
    %v1446 = vpack.c.b16 %v1258, %v1254
    %v1447 = vpack.c.b16 %v1263, %v1259
    %v1448 = vpack.c.b16 %v1264, %v1260
    %v1449 = vpack.c.b16 %v1265, %v1261
    %v1450 = vpack.c.b16 %v1266, %v1262
    %v1451 = vpack.c.b16 %v1271, %v1267
    %v1452 = vpack.c.b16 %v1272, %v1268
    %v1453 = vpack.c.b16 %v1273, %v1269
    %v1454 = vpack.c.b16 %v1274, %v1270
    %v1455 = vpack.c.b16 %v1279, %v1275
    %v1456 = vpack.c.b16 %v1280, %v1276
    %v1457 = vpack.c.b16 %v1281, %v1277
    %v1458 = vpack.c.b16 %v1282, %v1278
    %v1459 = vpack.c.b16 %v1287, %v1283
    %v1460 = vpack.c.b16 %v1288, %v1284
    %v1461 = vpack.c.b16 %v1289, %v1285
    %v1462 = vpack.c.b16 %v1290, %v1286
    %v1463 = vpack.c.b16 %v1295, %v1291
    %v1464 = vpack.c.b16 %v1296, %v1292
    %v1465 = vpack.c.b16 %v1297, %v1293
    %v1466 = vpack.c.b16 %v1298, %v1294
    %v1467 = vpack.c.b16 %v1303, %v1299
    %v1468 = vpack.c.b16 %v1304, %v1300
    %v1469 = vpack.c.b16 %v1305, %v1301
    %v1470 = vpack.c.b16 %v1306, %v1302
    %v1471 = vpack.c.b16 %v1311, %v1307
    %v1472 = vpack.c.b16 %v1312, %v1308
    %v1473 = vpack.c.b16 %v1313, %v1309
    %v1474 = vpack.c.b16 %v1314, %v1310
    %v1475 = vpack.c.b16 %v1319, %v1315
    %v1476 = vpack.c.b16 %v1320, %v1316
    %v1477 = vpack.c.b16 %v1321, %v1317
    %v1478 = vpack.c.b16 %v1322, %v1318
    %v1479 = vpack.c.b16 %v1327, %v1323
    %v1480 = vpack.c.b16 %v1328, %v1324
    %v1481 = vpack.c.b16 %v1329, %v1325
    %v1482 = vpack.c.b16 %v1330, %v1326
    %v1483 = vpack.c.b16 %v1335, %v1331
    %v1484 = vpack.c.b16 %v1336, %v1332
    %v1485 = vpack.c.b16 %v1337, %v1333
    %v1486 = vpack.c.b16 %v1338, %v1334
    %v1487 = vpack.c.b16 %v1343, %v1339
    %v1488 = vpack.c.b16 %v1344, %v1340
    %v1489 = vpack.c.b16 %v1345, %v1341
    %v1490 = vpack.c.b16 %v1346, %v1342
    %v1491 = vpack.c.b16 %v1351, %v1347
    %v1492 = vpack.c.b16 %v1352, %v1348
    %v1493 = vpack.c.b16 %v1353, %v1349
    %v1494 = vpack.c.b16 %v1354, %v1350
    %v1495 = vpack.c.b16 %v1359, %v1355
    %v1496 = vpack.c.b16 %v1360, %v1356
    %v1497 = vpack.c.b16 %v1361, %v1357
    %v1498 = vpack.c.b16 %v1362, %v1358
    %v1499 = vpack.c.b16 %v1367, %v1363
    %v1500 = vpack.c.b16 %v1368, %v1364
    %v1501 = vpack.c.b16 %v1369, %v1365
    %v1502 = vpack.c.b16 %v1370, %v1366
    %v1503 = vpack.c.b16 %v1375, %v1371
    %v1504 = vpack.c.b16 %v1376, %v1372
    %v1505 = vpack.c.b16 %v1377, %v1373
    %v1506 = vpack.c.b16 %v1378, %v1374
    %v1507 = vpack.c.b16 %v1383, %v1379
    %v1508 = vpack.c.b16 %v1384, %v1380
    %v1509 = vpack.c.b16 %v1385, %v1381
    %v1510 = vpack.c.b16 %v1386, %v1382
    %v1511 = vpack.c.b16 %v1391, %v1387
    %v1512 = vpack.c.b16 %v1392, %v1388
    %v1513 = vpack.c.b16 %v1393, %v1389
    %v1514 = vpack.c.b16 %v1394, %v1390
    %v1515 = vpack.c.b16 %v1399, %v1395
    %v1516 = vpack.c.b16 %v1400, %v1396
    %v1517 = vpack.c.b16 %v1401, %v1397
    %v1518 = vpack.c.b16 %v1402, %v1398
    %v1519 = vpack.c.b16 %v1407, %v1403
    %v1520 = vpack.c.b16 %v1408, %v1404
    %v1521 = vpack.c.b16 %v1409, %v1405
    %v1522 = vpack.c.b16 %v1410, %v1406
    %v1523 = vpack.c.b16 %v1415, %v1411
    %v1524 = vpack.c.b16 %v1416, %v1412
    %v1525 = vpack.c.b16 %v1417, %v1413
    %v1526 = vpack.c.b16 %v1418, %v1414
    %v1527 = vpack.c.b16 %v1423, %v1419
    %v1528 = vpack.c.b16 %v1424, %v1420
    %v1529 = vpack.c.b16 %v1425, %v1421
    %v1530 = vpack.c.b16 %v1426, %v1422
    %v1531 = vpack.c.b16 %v1431, %v1427
    %v1532 = vpack.c.b16 %v1432, %v1428
    %v1533 = vpack.c.b16 %v1433, %v1429
    %v1534 = vpack.c.b16 %v1434, %v1430
    %v1535 = vpack.c.b16 %v1439, %v1435
    %v1536 = vpack.c.b16 %v1440, %v1436
    %v1537 = vpack.c.b16 %v1441, %v1437
    %v1538 = vpack.c.b16 %v1442, %v1438
    %1635 = vmatprep.subr.bf16.mxu0 %v1444
    %1636 = vmatpush1.bf16.msra.mxu0 %v1443
    %1637 = vmatprep.subr.bf16.mxu0 %v1448
    %1638 = vmatpush1.bf16.msra.mxu0 %v1447
    %1639 = vmatprep.subr.bf16.mxu0 %v1452
    %1640 = vmatpush1.bf16.msra.mxu0 %v1451
    %1641 = vmatprep.subr.bf16.mxu0 %v1456
    %1642 = vmatpush1.bf16.msra.mxu0 %v1455
    %1643 = vmatprep.subr.bf16.mxu0 %v1460
    %1644 = vmatpush1.bf16.msra.mxu0 %v1459
    %1645 = vmatprep.subr.bf16.mxu0 %v1464
    %1646 = vmatpush1.bf16.msra.mxu0 %v1463
    %1647 = vmatprep.subr.bf16.mxu0 %v1468
    %1648 = vmatpush1.bf16.msra.mxu0 %v1467
    %1649 = vmatprep.subr.bf16.mxu0 %v1472
    %1650 = vmatpush1.bf16.msra.mxu0 %v1471
    %1651 = vmatprep.subr.bf16.mxu0 %v1476
    %1652 = vmatpush1.bf16.msra.mxu0 %v1475
    %1653 = vmatprep.subr.bf16.mxu0 %v1480
    %1654 = vmatpush1.bf16.msra.mxu0 %v1479
    %1655 = vmatprep.subr.bf16.mxu0 %v1484
    %1656 = vmatpush1.bf16.msra.mxu0 %v1483
    %1657 = vmatprep.subr.bf16.mxu0 %v1488
    %1658 = vmatpush1.bf16.msra.mxu0 %v1487
    %1659 = vmatprep.subr.bf16.mxu0 %v1492
    %1660 = vmatpush1.bf16.msra.mxu0 %v1491
    %1661 = vmatprep.subr.bf16.mxu0 %v1496
    %1662 = vmatpush1.bf16.msra.mxu0 %v1495
    %1663 = vmatprep.subr.bf16.mxu0 %v1500
    %1664 = vmatpush1.bf16.msra.mxu0 %v1499
    %1665 = vmatprep.subr.bf16.mxu0 %v1504
    %1666 = vmatpush1.bf16.msra.mxu0 %v1503
    %1667 = vmatprep.mubr.bf16.mxu0 %v93
    %1668 = vmatmul.mubr.bf16.gmra.mrb[0].mxu0 %v92
    %v1669 = vpop.f32.mrb[0].mxu0
    %v1670 = vadd.f32 %v1138, %v1669
    %v1671 = vpop.f32.mrb[0].mxu0
    %v1672 = vadd.f32 %v1142, %v1671
    %v1673 = vpop.f32.mrb[0].mxu0
    %v1674 = vadd.f32 %v1138, %v1673
    %v1675 = vpop.f32.mrb[0].mxu0
    %v1676 = vadd.f32 %v1142, %v1675
    %1677 = vdwg.mxu0
    %1678 = vmatprep.subr.bf16.mxu0 %v1508
    %1679 = vmatpush1.bf16.msra.mxu0 %v1507
    %1680 = vmatprep.subr.bf16.mxu0 %v1512
    %1681 = vmatpush1.bf16.msra.mxu0 %v1511
    %1682 = vmatprep.subr.bf16.mxu0 %v1516
    %1683 = vmatpush1.bf16.msra.mxu0 %v1515
    %1684 = vmatprep.subr.bf16.mxu0 %v1520
    %1685 = vmatpush1.bf16.msra.mxu0 %v1519
    %1686 = vmatprep.subr.bf16.mxu0 %v1524
    %1687 = vmatpush1.bf16.msra.mxu0 %v1523
    %1688 = vmatprep.subr.bf16.mxu0 %v1528
    %1689 = vmatpush1.bf16.msra.mxu0 %v1527
    %1690 = vmatprep.subr.bf16.mxu0 %v1532
    %1691 = vmatpush1.bf16.msra.mxu0 %v1531
    %1692 = vmatprep.subr.bf16.mxu0 %v1536
    %1693 = vmatpush1.bf16.msra.mxu0 %v1535
    %1694 = vmatprep.subr.bf16.mxu0 0
    %1695 = vmatpush1.bf16.msra.mxu0 0
    %1696 = vmatprep.subr.bf16.mxu0 0
    %1697 = vmatpush1.bf16.msra.mxu0 0
    %1698 = vmatprep.subr.bf16.mxu0 0
    %1699 = vmatpush1.bf16.msra.mxu0 0
    %1700 = vmatprep.subr.bf16.mxu0 0
    %1701 = vmatpush1.bf16.msra.mxu0 0
    %1702 = vmatprep.subr.bf16.mxu0 0
    %1703 = vmatpush1.bf16.msra.mxu0 0
    %1704 = vmatprep.subr.bf16.mxu0 0
    %1705 = vmatpush1.bf16.msra.mxu0 0
    %1706 = vmatprep.subr.bf16.mxu0 0
    %1707 = vmatpush1.bf16.msra.mxu0 0
    %1708 = vmatprep.subr.bf16.mxu0 0
    %1709 = vmatpush1.bf16.msra.mxu0 0
    %1710 = vmatprep.mubr.bf16.mxu0 0
    %1711 = vmatmul.mubr.bf16.gmra.mrb[0].mxu0 %v94
    %v1712 = vpop.f32.mrb[0].mxu0
    %v1713 = vadd.f32 %v1670, %v1712
    %v1714 = vpop.f32.mrb[0].mxu0
    %v1715 = vadd.f32 %v1672, %v1714
    %v1716 = vpop.f32.mrb[0].mxu0
    %v1717 = vadd.f32 %v1674, %v1716
    %v1718 = vpop.f32.mrb[0].mxu0
    %v1719 = vadd.f32 %v1676, %v1718
    %1720 = vdwg.mxu0
    %1721 = vmatprep.subr.bf16.mxu0 %v1446
    %1722 = vmatpush1.bf16.msra.mxu0 %v1445
    %1723 = vmatprep.subr.bf16.mxu0 %v1450
    %1724 = vmatpush1.bf16.msra.mxu0 %v1449
    %1725 = vmatprep.subr.bf16.mxu0 %v1454
    %1726 = vmatpush1.bf16.msra.mxu0 %v1453
    %1727 = vmatprep.subr.bf16.mxu0 %v1458
    %1728 = vmatpush1.bf16.msra.mxu0 %v1457
    %1729 = vmatprep.subr.bf16.mxu0 %v1462
    %1730 = vmatpush1.bf16.msra.mxu0 %v1461
    %1731 = vmatprep.subr.bf16.mxu0 %v1466
    %1732 = vmatpush1.bf16.msra.mxu0 %v1465
    %1733 = vmatprep.subr.bf16.mxu0 %v1470
    %1734 = vmatpush1.bf16.msra.mxu0 %v1469
    %1735 = vmatprep.subr.bf16.mxu0 %v1474
    %1736 = vmatpush1.bf16.msra.mxu0 %v1473
    %1737 = vmatprep.subr.bf16.mxu0 %v1478
    %1738 = vmatpush1.bf16.msra.mxu0 %v1477
    %1739 = vmatprep.subr.bf16.mxu0 %v1482
    %1740 = vmatpush1.bf16.msra.mxu0 %v1481
    %1741 = vmatprep.subr.bf16.mxu0 %v1486
    %1742 = vmatpush1.bf16.msra.mxu0 %v1485
    %1743 = vmatprep.subr.bf16.mxu0 %v1490
    %1744 = vmatpush1.bf16.msra.mxu0 %v1489
    %1745 = vmatprep.subr.bf16.mxu0 %v1494
    %1746 = vmatpush1.bf16.msra.mxu0 %v1493
    %1747 = vmatprep.subr.bf16.mxu0 %v1498
    %1748 = vmatpush1.bf16.msra.mxu0 %v1497
    %1749 = vmatprep.subr.bf16.mxu0 %v1502
    %1750 = vmatpush1.bf16.msra.mxu0 %v1501
    %1751 = vmatprep.subr.bf16.mxu0 %v1506
    %1752 = vmatpush1.bf16.msra.mxu0 %v1505
    %1753 = vmatprep.mubr.bf16.mxu0 %v93
    %1754 = vmatmul.mubr.bf16.gmra.mrb[0].mxu0 %v92
    %v1755 = vpop.f32.mrb[0].mxu0
    %v1756 = vadd.f32 %v1146, %v1755
    %v1757 = vpop.f32.mrb[0].mxu0
    %v1758 = vadd.f32 %v1150, %v1757
    %v1759 = vpop.f32.mrb[0].mxu0
    %v1760 = vadd.f32 %v1146, %v1759
    %v1761 = vpop.f32.mrb[0].mxu0
    %v1762 = vadd.f32 %v1150, %v1761
    %1763 = vdwg.mxu0
    %1764 = vmatprep.subr.bf16.mxu0 %v1510
    %1765 = vmatpush1.bf16.msra.mxu0 %v1509
    %1766 = vmatprep.subr.bf16.mxu0 %v1514
    %1767 = vmatpush1.bf16.msra.mxu0 %v1513
    %1768 = vmatprep.subr.bf16.mxu0 %v1518
    %1769 = vmatpush1.bf16.msra.mxu0 %v1517
    %1770 = vmatprep.subr.bf16.mxu0 %v1522
    %1771 = vmatpush1.bf16.msra.mxu0 %v1521
    %1772 = vmatprep.subr.bf16.mxu0 %v1526
    %1773 = vmatpush1.bf16.msra.mxu0 %v1525
    %1774 = vmatprep.subr.bf16.mxu0 %v1530
    %1775 = vmatpush1.bf16.msra.mxu0 %v1529
    %1776 = vmatprep.subr.bf16.mxu0 %v1534
    %1777 = vmatpush1.bf16.msra.mxu0 %v1533
    %1778 = vmatprep.subr.bf16.mxu0 %v1538
    %1779 = vmatpush1.bf16.msra.mxu0 %v1537
    %1780 = vmatprep.subr.bf16.mxu0 0
    %1781 = vmatpush1.bf16.msra.mxu0 0
    %1782 = vmatprep.subr.bf16.mxu0 0
    %1783 = vmatpush1.bf16.msra.mxu0 0
    %1784 = vmatprep.subr.bf16.mxu0 0
    %1785 = vmatpush1.bf16.msra.mxu0 0
    %1786 = vmatprep.subr.bf16.mxu0 0
    %1787 = vmatpush1.bf16.msra.mxu0 0
    %1788 = vmatprep.subr.bf16.mxu0 0
    %1789 = vmatpush1.bf16.msra.mxu0 0
    %1790 = vmatprep.subr.bf16.mxu0 0
    %1791 = vmatpush1.bf16.msra.mxu0 0
    %1792 = vmatprep.subr.bf16.mxu0 0
    %1793 = vmatpush1.bf16.msra.mxu0 0
    %1794 = vmatprep.subr.bf16.mxu0 0
    %1795 = vmatpush1.bf16.msra.mxu0 0
    %1796 = vmatprep.mubr.bf16.mxu0 0
    %1797 = vmatmul.mubr.bf16.gmra.mrb[0].mxu0 %v94
    %v1798 = vpop.f32.mrb[0].mxu0
    %v1799 = vadd.f32 %v1756, %v1798
    %v1800 = vpop.f32.mrb[0].mxu0
    %v1801 = vadd.f32 %v1758, %v1800
    %v1802 = vpop.f32.mrb[0].mxu0
    %v1803 = vadd.f32 %v1760, %v1802
    %v1804 = vpop.f32.mrb[0].mxu0
    %v1805 = vadd.f32 %v1762, %v1804
    %1806 = vdwg.mxu0
    %v1807 = vmul.f32 %v1713, 0.5
    %v1808 = vmul.f32 %v1715, 0.5
    %v1809 = vmul.f32 %v1799, 0.5
    %v1810 = vmul.f32 %v1801, 0.5
    %v1811 = vmul.f32 %v1717, 0.5
    %v1812 = vmul.f32 %v1719, 0.5
    %v1813 = vmul.f32 %v1803, 0.5
    %v1814 = vmul.f32 %v1805, 0.5
    %v1815 = vmul.f32 %v1713, 0.70710677
    %v1816 = vmul.f32 %v1715, 0.70710677
    %v1817 = vmul.f32 %v1799, 0.70710677
    %v1818 = vmul.f32 %v1801, 0.70710677
    %v1819 = vmul.f32 %v1717, 0.70710677
    %v1820 = vmul.f32 %v1719, 0.70710677
    %v1821 = vmul.f32 %v1803, 0.70710677
    %v1822 = vmul.f32 %v1805, 0.70710677
    %v1823 = verf.f32.pop %v1815
    %v1824 = verf.f32.pop %v1816
    %v1825 = verf.f32.pop %v1817
    %v1826 = verf.f32.pop %v1818
    %v1827 = verf.f32.pop %v1819
    %v1828 = verf.f32.pop %v1820
    %v1829 = verf.f32.pop %v1821
    %v1830 = verf.f32.pop %v1822
    %v1831 = vadd.f32 %v1823, 1.0
    %v1832 = vadd.f32 %v1824, 1.0
    %v1833 = vadd.f32 %v1825, 1.0
    %v1834 = vadd.f32 %v1826, 1.0
    %v1835 = vadd.f32 %v1827, 1.0
    %v1836 = vadd.f32 %v1828, 1.0
    %v1837 = vadd.f32 %v1829, 1.0
    %v1838 = vadd.f32 %v1830, 1.0
    %v1839 = vmul.f32 %v1807, %v1831
    %v1840 = vmul.f32 %v1808, %v1832
    %v1841 = vmul.f32 %v1809, %v1833
    %v1842 = vmul.f32 %v1810, %v1834
    %v1843 = vmul.f32 %v1811, %v1835
    %v1844 = vmul.f32 %v1812, %v1836
    %v1845 = vmul.f32 %v1813, %v1837
    %v1846 = vmul.f32 %v1814, %v1838
    %v1847 = vpack.c.bf16 %v1843, %v1839
    %v1848 = vpack.c.bf16 %v1844, %v1840
    %v1849 = vpack.c.bf16 %v1845, %v1841
    %v1850 = vpack.c.bf16 %v1846, %v1842
    %v1851 = vld [vmem:[#allocation8 + $0x300] sm:$0xff]
    %v1852 = vld [vmem:[#allocation8 + $0x308] sm:$0xf]
    %v1853 = vld [vmem:[#allocation8 + $0x30c] sm:$0xff]
    %v1854 = vld [vmem:[#allocation8 + $0x314] sm:$0xf]
    %v1855 = vld [vmem:[#allocation8 + $0x318] sm:$0xff]
    %v1856 = vld [vmem:[#allocation8 + $0x320] sm:$0xf]
    %v1857 = vld [vmem:[#allocation8 + $0x324] sm:$0xff]
    %v1858 = vld [vmem:[#allocation8 + $0x32c] sm:$0xf]
    %v1859 = vld [vmem:[#allocation8 + $0x330] sm:$0xff]
    %v1860 = vld [vmem:[#allocation8 + $0x338] sm:$0xf]
    %v1861 = vld [vmem:[#allocation8 + $0x33c] sm:$0xff]
    %v1862 = vld [vmem:[#allocation8 + $0x344] sm:$0xf]
    %v1863 = vld [vmem:[#allocation8 + $0x348] sm:$0xff]
    %v1864 = vld [vmem:[#allocation8 + $0x350] sm:$0xf]
    %v1865 = vld [vmem:[#allocation8 + $0x354] sm:$0xff]
    %v1866 = vld [vmem:[#allocation8 + $0x35c] sm:$0xf]
    %v1867 = vld [vmem:[#allocation8 + $0x360] sm:$0xff]
    %v1868 = vld [vmem:[#allocation8 + $0x368] sm:$0xf]
    %v1869 = vld [vmem:[#allocation8 + $0x36c] sm:$0xff]
    %v1870 = vld [vmem:[#allocation8 + $0x374] sm:$0xf]
    %v1871 = vld [vmem:[#allocation8 + $0x378] sm:$0xff]
    %v1872 = vld [vmem:[#allocation8 + $0x380] sm:$0xf]
    %v1873 = vld [vmem:[#allocation8 + $0x384] sm:$0xff]
    %v1874 = vld [vmem:[#allocation8 + $0x38c] sm:$0xf]
    %v1875 = vld [vmem:[#allocation8 + $0x390] sm:$0xff]
    %v1876 = vld [vmem:[#allocation8 + $0x398] sm:$0xf]
    %v1877 = vld [vmem:[#allocation8 + $0x39c] sm:$0xff]
    %v1878 = vld [vmem:[#allocation8 + $0x3a4] sm:$0xf]
    %v1879 = vld [vmem:[#allocation8 + $0x3a8] sm:$0xff]
    %v1880 = vld [vmem:[#allocation8 + $0x3b0] sm:$0xf]
    %v1881 = vld [vmem:[#allocation8 + $0x3b4] sm:$0xff]
    %v1882 = vld [vmem:[#allocation8 + $0x3bc] sm:$0xf]
    %v1883 = vld [vmem:[#allocation8 + $0x3c0] sm:$0xff]
    %v1884 = vld [vmem:[#allocation8 + $0x3c8] sm:$0xf]
    %v1885 = vld [vmem:[#allocation8 + $0x3cc] sm:$0xff]
    %v1886 = vld [vmem:[#allocation8 + $0x3d4] sm:$0xf]
    %v1887 = vld [vmem:[#allocation8 + $0x3d8] sm:$0xff]
    %v1888 = vld [vmem:[#allocation8 + $0x3e0] sm:$0xf]
    %v1889 = vld [vmem:[#allocation8 + $0x3e4] sm:$0xff]
    %v1890 = vld [vmem:[#allocation8 + $0x3ec] sm:$0xf]
    %v1891 = vld [vmem:[#allocation8 + $0x3f0] sm:$0xff]
    %v1892 = vld [vmem:[#allocation8 + $0x3f8] sm:$0xf]
    %v1893 = vld [vmem:[#allocation8 + $0x3fc] sm:$0xff]
    %v1894 = vld [vmem:[#allocation8 + $0x404] sm:$0xf]
    %v1895 = vld [vmem:[#allocation8 + $0x408] sm:$0xff]
    %v1896 = vld [vmem:[#allocation8 + $0x410] sm:$0xf]
    %v1897 = vld [vmem:[#allocation8 + $0x414] sm:$0xff]
    %v1898 = vld [vmem:[#allocation8 + $0x41c] sm:$0xf]
    %v1899 = vld [vmem:[#allocation8 + $0x420] sm:$0xff]
    %v1900 = vld [vmem:[#allocation8 + $0x428] sm:$0xf]
    %v1901 = vld [vmem:[#allocation8 + $0x42c] sm:$0xff]
    %v1902 = vld [vmem:[#allocation8 + $0x434] sm:$0xf]
    %v1903 = vld [vmem:[#allocation8 + $0x438] sm:$0xff]
    %v1904 = vld [vmem:[#allocation8 + $0x440] sm:$0xf]
    %v1905 = vld [vmem:[#allocation8 + $0x444] sm:$0xff]
    %v1906 = vld [vmem:[#allocation8 + $0x44c] sm:$0xf]
    %v1907 = vld [vmem:[#allocation8 + $0x450] sm:$0xff]
    %v1908 = vld [vmem:[#allocation8 + $0x458] sm:$0xf]
    %v1909 = vld [vmem:[#allocation8 + $0x45c] sm:$0xff]
    %v1910 = vld [vmem:[#allocation8 + $0x464] sm:$0xf]
    %v1911 = vld [vmem:[#allocation8 + $0x468] sm:$0xff]
    %v1912 = vld [vmem:[#allocation8 + $0x470] sm:$0xf]
    %v1913 = vld [vmem:[#allocation8 + $0x474] sm:$0xff]
    %v1914 = vld [vmem:[#allocation8 + $0x47c] sm:$0xf]
    %v1915 = vld [vmem:[#allocation8 + $0x480] sm:$0xff]
    %v1916 = vld [vmem:[#allocation8 + $0x488] sm:$0xf]
    %v1917 = vld [vmem:[#allocation8 + $0x48c] sm:$0xff]
    %v1918 = vld [vmem:[#allocation8 + $0x494] sm:$0xf]
    %v1919 = vld [vmem:[#allocation8 + $0x498] sm:$0xff]
    %v1920 = vld [vmem:[#allocation8 + $0x4a0] sm:$0xf]
    %v1921 = vld [vmem:[#allocation8 + $0x4a4] sm:$0xff]
    %v1922 = vld [vmem:[#allocation8 + $0x4ac] sm:$0xf]
    %v1923 = vld [vmem:[#allocation8 + $0x4b0] sm:$0xff]
    %v1924 = vld [vmem:[#allocation8 + $0x4b8] sm:$0xf]
    %v1925 = vld [vmem:[#allocation8 + $0x4bc] sm:$0xff]
    %v1926 = vld [vmem:[#allocation8 + $0x4c4] sm:$0xf]
    %v1927 = vld [vmem:[#allocation8 + $0x4c8] sm:$0xff]
    %v1928 = vld [vmem:[#allocation8 + $0x4d0] sm:$0xf]
    %v1929 = vld [vmem:[#allocation8 + $0x4d4] sm:$0xff]
    %v1930 = vld [vmem:[#allocation8 + $0x4dc] sm:$0xf]
    %v1931 = vld [vmem:[#allocation8 + $0x4e0] sm:$0xff]
    %v1932 = vld [vmem:[#allocation8 + $0x4e8] sm:$0xf]
    %v1933 = vld [vmem:[#allocation8 + $0x4ec] sm:$0xff]
    %v1934 = vld [vmem:[#allocation8 + $0x4f4] sm:$0xf]
    %v1935 = vld [vmem:[#allocation8 + $0x4f8] sm:$0xff]
    %v1936 = vld [vmem:[#allocation8 + $0x500] sm:$0xf]
    %v1937 = vld [vmem:[#allocation8 + $0x504] sm:$0xff]
    %v1938 = vld [vmem:[#allocation8 + $0x50c] sm:$0xf]
    %v1939 = vld [vmem:[#allocation8 + $0x510] sm:$0xff]
    %v1940 = vld [vmem:[#allocation8 + $0x518] sm:$0xf]
    %v1941 = vld [vmem:[#allocation8 + $0x51c] sm:$0xff]
    %v1942 = vld [vmem:[#allocation8 + $0x524] sm:$0xf]
    %v1943 = vld [vmem:[#allocation8 + $0x528] sm:$0xff]
    %v1944 = vld [vmem:[#allocation8 + $0x530] sm:$0xf]
    %v1945 = vld [vmem:[#allocation8 + $0x534] sm:$0xff]
    %v1946 = vld [vmem:[#allocation8 + $0x53c] sm:$0xf]
    %v1947 = vld [vmem:[#allocation8 + $0x540] sm:$0xff]
    %v1948 = vld [vmem:[#allocation8 + $0x548] sm:$0xf]
    %v1949 = vld [vmem:[#allocation8 + $0x54c] sm:$0xff]
    %v1950 = vld [vmem:[#allocation8 + $0x554] sm:$0xf]
    %v1951 = vld [vmem:[#allocation8 + $0x558] sm:$0xff]
    %v1952 = vld [vmem:[#allocation8 + $0x560] sm:$0xf]
    %v1953 = vld [vmem:[#allocation8 + $0x564] sm:$0xff]
    %v1954 = vld [vmem:[#allocation8 + $0x56c] sm:$0xf]
    %v1955 = vld [vmem:[#allocation8 + $0x570] sm:$0xff]
    %v1956 = vld [vmem:[#allocation8 + $0x578] sm:$0xf]
    %v1957 = vld [vmem:[#allocation8 + $0x57c] sm:$0xff]
    %v1958 = vld [vmem:[#allocation8 + $0x584] sm:$0xf]
    %v1959 = vld [vmem:[#allocation8 + $0x588] sm:$0xff]
    %v1960 = vld [vmem:[#allocation8 + $0x590] sm:$0xf]
    %v1961 = vld [vmem:[#allocation8 + $0x594] sm:$0xff]
    %v1962 = vld [vmem:[#allocation8 + $0x59c] sm:$0xf]
    %v1963 = vld [vmem:[#allocation8 + $0x5a0] sm:$0xff]
    %v1964 = vld [vmem:[#allocation8 + $0x5a8] sm:$0xf]
    %v1965 = vld [vmem:[#allocation8 + $0x5ac] sm:$0xff]
    %v1966 = vld [vmem:[#allocation8 + $0x5b4] sm:$0xf]
    %v1967 = vld [vmem:[#allocation8 + $0x5b8] sm:$0xff]
    %v1968 = vld [vmem:[#allocation8 + $0x5c0] sm:$0xf]
    %v1969 = vld [vmem:[#allocation8 + $0x5c4] sm:$0xff]
    %v1970 = vld [vmem:[#allocation8 + $0x5cc] sm:$0xf]
    %v1971 = vld [vmem:[#allocation8 + $0x5d0] sm:$0xff]
    %v1972 = vld [vmem:[#allocation8 + $0x5d8] sm:$0xf]
    %v1973 = vld [vmem:[#allocation8 + $0x5dc] sm:$0xff]
    %v1974 = vld [vmem:[#allocation8 + $0x5e4] sm:$0xf]
    %v1975 = vld [vmem:[#allocation8 + $0x5e8] sm:$0xff]
    %v1976 = vld [vmem:[#allocation8 + $0x5f0] sm:$0xf]
    %v1977 = vld [vmem:[#allocation8 + $0x5f4] sm:$0xff]
    %v1978 = vld [vmem:[#allocation8 + $0x5fc] sm:$0xf]
    %v2107 = vunpack.c.l.b16 %v1851
    %v2108 = vunpack.c.h.b16 %v1851
    %v2109 = vunpack.c.l.b16 %v1852
    %v2110 = vunpack.c.l.b16 %v1853
    %v2111 = vunpack.c.h.b16 %v1853
    %v2112 = vunpack.c.l.b16 %v1854
    %v2113 = vunpack.c.l.b16 %v1855
    %v2114 = vunpack.c.h.b16 %v1855
    %v2115 = vunpack.c.l.b16 %v1856
    %v2116 = vunpack.c.l.b16 %v1857
    %v2117 = vunpack.c.h.b16 %v1857
    %v2118 = vunpack.c.l.b16 %v1858
    %v2119 = vunpack.c.l.b16 %v1859
    %v2120 = vunpack.c.h.b16 %v1859
    %v2121 = vunpack.c.l.b16 %v1860
    %v2122 = vunpack.c.l.b16 %v1861
    %v2123 = vunpack.c.h.b16 %v1861
    %v2124 = vunpack.c.l.b16 %v1862
    %v2125 = vunpack.c.l.b16 %v1863
    %v2126 = vunpack.c.h.b16 %v1863
    %v2127 = vunpack.c.l.b16 %v1864
    %v2128 = vunpack.c.l.b16 %v1865
    %v2129 = vunpack.c.h.b16 %v1865
    %v2130 = vunpack.c.l.b16 %v1866
    %v2131 = vunpack.c.l.b16 %v1867
    %v2132 = vunpack.c.h.b16 %v1867
    %v2133 = vunpack.c.l.b16 %v1868
    %v2134 = vunpack.c.l.b16 %v1869
    %v2135 = vunpack.c.h.b16 %v1869
    %v2136 = vunpack.c.l.b16 %v1870
    %v2137 = vunpack.c.l.b16 %v1871
    %v2138 = vunpack.c.h.b16 %v1871
    %v2139 = vunpack.c.l.b16 %v1872
    %v2140 = vunpack.c.l.b16 %v1873
    %v2141 = vunpack.c.h.b16 %v1873
    %v2142 = vunpack.c.l.b16 %v1874
    %v2143 = vunpack.c.l.b16 %v1875
    %v2144 = vunpack.c.h.b16 %v1875
    %v2145 = vunpack.c.l.b16 %v1876
    %v2146 = vunpack.c.l.b16 %v1877
    %v2147 = vunpack.c.h.b16 %v1877
    %v2148 = vunpack.c.l.b16 %v1878
    %v2149 = vunpack.c.l.b16 %v1879
    %v2150 = vunpack.c.h.b16 %v1879
    %v2151 = vunpack.c.l.b16 %v1880
    %v2152 = vunpack.c.l.b16 %v1881
    %v2153 = vunpack.c.h.b16 %v1881
    %v2154 = vunpack.c.l.b16 %v1882
    %v2155 = vunpack.c.l.b16 %v1883
    %v2156 = vunpack.c.h.b16 %v1883
    %v2157 = vunpack.c.l.b16 %v1884
    %v2158 = vunpack.c.l.b16 %v1885
    %v2159 = vunpack.c.h.b16 %v1885
    %v2160 = vunpack.c.l.b16 %v1886
    %v2161 = vunpack.c.l.b16 %v1887
    %v2162 = vunpack.c.h.b16 %v1887
    %v2163 = vunpack.c.l.b16 %v1888
    %v2164 = vunpack.c.l.b16 %v1889
    %v2165 = vunpack.c.h.b16 %v1889
    %v2166 = vunpack.c.l.b16 %v1890
    %v2167 = vunpack.c.l.b16 %v1891
    %v2168 = vunpack.c.h.b16 %v1891
    %v2169 = vunpack.c.l.b16 %v1892
    %v2170 = vunpack.c.l.b16 %v1893
    %v2171 = vunpack.c.h.b16 %v1893
    %v2172 = vunpack.c.l.b16 %v1894
    %v2173 = vunpack.c.l.b16 %v1895
    %v2174 = vunpack.c.h.b16 %v1895
    %v2175 = vunpack.c.l.b16 %v1896
    %v2176 = vunpack.c.l.b16 %v1897
    %v2177 = vunpack.c.h.b16 %v1897
    %v2178 = vunpack.c.l.b16 %v1898
    %v2179 = vunpack.c.l.b16 %v1899
    %v2180 = vunpack.c.h.b16 %v1899
    %v2181 = vunpack.c.l.b16 %v1900
    %v2182 = vunpack.c.l.b16 %v1901
    %v2183 = vunpack.c.h.b16 %v1901
    %v2184 = vunpack.c.l.b16 %v1902
    %v2185 = vunpack.c.l.b16 %v1903
    %v2186 = vunpack.c.h.b16 %v1903
    %v2187 = vunpack.c.l.b16 %v1904
    %v2188 = vunpack.c.l.b16 %v1905
    %v2189 = vunpack.c.h.b16 %v1905
    %v2190 = vunpack.c.l.b16 %v1906
    %v2191 = vunpack.c.l.b16 %v1907
    %v2192 = vunpack.c.h.b16 %v1907
    %v2193 = vunpack.c.l.b16 %v1908
    %v2194 = vunpack.c.l.b16 %v1909
    %v2195 = vunpack.c.h.b16 %v1909
    %v2196 = vunpack.c.l.b16 %v1910
    %v2197 = vunpack.c.l.b16 %v1911
    %v2198 = vunpack.c.h.b16 %v1911
    %v2199 = vunpack.c.l.b16 %v1912
    %v2200 = vunpack.c.l.b16 %v1913
    %v2201 = vunpack.c.h.b16 %v1913
    %v2202 = vunpack.c.l.b16 %v1914
    %v2203 = vunpack.c.l.b16 %v1915
    %v2204 = vunpack.c.h.b16 %v1915
    %v2205 = vunpack.c.l.b16 %v1916
    %v2206 = vunpack.c.l.b16 %v1917
    %v2207 = vunpack.c.h.b16 %v1917
    %v2208 = vunpack.c.l.b16 %v1918
    %v2209 = vunpack.c.l.b16 %v1919
    %v2210 = vunpack.c.h.b16 %v1919
    %v2211 = vunpack.c.l.b16 %v1920
    %v2212 = vunpack.c.l.b16 %v1921
    %v2213 = vunpack.c.h.b16 %v1921
    %v2214 = vunpack.c.l.b16 %v1922
    %v2215 = vunpack.c.l.b16 %v1923
    %v2216 = vunpack.c.h.b16 %v1923
    %v2217 = vunpack.c.l.b16 %v1924
    %v2218 = vunpack.c.l.b16 %v1925
    %v2219 = vunpack.c.h.b16 %v1925
    %v2220 = vunpack.c.l.b16 %v1926
    %v2221 = vunpack.c.l.b16 %v1927
    %v2222 = vunpack.c.h.b16 %v1927
    %v2223 = vunpack.c.l.b16 %v1928
    %v2224 = vunpack.c.l.b16 %v1929
    %v2225 = vunpack.c.h.b16 %v1929
    %v2226 = vunpack.c.l.b16 %v1930
    %v2227 = vunpack.c.l.b16 %v1931
    %v2228 = vunpack.c.h.b16 %v1931
    %v2229 = vunpack.c.l.b16 %v1932
    %v2230 = vunpack.c.l.b16 %v1933
    %v2231 = vunpack.c.h.b16 %v1933
    %v2232 = vunpack.c.l.b16 %v1934
    %v2233 = vunpack.c.l.b16 %v1935
    %v2234 = vunpack.c.h.b16 %v1935
    %v2235 = vunpack.c.l.b16 %v1936
    %v2236 = vunpack.c.l.b16 %v1937
    %v2237 = vunpack.c.h.b16 %v1937
    %v2238 = vunpack.c.l.b16 %v1938
    %v2239 = vunpack.c.l.b16 %v1939
    %v2240 = vunpack.c.h.b16 %v1939
    %v2241 = vunpack.c.l.b16 %v1940
    %v2242 = vunpack.c.l.b16 %v1941
    %v2243 = vunpack.c.h.b16 %v1941
    %v2244 = vunpack.c.l.b16 %v1942
    %v2245 = vunpack.c.l.b16 %v1943
    %v2246 = vunpack.c.h.b16 %v1943
    %v2247 = vunpack.c.l.b16 %v1944
    %v2248 = vunpack.c.l.b16 %v1945
    %v2249 = vunpack.c.h.b16 %v1945
    %v2250 = vunpack.c.l.b16 %v1946
    %v2251 = vunpack.c.l.b16 %v1947
    %v2252 = vunpack.c.h.b16 %v1947
    %v2253 = vunpack.c.l.b16 %v1948
    %v2254 = vunpack.c.l.b16 %v1949
    %v2255 = vunpack.c.h.b16 %v1949
    %v2256 = vunpack.c.l.b16 %v1950
    %v2257 = vunpack.c.l.b16 %v1951
    %v2258 = vunpack.c.h.b16 %v1951
    %v2259 = vunpack.c.l.b16 %v1952
    %v2260 = vunpack.c.l.b16 %v1953
    %v2261 = vunpack.c.h.b16 %v1953
    %v2262 = vunpack.c.l.b16 %v1954
    %v2263 = vunpack.c.l.b16 %v1955
    %v2264 = vunpack.c.h.b16 %v1955
    %v2265 = vunpack.c.l.b16 %v1956
    %v2266 = vunpack.c.l.b16 %v1957
    %v2267 = vunpack.c.h.b16 %v1957
    %v2268 = vunpack.c.l.b16 %v1958
    %v2269 = vunpack.c.l.b16 %v1959
    %v2270 = vunpack.c.h.b16 %v1959
    %v2271 = vunpack.c.l.b16 %v1960
    %v2272 = vunpack.c.l.b16 %v1961
    %v2273 = vunpack.c.h.b16 %v1961
    %v2274 = vunpack.c.l.b16 %v1962
    %v2275 = vunpack.c.l.b16 %v1963
    %v2276 = vunpack.c.h.b16 %v1963
    %v2277 = vunpack.c.l.b16 %v1964
    %v2278 = vunpack.c.l.b16 %v1965
    %v2279 = vunpack.c.h.b16 %v1965
    %v2280 = vunpack.c.l.b16 %v1966
    %v2281 = vunpack.c.l.b16 %v1967
    %v2282 = vunpack.c.h.b16 %v1967
    %v2283 = vunpack.c.l.b16 %v1968
    %v2284 = vunpack.c.l.b16 %v1969
    %v2285 = vunpack.c.h.b16 %v1969
    %v2286 = vunpack.c.l.b16 %v1970
    %v2287 = vunpack.c.l.b16 %v1971
    %v2288 = vunpack.c.h.b16 %v1971
    %v2289 = vunpack.c.l.b16 %v1972
    %v2290 = vunpack.c.l.b16 %v1973
    %v2291 = vunpack.c.h.b16 %v1973
    %v2292 = vunpack.c.l.b16 %v1974
    %v2293 = vunpack.c.l.b16 %v1975
    %v2294 = vunpack.c.h.b16 %v1975
    %v2295 = vunpack.c.l.b16 %v1976
    %v2296 = vunpack.c.l.b16 %v1977
    %v2297 = vunpack.c.h.b16 %v1977
    %v2298 = vunpack.c.l.b16 %v1978
    %v2299 = vpack.c.b16 %v2110, %v2107
    %v2300 = vpack.c.b16 %v2111, %v2108
    %v2301 = vpack.c.b16 %v2112, %v2109
    %v2302 = vpack.c.b16 %v2116, %v2113
    %v2303 = vpack.c.b16 %v2117, %v2114
    %v2304 = vpack.c.b16 %v2118, %v2115
    %v2305 = vpack.c.b16 %v2122, %v2119
    %v2306 = vpack.c.b16 %v2123, %v2120
    %v2307 = vpack.c.b16 %v2124, %v2121
    %v2308 = vpack.c.b16 %v2128, %v2125
    %v2309 = vpack.c.b16 %v2129, %v2126
    %v2310 = vpack.c.b16 %v2130, %v2127
    %v2311 = vpack.c.b16 %v2134, %v2131
    %v2312 = vpack.c.b16 %v2135, %v2132
    %v2313 = vpack.c.b16 %v2136, %v2133
    %v2314 = vpack.c.b16 %v2140, %v2137
    %v2315 = vpack.c.b16 %v2141, %v2138
    %v2316 = vpack.c.b16 %v2142, %v2139
    %v2317 = vpack.c.b16 %v2146, %v2143
    %v2318 = vpack.c.b16 %v2147, %v2144
    %v2319 = vpack.c.b16 %v2148, %v2145
    %v2320 = vpack.c.b16 %v2152, %v2149
    %v2321 = vpack.c.b16 %v2153, %v2150
    %v2322 = vpack.c.b16 %v2154, %v2151
    %v2323 = vpack.c.b16 %v2158, %v2155
    %v2324 = vpack.c.b16 %v2159, %v2156
    %v2325 = vpack.c.b16 %v2160, %v2157
    %v2326 = vpack.c.b16 %v2164, %v2161
    %v2327 = vpack.c.b16 %v2165, %v2162
    %v2328 = vpack.c.b16 %v2166, %v2163
    %v2329 = vpack.c.b16 %v2170, %v2167
    %v2330 = vpack.c.b16 %v2171, %v2168
    %v2331 = vpack.c.b16 %v2172, %v2169
    %v2332 = vpack.c.b16 %v2176, %v2173
    %v2333 = vpack.c.b16 %v2177, %v2174
    %v2334 = vpack.c.b16 %v2178, %v2175
    %v2335 = vpack.c.b16 %v2182, %v2179
    %v2336 = vpack.c.b16 %v2183, %v2180
    %v2337 = vpack.c.b16 %v2184, %v2181
    %v2338 = vpack.c.b16 %v2188, %v2185
    %v2339 = vpack.c.b16 %v2189, %v2186
    %v2340 = vpack.c.b16 %v2190, %v2187
    %v2341 = vpack.c.b16 %v2194, %v2191
    %v2342 = vpack.c.b16 %v2195, %v2192
    %v2343 = vpack.c.b16 %v2196, %v2193
    %v2344 = vpack.c.b16 %v2200, %v2197
    %v2345 = vpack.c.b16 %v2201, %v2198
    %v2346 = vpack.c.b16 %v2202, %v2199
    %v2347 = vpack.c.b16 %v2206, %v2203
    %v2348 = vpack.c.b16 %v2207, %v2204
    %v2349 = vpack.c.b16 %v2208, %v2205
    %v2350 = vpack.c.b16 %v2212, %v2209
    %v2351 = vpack.c.b16 %v2213, %v2210
    %v2352 = vpack.c.b16 %v2214, %v2211
    %v2353 = vpack.c.b16 %v2218, %v2215
    %v2354 = vpack.c.b16 %v2219, %v2216
    %v2355 = vpack.c.b16 %v2220, %v2217
    %v2356 = vpack.c.b16 %v2224, %v2221
    %v2357 = vpack.c.b16 %v2225, %v2222
    %v2358 = vpack.c.b16 %v2226, %v2223
    %v2359 = vpack.c.b16 %v2230, %v2227
    %v2360 = vpack.c.b16 %v2231, %v2228
    %v2361 = vpack.c.b16 %v2232, %v2229
    %v2362 = vpack.c.b16 %v2236, %v2233
    %v2363 = vpack.c.b16 %v2237, %v2234
    %v2364 = vpack.c.b16 %v2238, %v2235
    %v2365 = vpack.c.b16 %v2242, %v2239
    %v2366 = vpack.c.b16 %v2243, %v2240
    %v2367 = vpack.c.b16 %v2244, %v2241
    %v2368 = vpack.c.b16 %v2248, %v2245
    %v2369 = vpack.c.b16 %v2249, %v2246
    %v2370 = vpack.c.b16 %v2250, %v2247
    %v2371 = vpack.c.b16 %v2254, %v2251
    %v2372 = vpack.c.b16 %v2255, %v2252
    %v2373 = vpack.c.b16 %v2256, %v2253
    %v2374 = vpack.c.b16 %v2260, %v2257
    %v2375 = vpack.c.b16 %v2261, %v2258
    %v2376 = vpack.c.b16 %v2262, %v2259
    %v2377 = vpack.c.b16 %v2266, %v2263
    %v2378 = vpack.c.b16 %v2267, %v2264
    %v2379 = vpack.c.b16 %v2268, %v2265
    %v2380 = vpack.c.b16 %v2272, %v2269
    %v2381 = vpack.c.b16 %v2273, %v2270
    %v2382 = vpack.c.b16 %v2274, %v2271
    %v2383 = vpack.c.b16 %v2278, %v2275
    %v2384 = vpack.c.b16 %v2279, %v2276
    %v2385 = vpack.c.b16 %v2280, %v2277
    %v2386 = vpack.c.b16 %v2284, %v2281
    %v2387 = vpack.c.b16 %v2285, %v2282
    %v2388 = vpack.c.b16 %v2286, %v2283
    %v2389 = vpack.c.b16 %v2290, %v2287
    %v2390 = vpack.c.b16 %v2291, %v2288
    %v2391 = vpack.c.b16 %v2292, %v2289
    %v2392 = vpack.c.b16 %v2296, %v2293
    %v2393 = vpack.c.b16 %v2297, %v2294
    %v2394 = vpack.c.b16 %v2298, %v2295
    %2491 = vmatprep.subr.bf16.mxu0 %v2300
    %2492 = vmatpush1.bf16.msra.mxu0 %v2299
    %2493 = vmatprep.subr.bf16.mxu0 %v2303
    %2494 = vmatpush1.bf16.msra.mxu0 %v2302
    %2495 = vmatprep.subr.bf16.mxu0 %v2306
    %2496 = vmatpush1.bf16.msra.mxu0 %v2305
    %2497 = vmatprep.subr.bf16.mxu0 %v2309
    %2498 = vmatpush1.bf16.msra.mxu0 %v2308
    %2499 = vmatprep.subr.bf16.mxu0 %v2312
    %2500 = vmatpush1.bf16.msra.mxu0 %v2311
    %2501 = vmatprep.subr.bf16.mxu0 %v2315
    %2502 = vmatpush1.bf16.msra.mxu0 %v2314
    %2503 = vmatprep.subr.bf16.mxu0 %v2318
    %2504 = vmatpush1.bf16.msra.mxu0 %v2317
    %2505 = vmatprep.subr.bf16.mxu0 %v2321
    %2506 = vmatpush1.bf16.msra.mxu0 %v2320
    %2507 = vmatprep.subr.bf16.mxu0 %v2324
    %2508 = vmatpush1.bf16.msra.mxu0 %v2323
    %2509 = vmatprep.subr.bf16.mxu0 %v2327
    %2510 = vmatpush1.bf16.msra.mxu0 %v2326
    %2511 = vmatprep.subr.bf16.mxu0 %v2330
    %2512 = vmatpush1.bf16.msra.mxu0 %v2329
    %2513 = vmatprep.subr.bf16.mxu0 %v2333
    %2514 = vmatpush1.bf16.msra.mxu0 %v2332
    %2515 = vmatprep.subr.bf16.mxu0 %v2336
    %2516 = vmatpush1.bf16.msra.mxu0 %v2335
    %2517 = vmatprep.subr.bf16.mxu0 %v2339
    %2518 = vmatpush1.bf16.msra.mxu0 %v2338
    %2519 = vmatprep.subr.bf16.mxu0 %v2342
    %2520 = vmatpush1.bf16.msra.mxu0 %v2341
    %2521 = vmatprep.subr.bf16.mxu0 %v2345
    %2522 = vmatpush1.bf16.msra.mxu0 %v2344
    %2523 = vmatprep.mubr.bf16.mxu0 %v1848
    %2524 = vmatmul.mubr.bf16.gmra.mrb[0].mxu0 %v1847
    %v2525 = vpop.f32.mrb[0].mxu0
    %v2526 = vadd.f32 0.0, %v2525
    %v2527 = vpop.f32.mrb[0].mxu0
    %v2528 = vadd.f32 0.0, %v2527
    %v2529 = vpop.f32.mrb[0].mxu0
    %v2530 = vadd.f32 0.0, %v2529
    %v2531 = vpop.f32.mrb[0].mxu0
    %v2532 = vadd.f32 0.0, %v2531
    %2533 = vdwg.mxu0
    %2534 = vmatprep.subr.bf16.mxu0 %v2348
    %2535 = vmatpush1.bf16.msra.mxu0 %v2347
    %2536 = vmatprep.subr.bf16.mxu0 %v2351
    %2537 = vmatpush1.bf16.msra.mxu0 %v2350
    %2538 = vmatprep.subr.bf16.mxu0 %v2354
    %2539 = vmatpush1.bf16.msra.mxu0 %v2353
    %2540 = vmatprep.subr.bf16.mxu0 %v2357
    %2541 = vmatpush1.bf16.msra.mxu0 %v2356
    %2542 = vmatprep.subr.bf16.mxu0 %v2360
    %2543 = vmatpush1.bf16.msra.mxu0 %v2359
    %2544 = vmatprep.subr.bf16.mxu0 %v2363
    %2545 = vmatpush1.bf16.msra.mxu0 %v2362
    %2546 = vmatprep.subr.bf16.mxu0 %v2366
    %2547 = vmatpush1.bf16.msra.mxu0 %v2365
    %2548 = vmatprep.subr.bf16.mxu0 %v2369
    %2549 = vmatpush1.bf16.msra.mxu0 %v2368
    %2550 = vmatprep.subr.bf16.mxu0 %v2372
    %2551 = vmatpush1.bf16.msra.mxu0 %v2371
    %2552 = vmatprep.subr.bf16.mxu0 %v2375
    %2553 = vmatpush1.bf16.msra.mxu0 %v2374
    %2554 = vmatprep.subr.bf16.mxu0 %v2378
    %2555 = vmatpush1.bf16.msra.mxu0 %v2377
    %2556 = vmatprep.subr.bf16.mxu0 %v2381
    %2557 = vmatpush1.bf16.msra.mxu0 %v2380
    %2558 = vmatprep.subr.bf16.mxu0 %v2384
    %2559 = vmatpush1.bf16.msra.mxu0 %v2383
    %2560 = vmatprep.subr.bf16.mxu0 %v2387
    %2561 = vmatpush1.bf16.msra.mxu0 %v2386
    %2562 = vmatprep.subr.bf16.mxu0 %v2390
    %2563 = vmatpush1.bf16.msra.mxu0 %v2389
    %2564 = vmatprep.subr.bf16.mxu0 %v2393
    %2565 = vmatpush1.bf16.msra.mxu0 %v2392
    %2566 = vmatprep.mubr.bf16.mxu0 %v1850
    %2567 = vmatmul.mubr.bf16.gmra.mrb[0].mxu0 %v1849
    %v2568 = vpop.f32.mrb[0].mxu0
    %v2569 = vadd.f32 %v2526, %v2568
    %v2570 = vpop.f32.mrb[0].mxu0
    %v2571 = vadd.f32 %v2528, %v2570
    %v2572 = vpop.f32.mrb[0].mxu0
    %v2573 = vadd.f32 %v2530, %v2572
    %v2574 = vpop.f32.mrb[0].mxu0
    %v2575 = vadd.f32 %v2532, %v2574
    %2576 = vdwg.mxu0
    %2577 = vmatprep.subr.bf16.mxu0 0
    %2578 = vmatpush1.bf16.msra.mxu0 %v2301
    %2579 = vmatprep.subr.bf16.mxu0 0
    %2580 = vmatpush1.bf16.msra.mxu0 %v2304
    %2581 = vmatprep.subr.bf16.mxu0 0
    %2582 = vmatpush1.bf16.msra.mxu0 %v2307
    %2583 = vmatprep.subr.bf16.mxu0 0
    %2584 = vmatpush1.bf16.msra.mxu0 %v2310
    %2585 = vmatprep.subr.bf16.mxu0 0
    %2586 = vmatpush1.bf16.msra.mxu0 %v2313
    %2587 = vmatprep.subr.bf16.mxu0 0
    %2588 = vmatpush1.bf16.msra.mxu0 %v2316
    %2589 = vmatprep.subr.bf16.mxu0 0
    %2590 = vmatpush1.bf16.msra.mxu0 %v2319
    %2591 = vmatprep.subr.bf16.mxu0 0
    %2592 = vmatpush1.bf16.msra.mxu0 %v2322
    %2593 = vmatprep.subr.bf16.mxu0 0
    %2594 = vmatpush1.bf16.msra.mxu0 %v2325
    %2595 = vmatprep.subr.bf16.mxu0 0
    %2596 = vmatpush1.bf16.msra.mxu0 %v2328
    %2597 = vmatprep.subr.bf16.mxu0 0
    %2598 = vmatpush1.bf16.msra.mxu0 %v2331
    %2599 = vmatprep.subr.bf16.mxu0 0
    %2600 = vmatpush1.bf16.msra.mxu0 %v2334
    %2601 = vmatprep.subr.bf16.mxu0 0
    %2602 = vmatpush1.bf16.msra.mxu0 %v2337
    %2603 = vmatprep.subr.bf16.mxu0 0
    %2604 = vmatpush1.bf16.msra.mxu0 %v2340
    %2605 = vmatprep.subr.bf16.mxu0 0
    %2606 = vmatpush1.bf16.msra.mxu0 %v2343
    %2607 = vmatprep.subr.bf16.mxu0 0
    %2608 = vmatpush1.bf16.msra.mxu0 %v2346
    %2609 = vmatprep.mubr.bf16.mxu0 %v1848
    %2610 = vmatmul.mubr.bf16.gmra.mrb[0].mxu0 %v1847
    %v2611 = vpop.f32.mrb[0].mxu0
    %v2612 = vadd.f32 0.0, %v2611
    %v2613 = vpop.f32.mrb[0].mxu0
    %v2614 = vpop.f32.mrb[0].mxu0
    %v2615 = vadd.f32 0.0, %v2614
    %v2616 = vpop.f32.mrb[0].mxu0
    %2617 = vdwg.mxu0
    %2618 = vmatprep.subr.bf16.mxu0 0
    %2619 = vmatpush1.bf16.msra.mxu0 %v2349
    %2620 = vmatprep.subr.bf16.mxu0 0
    %2621 = vmatpush1.bf16.msra.mxu0 %v2352
    %2622 = vmatprep.subr.bf16.mxu0 0
    %2623 = vmatpush1.bf16.msra.mxu0 %v2355
    %2624 = vmatprep.subr.bf16.mxu0 0
    %2625 = vmatpush1.bf16.msra.mxu0 %v2358
    %2626 = vmatprep.subr.bf16.mxu0 0
    %2627 = vmatpush1.bf16.msra.mxu0 %v2361
    %2628 = vmatprep.subr.bf16.mxu0 0
    %2629 = vmatpush1.bf16.msra.mxu0 %v2364
    %2630 = vmatprep.subr.bf16.mxu0 0
    %2631 = vmatpush1.bf16.msra.mxu0 %v2367
    %2632 = vmatprep.subr.bf16.mxu0 0
    %2633 = vmatpush1.bf16.msra.mxu0 %v2370
    %2634 = vmatprep.subr.bf16.mxu0 0
    %2635 = vmatpush1.bf16.msra.mxu0 %v2373
    %2636 = vmatprep.subr.bf16.mxu0 0
    %2637 = vmatpush1.bf16.msra.mxu0 %v2376
    %2638 = vmatprep.subr.bf16.mxu0 0
    %2639 = vmatpush1.bf16.msra.mxu0 %v2379
    %2640 = vmatprep.subr.bf16.mxu0 0
    %2641 = vmatpush1.bf16.msra.mxu0 %v2382
    %2642 = vmatprep.subr.bf16.mxu0 0
    %2643 = vmatpush1.bf16.msra.mxu0 %v2385
    %2644 = vmatprep.subr.bf16.mxu0 0
    %2645 = vmatpush1.bf16.msra.mxu0 %v2388
    %2646 = vmatprep.subr.bf16.mxu0 0
    %2647 = vmatpush1.bf16.msra.mxu0 %v2391
    %2648 = vmatprep.subr.bf16.mxu0 0
    %2649 = vmatpush1.bf16.msra.mxu0 %v2394
    %2650 = vmatprep.mubr.bf16.mxu0 %v1850
    %2651 = vmatmul.mubr.bf16.gmra.mrb[0].mxu0 %v1849
    %v2652 = vpop.f32.mrb[0].mxu0
    %v2653 = vadd.f32 %v2612, %v2652
    %v2654 = vpop.f32.mrb[0].mxu0
    %v2655 = vpop.f32.mrb[0].mxu0
    %v2656 = vadd.f32 %v2615, %v2655
    %v2657 = vpop.f32.mrb[0].mxu0
    %2658 = vdwg.mxu0
    %v2787 = vunpack.c.l.b16 %v909
    %v2788 = vunpack.c.h.b16 %v909
    %v2789 = vunpack.c.l.b16 %v910
    %v2790 = vunpack.c.l.b16 %v911
    %v2791 = vunpack.c.h.b16 %v911
    %v2792 = vunpack.c.l.b16 %v912
    %v2793 = vunpack.c.l.b16 %v913
    %v2794 = vunpack.c.h.b16 %v913
    %v2795 = vunpack.c.l.b16 %v914
    %v2796 = vunpack.c.l.b16 %v915
    %v2797 = vunpack.c.h.b16 %v915
    %v2798 = vunpack.c.l.b16 %v916
    %v2799 = vunpack.c.l.b16 %v917
    %v2800 = vunpack.c.h.b16 %v917
    %v2801 = vunpack.c.l.b16 %v918
    %v2802 = vunpack.c.l.b16 %v919
    %v2803 = vunpack.c.h.b16 %v919
    %v2804 = vunpack.c.l.b16 %v920
    %v2805 = vunpack.c.l.b16 %v921
    %v2806 = vunpack.c.h.b16 %v921
    %v2807 = vunpack.c.l.b16 %v922
    %v2808 = vunpack.c.l.b16 %v923
    %v2809 = vunpack.c.h.b16 %v923
    %v2810 = vunpack.c.l.b16 %v924
    %v2811 = vunpack.c.l.b16 %v925
    %v2812 = vunpack.c.h.b16 %v925
    %v2813 = vunpack.c.l.b16 %v926
    %v2814 = vunpack.c.l.b16 %v927
    %v2815 = vunpack.c.h.b16 %v927
    %v2816 = vunpack.c.l.b16 %v928
    %v2817 = vunpack.c.l.b16 %v929
    %v2818 = vunpack.c.h.b16 %v929
    %v2819 = vunpack.c.l.b16 %v930
    %v2820 = vunpack.c.l.b16 %v931
    %v2821 = vunpack.c.h.b16 %v931
    %v2822 = vunpack.c.l.b16 %v932
    %v2823 = vunpack.c.l.b16 %v933
    %v2824 = vunpack.c.h.b16 %v933
    %v2825 = vunpack.c.l.b16 %v934
    %v2826 = vunpack.c.l.b16 %v935
    %v2827 = vunpack.c.h.b16 %v935
    %v2828 = vunpack.c.l.b16 %v936
    %v2829 = vunpack.c.l.b16 %v937
    %v2830 = vunpack.c.h.b16 %v937
    %v2831 = vunpack.c.l.b16 %v938
    %v2832 = vunpack.c.l.b16 %v939
    %v2833 = vunpack.c.h.b16 %v939
    %v2834 = vunpack.c.l.b16 %v940
    %v2835 = vunpack.c.l.b16 %v941
    %v2836 = vunpack.c.h.b16 %v941
    %v2837 = vunpack.c.l.b16 %v942
    %v2838 = vunpack.c.l.b16 %v943
    %v2839 = vunpack.c.h.b16 %v943
    %v2840 = vunpack.c.l.b16 %v944
    %v2841 = vunpack.c.l.b16 %v945
    %v2842 = vunpack.c.h.b16 %v945
    %v2843 = vunpack.c.l.b16 %v946
    %v2844 = vunpack.c.l.b16 %v947
    %v2845 = vunpack.c.h.b16 %v947
    %v2846 = vunpack.c.l.b16 %v948
    %v2847 = vunpack.c.l.b16 %v949
    %v2848 = vunpack.c.h.b16 %v949
    %v2849 = vunpack.c.l.b16 %v950
    %v2850 = vunpack.c.l.b16 %v951
    %v2851 = vunpack.c.h.b16 %v951
    %v2852 = vunpack.c.l.b16 %v952
    %v2853 = vunpack.c.l.b16 %v953
    %v2854 = vunpack.c.h.b16 %v953
    %v2855 = vunpack.c.l.b16 %v954
    %v2856 = vunpack.c.l.b16 %v955
    %v2857 = vunpack.c.h.b16 %v955
    %v2858 = vunpack.c.l.b16 %v956
    %v2859 = vunpack.c.l.b16 %v957
    %v2860 = vunpack.c.h.b16 %v957
    %v2861 = vunpack.c.l.b16 %v958
    %v2862 = vunpack.c.l.b16 %v959
    %v2863 = vunpack.c.h.b16 %v959
    %v2864 = vunpack.c.l.b16 %v960
    %v2865 = vunpack.c.l.b16 %v961
    %v2866 = vunpack.c.h.b16 %v961
    %v2867 = vunpack.c.l.b16 %v962
    %v2868 = vunpack.c.l.b16 %v963
    %v2869 = vunpack.c.h.b16 %v963
    %v2870 = vunpack.c.l.b16 %v964
    %v2871 = vunpack.c.l.b16 %v965
    %v2872 = vunpack.c.h.b16 %v965
    %v2873 = vunpack.c.l.b16 %v966
    %v2874 = vunpack.c.l.b16 %v967
    %v2875 = vunpack.c.h.b16 %v967
    %v2876 = vunpack.c.l.b16 %v968
    %v2877 = vunpack.c.l.b16 %v969
    %v2878 = vunpack.c.h.b16 %v969
    %v2879 = vunpack.c.l.b16 %v970
    %v2880 = vunpack.c.l.b16 %v971
    %v2881 = vunpack.c.h.b16 %v971
    %v2882 = vunpack.c.l.b16 %v972
    %v2883 = vunpack.c.l.b16 %v973
    %v2884 = vunpack.c.h.b16 %v973
    %v2885 = vunpack.c.l.b16 %v974
    %v2886 = vunpack.c.l.b16 %v975
    %v2887 = vunpack.c.h.b16 %v975
    %v2888 = vunpack.c.l.b16 %v976
    %v2889 = vunpack.c.l.b16 %v977
    %v2890 = vunpack.c.h.b16 %v977
    %v2891 = vunpack.c.l.b16 %v978
    %v2892 = vunpack.c.l.b16 %v979
    %v2893 = vunpack.c.h.b16 %v979
    %v2894 = vunpack.c.l.b16 %v980
    %v2895 = vunpack.c.l.b16 %v981
    %v2896 = vunpack.c.h.b16 %v981
    %v2897 = vunpack.c.l.b16 %v982
    %v2898 = vunpack.c.l.b16 %v983
    %v2899 = vunpack.c.h.b16 %v983
    %v2900 = vunpack.c.l.b16 %v984
    %v2901 = vunpack.c.l.b16 %v985
    %v2902 = vunpack.c.h.b16 %v985
    %v2903 = vunpack.c.l.b16 %v986
    %v2904 = vunpack.c.l.b16 %v987
    %v2905 = vunpack.c.h.b16 %v987
    %v2906 = vunpack.c.l.b16 %v988
    %v2907 = vunpack.c.l.b16 %v989
    %v2908 = vunpack.c.h.b16 %v989
    %v2909 = vunpack.c.l.b16 %v990
    %v2910 = vunpack.c.l.b16 %v991
    %v2911 = vunpack.c.h.b16 %v991
    %v2912 = vunpack.c.l.b16 %v992
    %v2913 = vunpack.c.l.b16 %v993
    %v2914 = vunpack.c.h.b16 %v993
    %v2915 = vunpack.c.l.b16 %v994
    %v2916 = vunpack.c.l.b16 %v995
    %v2917 = vunpack.c.h.b16 %v995
    %v2918 = vunpack.c.l.b16 %v996
    %v2919 = vunpack.c.l.b16 %v997
    %v2920 = vunpack.c.h.b16 %v997
    %v2921 = vunpack.c.l.b16 %v998
    %v2922 = vunpack.c.l.b16 %v999
    %v2923 = vunpack.c.h.b16 %v999
    %v2924 = vunpack.c.l.b16 %v1000
    %v2925 = vunpack.c.l.b16 %v1001
    %v2926 = vunpack.c.h.b16 %v1001
    %v2927 = vunpack.c.l.b16 %v1002
    %v2928 = vunpack.c.l.b16 %v1003
    %v2929 = vunpack.c.h.b16 %v1003
    %v2930 = vunpack.c.l.b16 %v1004
    %v2931 = vunpack.c.l.b16 %v1005
    %v2932 = vunpack.c.h.b16 %v1005
    %v2933 = vunpack.c.l.b16 %v1006
    %v2934 = vunpack.c.l.b16 %v1007
    %v2935 = vunpack.c.h.b16 %v1007
    %v2936 = vunpack.c.l.b16 %v1008
    %v2937 = vunpack.c.l.b16 %v1009
    %v2938 = vunpack.c.h.b16 %v1009
    %v2939 = vunpack.c.l.b16 %v1010
    %v2940 = vunpack.c.l.b16 %v1011
    %v2941 = vunpack.c.h.b16 %v1011
    %v2942 = vunpack.c.l.b16 %v1012
    %v2943 = vunpack.c.l.b16 %v1013
    %v2944 = vunpack.c.h.b16 %v1013
    %v2945 = vunpack.c.l.b16 %v1014
    %v2946 = vunpack.c.l.b16 %v1015
    %v2947 = vunpack.c.h.b16 %v1015
    %v2948 = vunpack.c.l.b16 %v1016
    %v2949 = vunpack.c.l.b16 %v1017
    %v2950 = vunpack.c.h.b16 %v1017
    %v2951 = vunpack.c.l.b16 %v1018
    %v2952 = vunpack.c.l.b16 %v1019
    %v2953 = vunpack.c.h.b16 %v1019
    %v2954 = vunpack.c.l.b16 %v1020
    %v2955 = vunpack.c.l.b16 %v1021
    %v2956 = vunpack.c.h.b16 %v1021
    %v2957 = vunpack.c.l.b16 %v1022
    %v2958 = vunpack.c.l.b16 %v1023
    %v2959 = vunpack.c.h.b16 %v1023
    %v2960 = vunpack.c.l.b16 %v1024
    %v2961 = vunpack.c.l.b16 %v1025
    %v2962 = vunpack.c.h.b16 %v1025
    %v2963 = vunpack.c.l.b16 %v1026
    %v2964 = vunpack.c.l.b16 %v1027
    %v2965 = vunpack.c.h.b16 %v1027
    %v2966 = vunpack.c.l.b16 %v1028
    %v2967 = vunpack.c.l.b16 %v1029
    %v2968 = vunpack.c.h.b16 %v1029
    %v2969 = vunpack.c.l.b16 %v1030
    %v2970 = vunpack.c.l.b16 %v1031
    %v2971 = vunpack.c.h.b16 %v1031
    %v2972 = vunpack.c.l.b16 %v1032
    %v2973 = vunpack.c.l.b16 %v1033
    %v2974 = vunpack.c.h.b16 %v1033
    %v2975 = vunpack.c.l.b16 %v1034
    %v2976 = vunpack.c.l.b16 %v1035
    %v2977 = vunpack.c.h.b16 %v1035
    %v2978 = vunpack.c.l.b16 %v1036
    %v2979 = vpack.c.b16 %v2790, %v2787
    %v2980 = vpack.c.b16 %v2791, %v2788
    %v2981 = vpack.c.b16 %v2792, %v2789
    %v2982 = vpack.c.b16 %v2796, %v2793
    %v2983 = vpack.c.b16 %v2797, %v2794
    %v2984 = vpack.c.b16 %v2798, %v2795
    %v2985 = vpack.c.b16 %v2802, %v2799
    %v2986 = vpack.c.b16 %v2803, %v2800
    %v2987 = vpack.c.b16 %v2804, %v2801
    %v2988 = vpack.c.b16 %v2808, %v2805
    %v2989 = vpack.c.b16 %v2809, %v2806
    %v2990 = vpack.c.b16 %v2810, %v2807
    %v2991 = vpack.c.b16 %v2814, %v2811
    %v2992 = vpack.c.b16 %v2815, %v2812
    %v2993 = vpack.c.b16 %v2816, %v2813
    %v2994 = vpack.c.b16 %v2820, %v2817
    %v2995 = vpack.c.b16 %v2821, %v2818
    %v2996 = vpack.c.b16 %v2822, %v2819
    %v2997 = vpack.c.b16 %v2826, %v2823
    %v2998 = vpack.c.b16 %v2827, %v2824
    %v2999 = vpack.c.b16 %v2828, %v2825
    %v3000 = vpack.c.b16 %v2832, %v2829
    %v3001 = vpack.c.b16 %v2833, %v2830
    %v3002 = vpack.c.b16 %v2834, %v2831
    %v3003 = vpack.c.b16 %v2838, %v2835
    %v3004 = vpack.c.b16 %v2839, %v2836
    %v3005 = vpack.c.b16 %v2840, %v2837
    %v3006 = vpack.c.b16 %v2844, %v2841
    %v3007 = vpack.c.b16 %v2845, %v2842
    %v3008 = vpack.c.b16 %v2846, %v2843
    %v3009 = vpack.c.b16 %v2850, %v2847
    %v3010 = vpack.c.b16 %v2851, %v2848
    %v3011 = vpack.c.b16 %v2852, %v2849
    %v3012 = vpack.c.b16 %v2856, %v2853
    %v3013 = vpack.c.b16 %v2857, %v2854
    %v3014 = vpack.c.b16 %v2858, %v2855
    %v3015 = vpack.c.b16 %v2862, %v2859
    %v3016 = vpack.c.b16 %v2863, %v2860
    %v3017 = vpack.c.b16 %v2864, %v2861
    %v3018 = vpack.c.b16 %v2868, %v2865
    %v3019 = vpack.c.b16 %v2869, %v2866
    %v3020 = vpack.c.b16 %v2870, %v2867
    %v3021 = vpack.c.b16 %v2874, %v2871
    %v3022 = vpack.c.b16 %v2875, %v2872
    %v3023 = vpack.c.b16 %v2876, %v2873
    %v3024 = vpack.c.b16 %v2880, %v2877
    %v3025 = vpack.c.b16 %v2881, %v2878
    %v3026 = vpack.c.b16 %v2882, %v2879
    %v3027 = vpack.c.b16 %v2886, %v2883
    %v3028 = vpack.c.b16 %v2887, %v2884
    %v3029 = vpack.c.b16 %v2888, %v2885
    %v3030 = vpack.c.b16 %v2892, %v2889
    %v3031 = vpack.c.b16 %v2893, %v2890
    %v3032 = vpack.c.b16 %v2894, %v2891
    %v3033 = vpack.c.b16 %v2898, %v2895
    %v3034 = vpack.c.b16 %v2899, %v2896
    %v3035 = vpack.c.b16 %v2900, %v2897
    %v3036 = vpack.c.b16 %v2904, %v2901
    %v3037 = vpack.c.b16 %v2905, %v2902
    %v3038 = vpack.c.b16 %v2906, %v2903
    %v3039 = vpack.c.b16 %v2910, %v2907
    %v3040 = vpack.c.b16 %v2911, %v2908
    %v3041 = vpack.c.b16 %v2912, %v2909
    %v3042 = vpack.c.b16 %v2916, %v2913
    %v3043 = vpack.c.b16 %v2917, %v2914
    %v3044 = vpack.c.b16 %v2918, %v2915
    %v3045 = vpack.c.b16 %v2922, %v2919
    %v3046 = vpack.c.b16 %v2923, %v2920
    %v3047 = vpack.c.b16 %v2924, %v2921
    %v3048 = vpack.c.b16 %v2928, %v2925
    %v3049 = vpack.c.b16 %v2929, %v2926
    %v3050 = vpack.c.b16 %v2930, %v2927
    %v3051 = vpack.c.b16 %v2934, %v2931
    %v3052 = vpack.c.b16 %v2935, %v2932
    %v3053 = vpack.c.b16 %v2936, %v2933
    %v3054 = vpack.c.b16 %v2940, %v2937
    %v3055 = vpack.c.b16 %v2941, %v2938
    %v3056 = vpack.c.b16 %v2942, %v2939
    %v3057 = vpack.c.b16 %v2946, %v2943
    %v3058 = vpack.c.b16 %v2947, %v2944
    %v3059 = vpack.c.b16 %v2948, %v2945
    %v3060 = vpack.c.b16 %v2952, %v2949
    %v3061 = vpack.c.b16 %v2953, %v2950
    %v3062 = vpack.c.b16 %v2954, %v2951
    %v3063 = vpack.c.b16 %v2958, %v2955
    %v3064 = vpack.c.b16 %v2959, %v2956
    %v3065 = vpack.c.b16 %v2960, %v2957
    %v3066 = vpack.c.b16 %v2964, %v2961
    %v3067 = vpack.c.b16 %v2965, %v2962
    %v3068 = vpack.c.b16 %v2966, %v2963
    %v3069 = vpack.c.b16 %v2970, %v2967
    %v3070 = vpack.c.b16 %v2971, %v2968
    %v3071 = vpack.c.b16 %v2972, %v2969
    %v3072 = vpack.c.b16 %v2976, %v2973
    %v3073 = vpack.c.b16 %v2977, %v2974
    %v3074 = vpack.c.b16 %v2978, %v2975
    %3171 = vmatprep.subr.bf16.mxu0 %v2980
    %3172 = vmatpush1.bf16.msra.mxu0 %v2979
    %3173 = vmatprep.subr.bf16.mxu0 %v2983
    %3174 = vmatpush1.bf16.msra.mxu0 %v2982
    %3175 = vmatprep.subr.bf16.mxu0 %v2986
    %3176 = vmatpush1.bf16.msra.mxu0 %v2985
    %3177 = vmatprep.subr.bf16.mxu0 %v2989
    %3178 = vmatpush1.bf16.msra.mxu0 %v2988
    %3179 = vmatprep.subr.bf16.mxu0 %v2992
    %3180 = vmatpush1.bf16.msra.mxu0 %v2991
    %3181 = vmatprep.subr.bf16.mxu0 %v2995
    %3182 = vmatpush1.bf16.msra.mxu0 %v2994
    %3183 = vmatprep.subr.bf16.mxu0 %v2998
    %3184 = vmatpush1.bf16.msra.mxu0 %v2997
    %3185 = vmatprep.subr.bf16.mxu0 %v3001
    %3186 = vmatpush1.bf16.msra.mxu0 %v3000
    %3187 = vmatprep.subr.bf16.mxu0 %v3004
    %3188 = vmatpush1.bf16.msra.mxu0 %v3003
    %3189 = vmatprep.subr.bf16.mxu0 %v3007
    %3190 = vmatpush1.bf16.msra.mxu0 %v3006
    %3191 = vmatprep.subr.bf16.mxu0 %v3010
    %3192 = vmatpush1.bf16.msra.mxu0 %v3009
    %3193 = vmatprep.subr.bf16.mxu0 %v3013
    %3194 = vmatpush1.bf16.msra.mxu0 %v3012
    %3195 = vmatprep.subr.bf16.mxu0 %v3016
    %3196 = vmatpush1.bf16.msra.mxu0 %v3015
    %3197 = vmatprep.subr.bf16.mxu0 %v3019
    %3198 = vmatpush1.bf16.msra.mxu0 %v3018
    %3199 = vmatprep.subr.bf16.mxu0 %v3022
    %3200 = vmatpush1.bf16.msra.mxu0 %v3021
    %3201 = vmatprep.subr.bf16.mxu0 %v3025
    %3202 = vmatpush1.bf16.msra.mxu0 %v3024
    %3203 = vmatprep.mubr.bf16.mxu0 %v906
    %3204 = vmatmul.mubr.bf16.gmra.mrb[0].mxu0 %v905
    %v3205 = vpop.f32.mrb[0].mxu0
    %v3206 = vadd.f32 %v2569, %v3205
    %v3207 = vpop.f32.mrb[0].mxu0
    %v3208 = vadd.f32 %v2571, %v3207
    %v3209 = vpop.f32.mrb[0].mxu0
    %v3210 = vadd.f32 %v2573, %v3209
    %v3211 = vpop.f32.mrb[0].mxu0
    %v3212 = vadd.f32 %v2575, %v3211
    %3213 = vdwg.mxu0
    %3214 = vmatprep.subr.bf16.mxu0 %v3028
    %3215 = vmatpush1.bf16.msra.mxu0 %v3027
    %3216 = vmatprep.subr.bf16.mxu0 %v3031
    %3217 = vmatpush1.bf16.msra.mxu0 %v3030
    %3218 = vmatprep.subr.bf16.mxu0 %v3034
    %3219 = vmatpush1.bf16.msra.mxu0 %v3033
    %3220 = vmatprep.subr.bf16.mxu0 %v3037
    %3221 = vmatpush1.bf16.msra.mxu0 %v3036
    %3222 = vmatprep.subr.bf16.mxu0 %v3040
    %3223 = vmatpush1.bf16.msra.mxu0 %v3039
    %3224 = vmatprep.subr.bf16.mxu0 %v3043
    %3225 = vmatpush1.bf16.msra.mxu0 %v3042
    %3226 = vmatprep.subr.bf16.mxu0 %v3046
    %3227 = vmatpush1.bf16.msra.mxu0 %v3045
    %3228 = vmatprep.subr.bf16.mxu0 %v3049
    %3229 = vmatpush1.bf16.msra.mxu0 %v3048
    %3230 = vmatprep.subr.bf16.mxu0 %v3052
    %3231 = vmatpush1.bf16.msra.mxu0 %v3051
    %3232 = vmatprep.subr.bf16.mxu0 %v3055
    %3233 = vmatpush1.bf16.msra.mxu0 %v3054
    %3234 = vmatprep.subr.bf16.mxu0 %v3058
    %3235 = vmatpush1.bf16.msra.mxu0 %v3057
    %3236 = vmatprep.subr.bf16.mxu0 %v3061
    %3237 = vmatpush1.bf16.msra.mxu0 %v3060
    %3238 = vmatprep.subr.bf16.mxu0 %v3064
    %3239 = vmatpush1.bf16.msra.mxu0 %v3063
    %3240 = vmatprep.subr.bf16.mxu0 %v3067
    %3241 = vmatpush1.bf16.msra.mxu0 %v3066
    %3242 = vmatprep.subr.bf16.mxu0 %v3070
    %3243 = vmatpush1.bf16.msra.mxu0 %v3069
    %3244 = vmatprep.subr.bf16.mxu0 %v3073
    %3245 = vmatpush1.bf16.msra.mxu0 %v3072
    %3246 = vmatprep.mubr.bf16.mxu0 %v908
    %3247 = vmatmul.mubr.bf16.gmra.mrb[0].mxu0 %v907
    %v3248 = vpop.f32.mrb[0].mxu0
    %v3249 = vadd.f32 %v3206, %v3248
    %v3250 = vpop.f32.mrb[0].mxu0
    %v3251 = vadd.f32 %v3208, %v3250
    %v3252 = vpop.f32.mrb[0].mxu0
    %v3253 = vadd.f32 %v3210, %v3252
    %v3254 = vpop.f32.mrb[0].mxu0
    %v3255 = vadd.f32 %v3212, %v3254
    %3256 = vdwg.mxu0
    %3257 = vmatprep.subr.bf16.mxu0 0
    %3258 = vmatpush1.bf16.msra.mxu0 %v2981
    %3259 = vmatprep.subr.bf16.mxu0 0
    %3260 = vmatpush1.bf16.msra.mxu0 %v2984
    %3261 = vmatprep.subr.bf16.mxu0 0
    %3262 = vmatpush1.bf16.msra.mxu0 %v2987
    %3263 = vmatprep.subr.bf16.mxu0 0
    %3264 = vmatpush1.bf16.msra.mxu0 %v2990
    %3265 = vmatprep.subr.bf16.mxu0 0
    %3266 = vmatpush1.bf16.msra.mxu0 %v2993
    %3267 = vmatprep.subr.bf16.mxu0 0
    %3268 = vmatpush1.bf16.msra.mxu0 %v2996
    %3269 = vmatprep.subr.bf16.mxu0 0
    %3270 = vmatpush1.bf16.msra.mxu0 %v2999
    %3271 = vmatprep.subr.bf16.mxu0 0
    %3272 = vmatpush1.bf16.msra.mxu0 %v3002
    %3273 = vmatprep.subr.bf16.mxu0 0
    %3274 = vmatpush1.bf16.msra.mxu0 %v3005
    %3275 = vmatprep.subr.bf16.mxu0 0
    %3276 = vmatpush1.bf16.msra.mxu0 %v3008
    %3277 = vmatprep.subr.bf16.mxu0 0
    %3278 = vmatpush1.bf16.msra.mxu0 %v3011
    %3279 = vmatprep.subr.bf16.mxu0 0
    %3280 = vmatpush1.bf16.msra.mxu0 %v3014
    %3281 = vmatprep.subr.bf16.mxu0 0
    %3282 = vmatpush1.bf16.msra.mxu0 %v3017
    %3283 = vmatprep.subr.bf16.mxu0 0
    %3284 = vmatpush1.bf16.msra.mxu0 %v3020
    %3285 = vmatprep.subr.bf16.mxu0 0
    %3286 = vmatpush1.bf16.msra.mxu0 %v3023
    %3287 = vmatprep.subr.bf16.mxu0 0
    %3288 = vmatpush1.bf16.msra.mxu0 %v3026
    %3289 = vmatprep.mubr.bf16.mxu0 %v906
    %3290 = vmatmul.mubr.bf16.gmra.mrb[0].mxu0 %v905
    %v3291 = vpop.f32.mrb[0].mxu0
    %v3292 = vadd.f32 %v2653, %v3291
    %v3293 = vpop.f32.mrb[0].mxu0
    %v3294 = vpop.f32.mrb[0].mxu0
    %v3295 = vadd.f32 %v2656, %v3294
    %v3296 = vpop.f32.mrb[0].mxu0
    %3297 = vdwg.mxu0
    %3298 = vmatprep.subr.bf16.mxu0 0
    %3299 = vmatpush1.bf16.msra.mxu0 %v3029
    %3300 = vmatprep.subr.bf16.mxu0 0
    %3301 = vmatpush1.bf16.msra.mxu0 %v3032
    %3302 = vmatprep.subr.bf16.mxu0 0
    %3303 = vmatpush1.bf16.msra.mxu0 %v3035
    %3304 = vmatprep.subr.bf16.mxu0 0
    %3305 = vmatpush1.bf16.msra.mxu0 %v3038
    %3306 = vmatprep.subr.bf16.mxu0 0
    %3307 = vmatpush1.bf16.msra.mxu0 %v3041
    %3308 = vmatprep.subr.bf16.mxu0 0
    %3309 = vmatpush1.bf16.msra.mxu0 %v3044
    %3310 = vmatprep.subr.bf16.mxu0 0
    %3311 = vmatpush1.bf16.msra.mxu0 %v3047
    %3312 = vmatprep.subr.bf16.mxu0 0
    %3313 = vmatpush1.bf16.msra.mxu0 %v3050
    %3314 = vmatprep.subr.bf16.mxu0 0
    %3315 = vmatpush1.bf16.msra.mxu0 %v3053
    %3316 = vmatprep.subr.bf16.mxu0 0
    %3317 = vmatpush1.bf16.msra.mxu0 %v3056
    %3318 = vmatprep.subr.bf16.mxu0 0
    %3319 = vmatpush1.bf16.msra.mxu0 %v3059
    %3320 = vmatprep.subr.bf16.mxu0 0
    %3321 = vmatpush1.bf16.msra.mxu0 %v3062
    %3322 = vmatprep.subr.bf16.mxu0 0
    %3323 = vmatpush1.bf16.msra.mxu0 %v3065
    %3324 = vmatprep.subr.bf16.mxu0 0
    %3325 = vmatpush1.bf16.msra.mxu0 %v3068
    %3326 = vmatprep.subr.bf16.mxu0 0
    %3327 = vmatpush1.bf16.msra.mxu0 %v3071
    %3328 = vmatprep.subr.bf16.mxu0 0
    %3329 = vmatpush1.bf16.msra.mxu0 %v3074
    %3330 = vmatprep.mubr.bf16.mxu0 %v908
    %3331 = vmatmul.mubr.bf16.gmra.mrb[0].mxu0 %v907
    %v3332 = vpop.f32.mrb[0].mxu0
    %v3333 = vadd.f32 %v3292, %v3332
    %v3334 = vpop.f32.mrb[0].mxu0
    %v3335 = vpop.f32.mrb[0].mxu0
    %v3336 = vadd.f32 %v3295, %v3335
    %v3337 = vpop.f32.mrb[0].mxu0
    %3338 = vdwg.mxu0
    %v3339 = vld [vmem:[#allocation5 + $0x20] sm:$0xff]
    %v3340 = vld [vmem:[#allocation5 + $0x28] sm:$0xff]
    %v3341 = vld [vmem:[#allocation5 + $0x50] sm:$0xff]
    %v3342 = vld [vmem:[#allocation5 + $0x58] sm:$0xff]
    %v3343 = vld [vmem:[#allocation5 + $0x80] sm:$0xff]
    %v3344 = vld [vmem:[#allocation5 + $0x88] sm:$0xff]
    %v3345 = vld [vmem:[#allocation5 + $0xb0] sm:$0xff]
    %v3346 = vld [vmem:[#allocation5 + $0xb8] sm:$0xff]
    %v3347 = vld [vmem:[#allocation5 + $0xe0] sm:$0xff]
    %v3348 = vld [vmem:[#allocation5 + $0xe8] sm:$0xff]
    %v3349 = vld [vmem:[#allocation5 + $0x110] sm:$0xff]
    %v3350 = vld [vmem:[#allocation5 + $0x118] sm:$0xff]
    %v3351 = vld [vmem:[#allocation5 + $0x140] sm:$0xff]
    %v3352 = vld [vmem:[#allocation5 + $0x148] sm:$0xff]
    %v3353 = vld [vmem:[#allocation5 + $0x170] sm:$0xff]
    %v3354 = vld [vmem:[#allocation5 + $0x178] sm:$0xff]
    %v3355 = vld [vmem:[#allocation5 + $0x1a0] sm:$0xff]
    %v3356 = vld [vmem:[#allocation5 + $0x1a8] sm:$0xff]
    %v3357 = vld [vmem:[#allocation5 + $0x1d0] sm:$0xff]
    %v3358 = vld [vmem:[#allocation5 + $0x1d8] sm:$0xff]
    %v3359 = vld [vmem:[#allocation5 + $0x200] sm:$0xff]
    %v3360 = vld [vmem:[#allocation5 + $0x208] sm:$0xff]
    %v3361 = vld [vmem:[#allocation5 + $0x230] sm:$0xff]
    %v3362 = vld [vmem:[#allocation5 + $0x238] sm:$0xff]
    %v3363 = vld [vmem:[#allocation5 + $0x260] sm:$0xff]
    %v3364 = vld [vmem:[#allocation5 + $0x268] sm:$0xff]
    %v3365 = vld [vmem:[#allocation5 + $0x290] sm:$0xff]
    %v3366 = vld [vmem:[#allocation5 + $0x298] sm:$0xff]
    %v3367 = vld [vmem:[#allocation5 + $0x2c0] sm:$0xff]
    %v3368 = vld [vmem:[#allocation5 + $0x2c8] sm:$0xff]
    %v3369 = vld [vmem:[#allocation5 + $0x2f0] sm:$0xff]
    %v3370 = vld [vmem:[#allocation5 + $0x2f8] sm:$0xff]
    %v3371 = vld [vmem:[#allocation5 + $0x320] sm:$0xff]
    %v3372 = vld [vmem:[#allocation5 + $0x328] sm:$0xff]
    %v3373 = vld [vmem:[#allocation5 + $0x350] sm:$0xff]
    %v3374 = vld [vmem:[#allocation5 + $0x358] sm:$0xff]
    %v3375 = vld [vmem:[#allocation5 + $0x380] sm:$0xff]
    %v3376 = vld [vmem:[#allocation5 + $0x388] sm:$0xff]
    %v3377 = vld [vmem:[#allocation5 + $0x3b0] sm:$0xff]
    %v3378 = vld [vmem:[#allocation5 + $0x3b8] sm:$0xff]
    %v3379 = vld [vmem:[#allocation5 + $0x3e0] sm:$0xff]
    %v3380 = vld [vmem:[#allocation5 + $0x3e8] sm:$0xff]
    %v3381 = vld [vmem:[#allocation5 + $0x410] sm:$0xff]
    %v3382 = vld [vmem:[#allocation5 + $0x418] sm:$0xff]
    %v3383 = vld [vmem:[#allocation5 + $0x440] sm:$0xff]
    %v3384 = vld [vmem:[#allocation5 + $0x448] sm:$0xff]
    %v3385 = vld [vmem:[#allocation5 + $0x470] sm:$0xff]
    %v3386 = vld [vmem:[#allocation5 + $0x478] sm:$0xff]
    %v3387 = vld [vmem:[#allocation5 + $0x4a0] sm:$0xff]
    %v3388 = vld [vmem:[#allocation5 + $0x4a8] sm:$0xff]
    %v3389 = vld [vmem:[#allocation5 + $0x4d0] sm:$0xff]
    %v3390 = vld [vmem:[#allocation5 + $0x4d8] sm:$0xff]
    %v3391 = vld [vmem:[#allocation5 + $0x500] sm:$0xff]
    %v3392 = vld [vmem:[#allocation5 + $0x508] sm:$0xff]
    %v3393 = vld [vmem:[#allocation5 + $0x530] sm:$0xff]
    %v3394 = vld [vmem:[#allocation5 + $0x538] sm:$0xff]
    %v3395 = vld [vmem:[#allocation5 + $0x560] sm:$0xff]
    %v3396 = vld [vmem:[#allocation5 + $0x568] sm:$0xff]
    %v3397 = vld [vmem:[#allocation5 + $0x590] sm:$0xff]
    %v3398 = vld [vmem:[#allocation5 + $0x598] sm:$0xff]
    %v3399 = vld [vmem:[#allocation5 + $0x5c0] sm:$0xff]
    %v3400 = vld [vmem:[#allocation5 + $0x5c8] sm:$0xff]
    %v3401 = vld [vmem:[#allocation5 + $0x5f0] sm:$0xff]
    %v3402 = vld [vmem:[#allocation5 + $0x5f8] sm:$0xff]
    %v3403 = vld [vmem:[#allocation5 + $0x620] sm:$0xff]
    %v3404 = vld [vmem:[#allocation5 + $0x628] sm:$0xff]
    %v3405 = vld [vmem:[#allocation5 + $0x650] sm:$0xff]
    %v3406 = vld [vmem:[#allocation5 + $0x658] sm:$0xff]
    %v3407 = vld [vmem:[#allocation5 + $0x680] sm:$0xff]
    %v3408 = vld [vmem:[#allocation5 + $0x688] sm:$0xff]
    %v3409 = vld [vmem:[#allocation5 + $0x6b0] sm:$0xff]
    %v3410 = vld [vmem:[#allocation5 + $0x6b8] sm:$0xff]
    %v3411 = vld [vmem:[#allocation5 + $0x6e0] sm:$0xff]
    %v3412 = vld [vmem:[#allocation5 + $0x6e8] sm:$0xff]
    %v3413 = vld [vmem:[#allocation5 + $0x710] sm:$0xff]
    %v3414 = vld [vmem:[#allocation5 + $0x718] sm:$0xff]
    %v3415 = vld [vmem:[#allocation5 + $0x740] sm:$0xff]
    %v3416 = vld [vmem:[#allocation5 + $0x748] sm:$0xff]
    %v3417 = vld [vmem:[#allocation5 + $0x770] sm:$0xff]
    %v3418 = vld [vmem:[#allocation5 + $0x778] sm:$0xff]
    %v3419 = vld [vmem:[#allocation5 + $0x7a0] sm:$0xff]
    %v3420 = vld [vmem:[#allocation5 + $0x7a8] sm:$0xff]
    %v3421 = vld [vmem:[#allocation5 + $0x7d0] sm:$0xff]
    %v3422 = vld [vmem:[#allocation5 + $0x7d8] sm:$0xff]
    %v3423 = vld [vmem:[#allocation5 + $0x800] sm:$0xff]
    %v3424 = vld [vmem:[#allocation5 + $0x808] sm:$0xff]
    %v3425 = vld [vmem:[#allocation5 + $0x830] sm:$0xff]
    %v3426 = vld [vmem:[#allocation5 + $0x838] sm:$0xff]
    %v3427 = vld [vmem:[#allocation5 + $0x860] sm:$0xff]
    %v3428 = vld [vmem:[#allocation5 + $0x868] sm:$0xff]
    %v3429 = vld [vmem:[#allocation5 + $0x890] sm:$0xff]
    %v3430 = vld [vmem:[#allocation5 + $0x898] sm:$0xff]
    %v3431 = vld [vmem:[#allocation5 + $0x8c0] sm:$0xff]
    %v3432 = vld [vmem:[#allocation5 + $0x8c8] sm:$0xff]
    %v3433 = vld [vmem:[#allocation5 + $0x8f0] sm:$0xff]
    %v3434 = vld [vmem:[#allocation5 + $0x8f8] sm:$0xff]
    %v3435 = vld [vmem:[#allocation7 + $0x8] sm:$0xf]
    %v3437 = vlaneseq
    %v3438 = vshrl.u32 %v3437, 7
    %v3439 = vsub.s32 0, %v3438
    %v3440 = vrot.slane %v3435, %v3439
    %v3441 = vlaneseq
    %v3442 = vshrl.u32 %v3441, 7
    %v3443 = vsub.s32 1, %v3442
    %v3444 = vrot.slane %v3435, %v3443
    %v3445 = vlaneseq
    %v3446 = vshrl.u32 %v3445, 7
    %v3447 = vsub.s32 2, %v3446
    %v3448 = vrot.slane %v3435, %v3447
    %v3449 = vlaneseq
    %v3450 = vshrl.u32 %v3449, 7
    %v3451 = vsub.s32 3, %v3450
    %v3452 = vrot.slane %v3435, %v3451
    %v3553 = vunpack.c.l.b16 %v3339
    %v3554 = vunpack.c.h.b16 %v3339
    %v3555 = vunpack.c.l.b16 %v3340
    %v3556 = vunpack.c.h.b16 %v3340
    %v3557 = vunpack.c.l.b16 %v3341
    %v3558 = vunpack.c.h.b16 %v3341
    %v3559 = vunpack.c.l.b16 %v3342
    %v3560 = vunpack.c.h.b16 %v3342
    %v3561 = vunpack.c.l.b16 %v3343
    %v3562 = vunpack.c.h.b16 %v3343
    %v3563 = vunpack.c.l.b16 %v3344
    %v3564 = vunpack.c.h.b16 %v3344
    %v3565 = vunpack.c.l.b16 %v3345
    %v3566 = vunpack.c.h.b16 %v3345
    %v3567 = vunpack.c.l.b16 %v3346
    %v3568 = vunpack.c.h.b16 %v3346
    %v3569 = vunpack.c.l.b16 %v3347
    %v3570 = vunpack.c.h.b16 %v3347
    %v3571 = vunpack.c.l.b16 %v3348
    %v3572 = vunpack.c.h.b16 %v3348
    %v3573 = vunpack.c.l.b16 %v3349
    %v3574 = vunpack.c.h.b16 %v3349
    %v3575 = vunpack.c.l.b16 %v3350
    %v3576 = vunpack.c.h.b16 %v3350
    %v3577 = vunpack.c.l.b16 %v3351
    %v3578 = vunpack.c.h.b16 %v3351
    %v3579 = vunpack.c.l.b16 %v3352
    %v3580 = vunpack.c.h.b16 %v3352
    %v3581 = vunpack.c.l.b16 %v3353
    %v3582 = vunpack.c.h.b16 %v3353
    %v3583 = vunpack.c.l.b16 %v3354
    %v3584 = vunpack.c.h.b16 %v3354
    %v3585 = vunpack.c.l.b16 %v3355
    %v3586 = vunpack.c.h.b16 %v3355
    %v3587 = vunpack.c.l.b16 %v3356
    %v3588 = vunpack.c.h.b16 %v3356
    %v3589 = vunpack.c.l.b16 %v3357
    %v3590 = vunpack.c.h.b16 %v3357
    %v3591 = vunpack.c.l.b16 %v3358
    %v3592 = vunpack.c.h.b16 %v3358
    %v3593 = vunpack.c.l.b16 %v3359
    %v3594 = vunpack.c.h.b16 %v3359
    %v3595 = vunpack.c.l.b16 %v3360
    %v3596 = vunpack.c.h.b16 %v3360
    %v3597 = vunpack.c.l.b16 %v3361
    %v3598 = vunpack.c.h.b16 %v3361
    %v3599 = vunpack.c.l.b16 %v3362
    %v3600 = vunpack.c.h.b16 %v3362
    %v3601 = vunpack.c.l.b16 %v3363
    %v3602 = vunpack.c.h.b16 %v3363
    %v3603 = vunpack.c.l.b16 %v3364
    %v3604 = vunpack.c.h.b16 %v3364
    %v3605 = vunpack.c.l.b16 %v3365
    %v3606 = vunpack.c.h.b16 %v3365
    %v3607 = vunpack.c.l.b16 %v3366
    %v3608 = vunpack.c.h.b16 %v3366
    %v3609 = vunpack.c.l.b16 %v3367
    %v3610 = vunpack.c.h.b16 %v3367
    %v3611 = vunpack.c.l.b16 %v3368
    %v3612 = vunpack.c.h.b16 %v3368
    %v3613 = vunpack.c.l.b16 %v3369
    %v3614 = vunpack.c.h.b16 %v3369
    %v3615 = vunpack.c.l.b16 %v3370
    %v3616 = vunpack.c.h.b16 %v3370
    %v3617 = vunpack.c.l.b16 %v3371
    %v3618 = vunpack.c.h.b16 %v3371
    %v3619 = vunpack.c.l.b16 %v3372
    %v3620 = vunpack.c.h.b16 %v3372
    %v3621 = vunpack.c.l.b16 %v3373
    %v3622 = vunpack.c.h.b16 %v3373
    %v3623 = vunpack.c.l.b16 %v3374
    %v3624 = vunpack.c.h.b16 %v3374
    %v3625 = vunpack.c.l.b16 %v3375
    %v3626 = vunpack.c.h.b16 %v3375
    %v3627 = vunpack.c.l.b16 %v3376
    %v3628 = vunpack.c.h.b16 %v3376
    %v3629 = vunpack.c.l.b16 %v3377
    %v3630 = vunpack.c.h.b16 %v3377
    %v3631 = vunpack.c.l.b16 %v3378
    %v3632 = vunpack.c.h.b16 %v3378
    %v3633 = vunpack.c.l.b16 %v3379
    %v3634 = vunpack.c.h.b16 %v3379
    %v3635 = vunpack.c.l.b16 %v3380
    %v3636 = vunpack.c.h.b16 %v3380
    %v3637 = vunpack.c.l.b16 %v3381
    %v3638 = vunpack.c.h.b16 %v3381
    %v3639 = vunpack.c.l.b16 %v3382
    %v3640 = vunpack.c.h.b16 %v3382
    %v3641 = vunpack.c.l.b16 %v3383
    %v3642 = vunpack.c.h.b16 %v3383
    %v3643 = vunpack.c.l.b16 %v3384
    %v3644 = vunpack.c.h.b16 %v3384
    %v3645 = vunpack.c.l.b16 %v3385
    %v3646 = vunpack.c.h.b16 %v3385
    %v3647 = vunpack.c.l.b16 %v3386
    %v3648 = vunpack.c.h.b16 %v3386
    %v3649 = vunpack.c.l.b16 %v3387
    %v3650 = vunpack.c.h.b16 %v3387
    %v3651 = vunpack.c.l.b16 %v3388
    %v3652 = vunpack.c.h.b16 %v3388
    %v3653 = vunpack.c.l.b16 %v3389
    %v3654 = vunpack.c.h.b16 %v3389
    %v3655 = vunpack.c.l.b16 %v3390
    %v3656 = vunpack.c.h.b16 %v3390
    %v3657 = vunpack.c.l.b16 %v3391
    %v3658 = vunpack.c.h.b16 %v3391
    %v3659 = vunpack.c.l.b16 %v3392
    %v3660 = vunpack.c.h.b16 %v3392
    %v3661 = vunpack.c.l.b16 %v3393
    %v3662 = vunpack.c.h.b16 %v3393
    %v3663 = vunpack.c.l.b16 %v3394
    %v3664 = vunpack.c.h.b16 %v3394
    %v3665 = vunpack.c.l.b16 %v3395
    %v3666 = vunpack.c.h.b16 %v3395
    %v3667 = vunpack.c.l.b16 %v3396
    %v3668 = vunpack.c.h.b16 %v3396
    %v3669 = vunpack.c.l.b16 %v3397
    %v3670 = vunpack.c.h.b16 %v3397
    %v3671 = vunpack.c.l.b16 %v3398
    %v3672 = vunpack.c.h.b16 %v3398
    %v3673 = vunpack.c.l.b16 %v3399
    %v3674 = vunpack.c.h.b16 %v3399
    %v3675 = vunpack.c.l.b16 %v3400
    %v3676 = vunpack.c.h.b16 %v3400
    %v3677 = vunpack.c.l.b16 %v3401
    %v3678 = vunpack.c.h.b16 %v3401
    %v3679 = vunpack.c.l.b16 %v3402
    %v3680 = vunpack.c.h.b16 %v3402
    %v3681 = vunpack.c.l.b16 %v3403
    %v3682 = vunpack.c.h.b16 %v3403
    %v3683 = vunpack.c.l.b16 %v3404
    %v3684 = vunpack.c.h.b16 %v3404
    %v3685 = vunpack.c.l.b16 %v3405
    %v3686 = vunpack.c.h.b16 %v3405
    %v3687 = vunpack.c.l.b16 %v3406
    %v3688 = vunpack.c.h.b16 %v3406
    %v3689 = vunpack.c.l.b16 %v3407
    %v3690 = vunpack.c.h.b16 %v3407
    %v3691 = vunpack.c.l.b16 %v3408
    %v3692 = vunpack.c.h.b16 %v3408
    %v3693 = vunpack.c.l.b16 %v3409
    %v3694 = vunpack.c.h.b16 %v3409
    %v3695 = vunpack.c.l.b16 %v3410
    %v3696 = vunpack.c.h.b16 %v3410
    %v3697 = vunpack.c.l.b16 %v3411
    %v3698 = vunpack.c.h.b16 %v3411
    %v3699 = vunpack.c.l.b16 %v3412
    %v3700 = vunpack.c.h.b16 %v3412
    %v3701 = vunpack.c.l.b16 %v3413
    %v3702 = vunpack.c.h.b16 %v3413
    %v3703 = vunpack.c.l.b16 %v3414
    %v3704 = vunpack.c.h.b16 %v3414
    %v3705 = vunpack.c.l.b16 %v3415
    %v3706 = vunpack.c.h.b16 %v3415
    %v3707 = vunpack.c.l.b16 %v3416
    %v3708 = vunpack.c.h.b16 %v3416
    %v3709 = vunpack.c.l.b16 %v3417
    %v3710 = vunpack.c.h.b16 %v3417
    %v3711 = vunpack.c.l.b16 %v3418
    %v3712 = vunpack.c.h.b16 %v3418
    %v3713 = vunpack.c.l.b16 %v3419
    %v3714 = vunpack.c.h.b16 %v3419
    %v3715 = vunpack.c.l.b16 %v3420
    %v3716 = vunpack.c.h.b16 %v3420
    %v3717 = vunpack.c.l.b16 %v3421
    %v3718 = vunpack.c.h.b16 %v3421
    %v3719 = vunpack.c.l.b16 %v3422
    %v3720 = vunpack.c.h.b16 %v3422
    %v3721 = vunpack.c.l.b16 %v3423
    %v3722 = vunpack.c.h.b16 %v3423
    %v3723 = vunpack.c.l.b16 %v3424
    %v3724 = vunpack.c.h.b16 %v3424
    %v3725 = vunpack.c.l.b16 %v3425
    %v3726 = vunpack.c.h.b16 %v3425
    %v3727 = vunpack.c.l.b16 %v3426
    %v3728 = vunpack.c.h.b16 %v3426
    %v3729 = vunpack.c.l.b16 %v3427
    %v3730 = vunpack.c.h.b16 %v3427
    %v3731 = vunpack.c.l.b16 %v3428
    %v3732 = vunpack.c.h.b16 %v3428
    %v3733 = vunpack.c.l.b16 %v3429
    %v3734 = vunpack.c.h.b16 %v3429
    %v3735 = vunpack.c.l.b16 %v3430
    %v3736 = vunpack.c.h.b16 %v3430
    %v3737 = vunpack.c.l.b16 %v3431
    %v3738 = vunpack.c.h.b16 %v3431
    %v3739 = vunpack.c.l.b16 %v3432
    %v3740 = vunpack.c.h.b16 %v3432
    %v3741 = vunpack.c.l.b16 %v3433
    %v3742 = vunpack.c.h.b16 %v3433
    %v3743 = vunpack.c.l.b16 %v3434
    %v3744 = vunpack.c.h.b16 %v3434
    %v3745 = vpack.c.b16 %v3557, %v3553
    %v3746 = vpack.c.b16 %v3558, %v3554
    %v3747 = vpack.c.b16 %v3559, %v3555
    %v3748 = vpack.c.b16 %v3560, %v3556
    %v3749 = vpack.c.b16 %v3565, %v3561
    %v3750 = vpack.c.b16 %v3566, %v3562
    %v3751 = vpack.c.b16 %v3567, %v3563
    %v3752 = vpack.c.b16 %v3568, %v3564
    %v3753 = vpack.c.b16 %v3573, %v3569
    %v3754 = vpack.c.b16 %v3574, %v3570
    %v3755 = vpack.c.b16 %v3575, %v3571
    %v3756 = vpack.c.b16 %v3576, %v3572
    %v3757 = vpack.c.b16 %v3581, %v3577
    %v3758 = vpack.c.b16 %v3582, %v3578
    %v3759 = vpack.c.b16 %v3583, %v3579
    %v3760 = vpack.c.b16 %v3584, %v3580
    %v3761 = vpack.c.b16 %v3589, %v3585
    %v3762 = vpack.c.b16 %v3590, %v3586
    %v3763 = vpack.c.b16 %v3591, %v3587
    %v3764 = vpack.c.b16 %v3592, %v3588
    %v3765 = vpack.c.b16 %v3597, %v3593
    %v3766 = vpack.c.b16 %v3598, %v3594
    %v3767 = vpack.c.b16 %v3599, %v3595
    %v3768 = vpack.c.b16 %v3600, %v3596
    %v3769 = vpack.c.b16 %v3605, %v3601
    %v3770 = vpack.c.b16 %v3606, %v3602
    %v3771 = vpack.c.b16 %v3607, %v3603
    %v3772 = vpack.c.b16 %v3608, %v3604
    %v3773 = vpack.c.b16 %v3613, %v3609
    %v3774 = vpack.c.b16 %v3614, %v3610
    %v3775 = vpack.c.b16 %v3615, %v3611
    %v3776 = vpack.c.b16 %v3616, %v3612
    %v3777 = vpack.c.b16 %v3621, %v3617
    %v3778 = vpack.c.b16 %v3622, %v3618
    %v3779 = vpack.c.b16 %v3623, %v3619
    %v3780 = vpack.c.b16 %v3624, %v3620
    %v3781 = vpack.c.b16 %v3629, %v3625
    %v3782 = vpack.c.b16 %v3630, %v3626
    %v3783 = vpack.c.b16 %v3631, %v3627
    %v3784 = vpack.c.b16 %v3632, %v3628
    %v3785 = vpack.c.b16 %v3637, %v3633
    %v3786 = vpack.c.b16 %v3638, %v3634
    %v3787 = vpack.c.b16 %v3639, %v3635
    %v3788 = vpack.c.b16 %v3640, %v3636
    %v3789 = vpack.c.b16 %v3645, %v3641
    %v3790 = vpack.c.b16 %v3646, %v3642
    %v3791 = vpack.c.b16 %v3647, %v3643
    %v3792 = vpack.c.b16 %v3648, %v3644
    %v3793 = vpack.c.b16 %v3653, %v3649
    %v3794 = vpack.c.b16 %v3654, %v3650
    %v3795 = vpack.c.b16 %v3655, %v3651
    %v3796 = vpack.c.b16 %v3656, %v3652
    %v3797 = vpack.c.b16 %v3661, %v3657
    %v3798 = vpack.c.b16 %v3662, %v3658
    %v3799 = vpack.c.b16 %v3663, %v3659
    %v3800 = vpack.c.b16 %v3664, %v3660
    %v3801 = vpack.c.b16 %v3669, %v3665
    %v3802 = vpack.c.b16 %v3670, %v3666
    %v3803 = vpack.c.b16 %v3671, %v3667
    %v3804 = vpack.c.b16 %v3672, %v3668
    %v3805 = vpack.c.b16 %v3677, %v3673
    %v3806 = vpack.c.b16 %v3678, %v3674
    %v3807 = vpack.c.b16 %v3679, %v3675
    %v3808 = vpack.c.b16 %v3680, %v3676
    %v3809 = vpack.c.b16 %v3685, %v3681
    %v3810 = vpack.c.b16 %v3686, %v3682
    %v3811 = vpack.c.b16 %v3687, %v3683
    %v3812 = vpack.c.b16 %v3688, %v3684
    %v3813 = vpack.c.b16 %v3693, %v3689
    %v3814 = vpack.c.b16 %v3694, %v3690
    %v3815 = vpack.c.b16 %v3695, %v3691
    %v3816 = vpack.c.b16 %v3696, %v3692
    %v3817 = vpack.c.b16 %v3701, %v3697
    %v3818 = vpack.c.b16 %v3702, %v3698
    %v3819 = vpack.c.b16 %v3703, %v3699
    %v3820 = vpack.c.b16 %v3704, %v3700
    %v3821 = vpack.c.b16 %v3709, %v3705
    %v3822 = vpack.c.b16 %v3710, %v3706
    %v3823 = vpack.c.b16 %v3711, %v3707
    %v3824 = vpack.c.b16 %v3712, %v3708
    %v3825 = vpack.c.b16 %v3717, %v3713
    %v3826 = vpack.c.b16 %v3718, %v3714
    %v3827 = vpack.c.b16 %v3719, %v3715
    %v3828 = vpack.c.b16 %v3720, %v3716
    %v3829 = vpack.c.b16 %v3725, %v3721
    %v3830 = vpack.c.b16 %v3726, %v3722
    %v3831 = vpack.c.b16 %v3727, %v3723
    %v3832 = vpack.c.b16 %v3728, %v3724
    %v3833 = vpack.c.b16 %v3733, %v3729
    %v3834 = vpack.c.b16 %v3734, %v3730
    %v3835 = vpack.c.b16 %v3735, %v3731
    %v3836 = vpack.c.b16 %v3736, %v3732
    %v3837 = vpack.c.b16 %v3741, %v3737
    %v3838 = vpack.c.b16 %v3742, %v3738
    %v3839 = vpack.c.b16 %v3743, %v3739
    %v3840 = vpack.c.b16 %v3744, %v3740
    %3937 = vmatprep.subr.bf16.mxu0 %v3746
    %3938 = vmatpush1.bf16.msra.mxu0 %v3745
    %3939 = vmatprep.subr.bf16.mxu0 %v3750
    %3940 = vmatpush1.bf16.msra.mxu0 %v3749
    %3941 = vmatprep.subr.bf16.mxu0 %v3754
    %3942 = vmatpush1.bf16.msra.mxu0 %v3753
    %3943 = vmatprep.subr.bf16.mxu0 %v3758
    %3944 = vmatpush1.bf16.msra.mxu0 %v3757
    %3945 = vmatprep.subr.bf16.mxu0 %v3762
    %3946 = vmatpush1.bf16.msra.mxu0 %v3761
    %3947 = vmatprep.subr.bf16.mxu0 %v3766
    %3948 = vmatpush1.bf16.msra.mxu0 %v3765
    %3949 = vmatprep.subr.bf16.mxu0 %v3770
    %3950 = vmatpush1.bf16.msra.mxu0 %v3769
    %3951 = vmatprep.subr.bf16.mxu0 %v3774
    %3952 = vmatpush1.bf16.msra.mxu0 %v3773
    %3953 = vmatprep.subr.bf16.mxu0 %v3778
    %3954 = vmatpush1.bf16.msra.mxu0 %v3777
    %3955 = vmatprep.subr.bf16.mxu0 %v3782
    %3956 = vmatpush1.bf16.msra.mxu0 %v3781
    %3957 = vmatprep.subr.bf16.mxu0 %v3786
    %3958 = vmatpush1.bf16.msra.mxu0 %v3785
    %3959 = vmatprep.subr.bf16.mxu0 %v3790
    %3960 = vmatpush1.bf16.msra.mxu0 %v3789
    %3961 = vmatprep.subr.bf16.mxu0 %v3794
    %3962 = vmatpush1.bf16.msra.mxu0 %v3793
    %3963 = vmatprep.subr.bf16.mxu0 %v3798
    %3964 = vmatpush1.bf16.msra.mxu0 %v3797
    %3965 = vmatprep.subr.bf16.mxu0 %v3802
    %3966 = vmatpush1.bf16.msra.mxu0 %v3801
    %3967 = vmatprep.subr.bf16.mxu0 %v3806
    %3968 = vmatpush1.bf16.msra.mxu0 %v3805
    %3969 = vmatprep.mubr.bf16.mxu0 %v93
    %3970 = vmatmul.mubr.bf16.gmra.mrb[0].mxu0 %v92
    %v3971 = vpop.f32.mrb[0].mxu0
    %v3972 = vadd.f32 %v3440, %v3971
    %v3973 = vpop.f32.mrb[0].mxu0
    %v3974 = vadd.f32 %v3444, %v3973
    %v3975 = vpop.f32.mrb[0].mxu0
    %v3976 = vadd.f32 %v3440, %v3975
    %v3977 = vpop.f32.mrb[0].mxu0
    %v3978 = vadd.f32 %v3444, %v3977
    %3979 = vdwg.mxu0
    %3980 = vmatprep.subr.bf16.mxu0 %v3810
    %3981 = vmatpush1.bf16.msra.mxu0 %v3809
    %3982 = vmatprep.subr.bf16.mxu0 %v3814
    %3983 = vmatpush1.bf16.msra.mxu0 %v3813
    %3984 = vmatprep.subr.bf16.mxu0 %v3818
    %3985 = vmatpush1.bf16.msra.mxu0 %v3817
    %3986 = vmatprep.subr.bf16.mxu0 %v3822
    %3987 = vmatpush1.bf16.msra.mxu0 %v3821
    %3988 = vmatprep.subr.bf16.mxu0 %v3826
    %3989 = vmatpush1.bf16.msra.mxu0 %v3825
    %3990 = vmatprep.subr.bf16.mxu0 %v3830
    %3991 = vmatpush1.bf16.msra.mxu0 %v3829
    %3992 = vmatprep.subr.bf16.mxu0 %v3834
    %3993 = vmatpush1.bf16.msra.mxu0 %v3833
    %3994 = vmatprep.subr.bf16.mxu0 %v3838
    %3995 = vmatpush1.bf16.msra.mxu0 %v3837
    %3996 = vmatprep.subr.bf16.mxu0 0
    %3997 = vmatpush1.bf16.msra.mxu0 0
    %3998 = vmatprep.subr.bf16.mxu0 0
    %3999 = vmatpush1.bf16.msra.mxu0 0
    %4000 = vmatprep.subr.bf16.mxu0 0
    %4001 = vmatpush1.bf16.msra.mxu0 0
    %4002 = vmatprep.subr.bf16.mxu0 0
    %4003 = vmatpush1.bf16.msra.mxu0 0
    %4004 = vmatprep.subr.bf16.mxu0 0
    %4005 = vmatpush1.bf16.msra.mxu0 0
    %4006 = vmatprep.subr.bf16.mxu0 0
    %4007 = vmatpush1.bf16.msra.mxu0 0
    %4008 = vmatprep.subr.bf16.mxu0 0
    %4009 = vmatpush1.bf16.msra.mxu0 0
    %4010 = vmatprep.subr.bf16.mxu0 0
    %4011 = vmatpush1.bf16.msra.mxu0 0
    %4012 = vmatprep.mubr.bf16.mxu0 0
    %4013 = vmatmul.mubr.bf16.gmra.mrb[0].mxu0 %v94
    %v4014 = vpop.f32.mrb[0].mxu0
    %v4015 = vadd.f32 %v3972, %v4014
    %v4016 = vpop.f32.mrb[0].mxu0
    %v4017 = vadd.f32 %v3974, %v4016
    %v4018 = vpop.f32.mrb[0].mxu0
    %v4019 = vadd.f32 %v3976, %v4018
    %v4020 = vpop.f32.mrb[0].mxu0
    %v4021 = vadd.f32 %v3978, %v4020
    %4022 = vdwg.mxu0
    %4023 = vmatprep.subr.bf16.mxu0 %v3748
    %4024 = vmatpush1.bf16.msra.mxu0 %v3747
    %4025 = vmatprep.subr.bf16.mxu0 %v3752
    %4026 = vmatpush1.bf16.msra.mxu0 %v3751
    %4027 = vmatprep.subr.bf16.mxu0 %v3756
    %4028 = vmatpush1.bf16.msra.mxu0 %v3755
    %4029 = vmatprep.subr.bf16.mxu0 %v3760
    %4030 = vmatpush1.bf16.msra.mxu0 %v3759
    %4031 = vmatprep.subr.bf16.mxu0 %v3764
    %4032 = vmatpush1.bf16.msra.mxu0 %v3763
    %4033 = vmatprep.subr.bf16.mxu0 %v3768
    %4034 = vmatpush1.bf16.msra.mxu0 %v3767
    %4035 = vmatprep.subr.bf16.mxu0 %v3772
    %4036 = vmatpush1.bf16.msra.mxu0 %v3771
    %4037 = vmatprep.subr.bf16.mxu0 %v3776
    %4038 = vmatpush1.bf16.msra.mxu0 %v3775
    %4039 = vmatprep.subr.bf16.mxu0 %v3780
    %4040 = vmatpush1.bf16.msra.mxu0 %v3779
    %4041 = vmatprep.subr.bf16.mxu0 %v3784
    %4042 = vmatpush1.bf16.msra.mxu0 %v3783
    %4043 = vmatprep.subr.bf16.mxu0 %v3788
    %4044 = vmatpush1.bf16.msra.mxu0 %v3787
    %4045 = vmatprep.subr.bf16.mxu0 %v3792
    %4046 = vmatpush1.bf16.msra.mxu0 %v3791
    %4047 = vmatprep.subr.bf16.mxu0 %v3796
    %4048 = vmatpush1.bf16.msra.mxu0 %v3795
    %4049 = vmatprep.subr.bf16.mxu0 %v3800
    %4050 = vmatpush1.bf16.msra.mxu0 %v3799
    %4051 = vmatprep.subr.bf16.mxu0 %v3804
    %4052 = vmatpush1.bf16.msra.mxu0 %v3803
    %4053 = vmatprep.subr.bf16.mxu0 %v3808
    %4054 = vmatpush1.bf16.msra.mxu0 %v3807
    %4055 = vmatprep.mubr.bf16.mxu0 %v93
    %4056 = vmatmul.mubr.bf16.gmra.mrb[0].mxu0 %v92
    %v4057 = vpop.f32.mrb[0].mxu0
    %v4058 = vadd.f32 %v3448, %v4057
    %v4059 = vpop.f32.mrb[0].mxu0
    %v4060 = vadd.f32 %v3452, %v4059
    %v4061 = vpop.f32.mrb[0].mxu0
    %v4062 = vadd.f32 %v3448, %v4061
    %v4063 = vpop.f32.mrb[0].mxu0
    %v4064 = vadd.f32 %v3452, %v4063
    %4065 = vdwg.mxu0
    %4066 = vmatprep.subr.bf16.mxu0 %v3812
    %4067 = vmatpush1.bf16.msra.mxu0 %v3811
    %4068 = vmatprep.subr.bf16.mxu0 %v3816
    %4069 = vmatpush1.bf16.msra.mxu0 %v3815
    %4070 = vmatprep.subr.bf16.mxu0 %v3820
    %4071 = vmatpush1.bf16.msra.mxu0 %v3819
    %4072 = vmatprep.subr.bf16.mxu0 %v3824
    %4073 = vmatpush1.bf16.msra.mxu0 %v3823
    %4074 = vmatprep.subr.bf16.mxu0 %v3828
    %4075 = vmatpush1.bf16.msra.mxu0 %v3827
    %4076 = vmatprep.subr.bf16.mxu0 %v3832
    %4077 = vmatpush1.bf16.msra.mxu0 %v3831
    %4078 = vmatprep.subr.bf16.mxu0 %v3836
    %4079 = vmatpush1.bf16.msra.mxu0 %v3835
    %4080 = vmatprep.subr.bf16.mxu0 %v3840
    %4081 = vmatpush1.bf16.msra.mxu0 %v3839
    %4082 = vmatprep.subr.bf16.mxu0 0
    %4083 = vmatpush1.bf16.msra.mxu0 0
    %4084 = vmatprep.subr.bf16.mxu0 0
    %4085 = vmatpush1.bf16.msra.mxu0 0
    %4086 = vmatprep.subr.bf16.mxu0 0
    %4087 = vmatpush1.bf16.msra.mxu0 0
    %4088 = vmatprep.subr.bf16.mxu0 0
    %4089 = vmatpush1.bf16.msra.mxu0 0
    %4090 = vmatprep.subr.bf16.mxu0 0
    %4091 = vmatpush1.bf16.msra.mxu0 0
    %4092 = vmatprep.subr.bf16.mxu0 0
    %4093 = vmatpush1.bf16.msra.mxu0 0
    %4094 = vmatprep.subr.bf16.mxu0 0
    %4095 = vmatpush1.bf16.msra.mxu0 0
    %4096 = vmatprep.subr.bf16.mxu0 0
    %4097 = vmatpush1.bf16.msra.mxu0 0
    %4098 = vmatprep.mubr.bf16.mxu0 0
    %4099 = vmatmul.mubr.bf16.gmra.mrb[0].mxu0 %v94
    %v4100 = vpop.f32.mrb[0].mxu0
    %v4101 = vadd.f32 %v4058, %v4100
    %v4102 = vpop.f32.mrb[0].mxu0
    %v4103 = vadd.f32 %v4060, %v4102
    %v4104 = vpop.f32.mrb[0].mxu0
    %v4105 = vadd.f32 %v4062, %v4104
    %v4106 = vpop.f32.mrb[0].mxu0
    %v4107 = vadd.f32 %v4064, %v4106
    %4108 = vdwg.mxu0
    %v4109 = vmul.f32 %v4015, 0.5
    %v4110 = vmul.f32 %v4017, 0.5
    %v4111 = vmul.f32 %v4101, 0.5
    %v4112 = vmul.f32 %v4103, 0.5
    %v4113 = vmul.f32 %v4019, 0.5
    %v4114 = vmul.f32 %v4021, 0.5
    %v4115 = vmul.f32 %v4105, 0.5
    %v4116 = vmul.f32 %v4107, 0.5
    %v4117 = vmul.f32 %v4015, 0.70710677
    %v4118 = vmul.f32 %v4017, 0.70710677
    %v4119 = vmul.f32 %v4101, 0.70710677
    %v4120 = vmul.f32 %v4103, 0.70710677
    %v4121 = vmul.f32 %v4019, 0.70710677
    %v4122 = vmul.f32 %v4021, 0.70710677
    %v4123 = vmul.f32 %v4105, 0.70710677
    %v4124 = vmul.f32 %v4107, 0.70710677
    %v4125 = verf.f32.pop %v4117
    %v4126 = verf.f32.pop %v4118
    %v4127 = verf.f32.pop %v4119
    %v4128 = verf.f32.pop %v4120
    %v4129 = verf.f32.pop %v4121
    %v4130 = verf.f32.pop %v4122
    %v4131 = verf.f32.pop %v4123
    %v4132 = verf.f32.pop %v4124
    %v4133 = vadd.f32 %v4125, 1.0
    %v4134 = vadd.f32 %v4126, 1.0
    %v4135 = vadd.f32 %v4127, 1.0
    %v4136 = vadd.f32 %v4128, 1.0
    %v4137 = vadd.f32 %v4129, 1.0
    %v4138 = vadd.f32 %v4130, 1.0
    %v4139 = vadd.f32 %v4131, 1.0
    %v4140 = vadd.f32 %v4132, 1.0
    %v4141 = vmul.f32 %v4109, %v4133
    %v4142 = vmul.f32 %v4110, %v4134
    %v4143 = vmul.f32 %v4111, %v4135
    %v4144 = vmul.f32 %v4112, %v4136
    %v4145 = vmul.f32 %v4113, %v4137
    %v4146 = vmul.f32 %v4114, %v4138
    %v4147 = vmul.f32 %v4115, %v4139
    %v4148 = vmul.f32 %v4116, %v4140
    %v4149 = vpack.c.bf16 %v4145, %v4141
    %v4150 = vpack.c.bf16 %v4146, %v4142
    %v4151 = vpack.c.bf16 %v4147, %v4143
    %v4152 = vpack.c.bf16 %v4148, %v4144
    %v4153 = vld [vmem:[#allocation8 + $0x600] sm:$0xff]
    %v4154 = vld [vmem:[#allocation8 + $0x608] sm:$0xf]
    %v4155 = vld [vmem:[#allocation8 + $0x60c] sm:$0xff]
    %v4156 = vld [vmem:[#allocation8 + $0x614] sm:$0xf]
    %v4157 = vld [vmem:[#allocation8 + $0x618] sm:$0xff]
    %v4158 = vld [vmem:[#allocation8 + $0x620] sm:$0xf]
    %v4159 = vld [vmem:[#allocation8 + $0x624] sm:$0xff]
    %v4160 = vld [vmem:[#allocation8 + $0x62c] sm:$0xf]
    %v4161 = vld [vmem:[#allocation8 + $0x630] sm:$0xff]
    %v4162 = vld [vmem:[#allocation8 + $0x638] sm:$0xf]
    %v4163 = vld [vmem:[#allocation8 + $0x63c] sm:$0xff]
    %v4164 = vld [vmem:[#allocation8 + $0x644] sm:$0xf]
    %v4165 = vld [vmem:[#allocation8 + $0x648] sm:$0xff]
    %v4166 = vld [vmem:[#allocation8 + $0x650] sm:$0xf]
    %v4167 = vld [vmem:[#allocation8 + $0x654] sm:$0xff]
    %v4168 = vld [vmem:[#allocation8 + $0x65c] sm:$0xf]
    %v4169 = vld [vmem:[#allocation8 + $0x660] sm:$0xff]
    %v4170 = vld [vmem:[#allocation8 + $0x668] sm:$0xf]
    %v4171 = vld [vmem:[#allocation8 + $0x66c] sm:$0xff]
    %v4172 = vld [vmem:[#allocation8 + $0x674] sm:$0xf]
    %v4173 = vld [vmem:[#allocation8 + $0x678] sm:$0xff]
    %v4174 = vld [vmem:[#allocation8 + $0x680] sm:$0xf]
    %v4175 = vld [vmem:[#allocation8 + $0x684] sm:$0xff]
    %v4176 = vld [vmem:[#allocation8 + $0x68c] sm:$0xf]
    %v4177 = vld [vmem:[#allocation8 + $0x690] sm:$0xff]
    %v4178 = vld [vmem:[#allocation8 + $0x698] sm:$0xf]
    %v4179 = vld [vmem:[#allocation8 + $0x69c] sm:$0xff]
    %v4180 = vld [vmem:[#allocation8 + $0x6a4] sm:$0xf]
    %v4181 = vld [vmem:[#allocation8 + $0x6a8] sm:$0xff]
    %v4182 = vld [vmem:[#allocation8 + $0x6b0] sm:$0xf]
    %v4183 = vld [vmem:[#allocation8 + $0x6b4] sm:$0xff]
    %v4184 = vld [vmem:[#allocation8 + $0x6bc] sm:$0xf]
    %v4185 = vld [vmem:[#allocation8 + $0x6c0] sm:$0xff]
    %v4186 = vld [vmem:[#allocation8 + $0x6c8] sm:$0xf]
    %v4187 = vld [vmem:[#allocation8 + $0x6cc] sm:$0xff]
    %v4188 = vld [vmem:[#allocation8 + $0x6d4] sm:$0xf]
    %v4189 = vld [vmem:[#allocation8 + $0x6d8] sm:$0xff]
    %v4190 = vld [vmem:[#allocation8 + $0x6e0] sm:$0xf]
    %v4191 = vld [vmem:[#allocation8 + $0x6e4] sm:$0xff]
    %v4192 = vld [vmem:[#allocation8 + $0x6ec] sm:$0xf]
    %v4193 = vld [vmem:[#allocation8 + $0x6f0] sm:$0xff]
    %v4194 = vld [vmem:[#allocation8 + $0x6f8] sm:$0xf]
    %v4195 = vld [vmem:[#allocation8 + $0x6fc] sm:$0xff]
    %v4196 = vld [vmem:[#allocation8 + $0x704] sm:$0xf]
    %v4197 = vld [vmem:[#allocation8 + $0x708] sm:$0xff]
    %v4198 = vld [vmem:[#allocation8 + $0x710] sm:$0xf]
    %v4199 = vld [vmem:[#allocation8 + $0x714] sm:$0xff]
    %v4200 = vld [vmem:[#allocation8 + $0x71c] sm:$0xf]
    %v4201 = vld [vmem:[#allocation8 + $0x720] sm:$0xff]
    %v4202 = vld [vmem:[#allocation8 + $0x728] sm:$0xf]
    %v4203 = vld [vmem:[#allocation8 + $0x72c] sm:$0xff]
    %v4204 = vld [vmem:[#allocation8 + $0x734] sm:$0xf]
    %v4205 = vld [vmem:[#allocation8 + $0x738] sm:$0xff]
    %v4206 = vld [vmem:[#allocation8 + $0x740] sm:$0xf]
    %v4207 = vld [vmem:[#allocation8 + $0x744] sm:$0xff]
    %v4208 = vld [vmem:[#allocation8 + $0x74c] sm:$0xf]
    %v4209 = vld [vmem:[#allocation8 + $0x750] sm:$0xff]
    %v4210 = vld [vmem:[#allocation8 + $0x758] sm:$0xf]
    %v4211 = vld [vmem:[#allocation8 + $0x75c] sm:$0xff]
    %v4212 = vld [vmem:[#allocation8 + $0x764] sm:$0xf]
    %v4213 = vld [vmem:[#allocation8 + $0x768] sm:$0xff]
    %v4214 = vld [vmem:[#allocation8 + $0x770] sm:$0xf]
    %v4215 = vld [vmem:[#allocation8 + $0x774] sm:$0xff]
    %v4216 = vld [vmem:[#allocation8 + $0x77c] sm:$0xf]
    %v4217 = vld [vmem:[#allocation8 + $0x780] sm:$0xff]
    %v4218 = vld [vmem:[#allocation8 + $0x788] sm:$0xf]
    %v4219 = vld [vmem:[#allocation8 + $0x78c] sm:$0xff]
    %v4220 = vld [vmem:[#allocation8 + $0x794] sm:$0xf]
    %v4221 = vld [vmem:[#allocation8 + $0x798] sm:$0xff]
    %v4222 = vld [vmem:[#allocation8 + $0x7a0] sm:$0xf]
    %v4223 = vld [vmem:[#allocation8 + $0x7a4] sm:$0xff]
    %v4224 = vld [vmem:[#allocation8 + $0x7ac] sm:$0xf]
    %v4225 = vld [vmem:[#allocation8 + $0x7b0] sm:$0xff]
    %v4226 = vld [vmem:[#allocation8 + $0x7b8] sm:$0xf]
    %v4227 = vld [vmem:[#allocation8 + $0x7bc] sm:$0xff]
    %v4228 = vld [vmem:[#allocation8 + $0x7c4] sm:$0xf]
    %v4229 = vld [vmem:[#allocation8 + $0x7c8] sm:$0xff]
    %v4230 = vld [vmem:[#allocation8 + $0x7d0] sm:$0xf]
    %v4231 = vld [vmem:[#allocation8 + $0x7d4] sm:$0xff]
    %v4232 = vld [vmem:[#allocation8 + $0x7dc] sm:$0xf]
    %v4233 = vld [vmem:[#allocation8 + $0x7e0] sm:$0xff]
    %v4234 = vld [vmem:[#allocation8 + $0x7e8] sm:$0xf]
    %v4235 = vld [vmem:[#allocation8 + $0x7ec] sm:$0xff]
    %v4236 = vld [vmem:[#allocation8 + $0x7f4] sm:$0xf]
    %v4237 = vld [vmem:[#allocation8 + $0x7f8] sm:$0xff]
    %v4238 = vld [vmem:[#allocation8 + $0x800] sm:$0xf]
    %v4239 = vld [vmem:[#allocation8 + $0x804] sm:$0xff]
    %v4240 = vld [vmem:[#allocation8 + $0x80c] sm:$0xf]
    %v4241 = vld [vmem:[#allocation8 + $0x810] sm:$0xff]
    %v4242 = vld [vmem:[#allocation8 + $0x818] sm:$0xf]
    %v4243 = vld [vmem:[#allocation8 + $0x81c] sm:$0xff]
    %v4244 = vld [vmem:[#allocation8 + $0x824] sm:$0xf]
    %v4245 = vld [vmem:[#allocation8 + $0x828] sm:$0xff]
    %v4246 = vld [vmem:[#allocation8 + $0x830] sm:$0xf]
    %v4247 = vld [vmem:[#allocation8 + $0x834] sm:$0xff]
    %v4248 = vld [vmem:[#allocation8 + $0x83c] sm:$0xf]
    %v4249 = vld [vmem:[#allocation8 + $0x840] sm:$0xff]
    %v4250 = vld [vmem:[#allocation8 + $0x848] sm:$0xf]
    %v4251 = vld [vmem:[#allocation8 + $0x84c] sm:$0xff]
    %v4252 = vld [vmem:[#allocation8 + $0x854] sm:$0xf]
    %v4253 = vld [vmem:[#allocation8 + $0x858] sm:$0xff]
    %v4254 = vld [vmem:[#allocation8 + $0x860] sm:$0xf]
    %v4255 = vld [vmem:[#allocation8 + $0x864] sm:$0xff]
    %v4256 = vld [vmem:[#allocation8 + $0x86c] sm:$0xf]
    %v4257 = vld [vmem:[#allocation8 + $0x870] sm:$0xff]
    %v4258 = vld [vmem:[#allocation8 + $0x878] sm:$0xf]
    %v4259 = vld [vmem:[#allocation8 + $0x87c] sm:$0xff]
    %v4260 = vld [vmem:[#allocation8 + $0x884] sm:$0xf]
    %v4261 = vld [vmem:[#allocation8 + $0x888] sm:$0xff]
    %v4262 = vld [vmem:[#allocation8 + $0x890] sm:$0xf]
    %v4263 = vld [vmem:[#allocation8 + $0x894] sm:$0xff]
    %v4264 = vld [vmem:[#allocation8 + $0x89c] sm:$0xf]
    %v4265 = vld [vmem:[#allocation8 + $0x8a0] sm:$0xff]
    %v4266 = vld [vmem:[#allocation8 + $0x8a8] sm:$0xf]
    %v4267 = vld [vmem:[#allocation8 + $0x8ac] sm:$0xff]
    %v4268 = vld [vmem:[#allocation8 + $0x8b4] sm:$0xf]
    %v4269 = vld [vmem:[#allocation8 + $0x8b8] sm:$0xff]
    %v4270 = vld [vmem:[#allocation8 + $0x8c0] sm:$0xf]
    %v4271 = vld [vmem:[#allocation8 + $0x8c4] sm:$0xff]
    %v4272 = vld [vmem:[#allocation8 + $0x8cc] sm:$0xf]
    %v4273 = vld [vmem:[#allocation8 + $0x8d0] sm:$0xff]
    %v4274 = vld [vmem:[#allocation8 + $0x8d8] sm:$0xf]
    %v4275 = vld [vmem:[#allocation8 + $0x8dc] sm:$0xff]
    %v4276 = vld [vmem:[#allocation8 + $0x8e4] sm:$0xf]
    %v4277 = vld [vmem:[#allocation8 + $0x8e8] sm:$0xff]
    %v4278 = vld [vmem:[#allocation8 + $0x8f0] sm:$0xf]
    %v4279 = vld [vmem:[#allocation8 + $0x8f4] sm:$0xff]
    %v4280 = vld [vmem:[#allocation8 + $0x8fc] sm:$0xf]
    %v4409 = vunpack.c.l.b16 %v4153
    %v4410 = vunpack.c.h.b16 %v4153
    %v4411 = vunpack.c.l.b16 %v4154
    %v4412 = vunpack.c.l.b16 %v4155
    %v4413 = vunpack.c.h.b16 %v4155
    %v4414 = vunpack.c.l.b16 %v4156
    %v4415 = vunpack.c.l.b16 %v4157
    %v4416 = vunpack.c.h.b16 %v4157
    %v4417 = vunpack.c.l.b16 %v4158
    %v4418 = vunpack.c.l.b16 %v4159
    %v4419 = vunpack.c.h.b16 %v4159
    %v4420 = vunpack.c.l.b16 %v4160
    %v4421 = vunpack.c.l.b16 %v4161
    %v4422 = vunpack.c.h.b16 %v4161
    %v4423 = vunpack.c.l.b16 %v4162
    %v4424 = vunpack.c.l.b16 %v4163
    %v4425 = vunpack.c.h.b16 %v4163
    %v4426 = vunpack.c.l.b16 %v4164
    %v4427 = vunpack.c.l.b16 %v4165
    %v4428 = vunpack.c.h.b16 %v4165
    %v4429 = vunpack.c.l.b16 %v4166
    %v4430 = vunpack.c.l.b16 %v4167
    %v4431 = vunpack.c.h.b16 %v4167
    %v4432 = vunpack.c.l.b16 %v4168
    %v4433 = vunpack.c.l.b16 %v4169
    %v4434 = vunpack.c.h.b16 %v4169
    %v4435 = vunpack.c.l.b16 %v4170
    %v4436 = vunpack.c.l.b16 %v4171
    %v4437 = vunpack.c.h.b16 %v4171
    %v4438 = vunpack.c.l.b16 %v4172
    %v4439 = vunpack.c.l.b16 %v4173
    %v4440 = vunpack.c.h.b16 %v4173
    %v4441 = vunpack.c.l.b16 %v4174
    %v4442 = vunpack.c.l.b16 %v4175
    %v4443 = vunpack.c.h.b16 %v4175
    %v4444 = vunpack.c.l.b16 %v4176
    %v4445 = vunpack.c.l.b16 %v4177
    %v4446 = vunpack.c.h.b16 %v4177
    %v4447 = vunpack.c.l.b16 %v4178
    %v4448 = vunpack.c.l.b16 %v4179
    %v4449 = vunpack.c.h.b16 %v4179
    %v4450 = vunpack.c.l.b16 %v4180
    %v4451 = vunpack.c.l.b16 %v4181
    %v4452 = vunpack.c.h.b16 %v4181
    %v4453 = vunpack.c.l.b16 %v4182
    %v4454 = vunpack.c.l.b16 %v4183
    %v4455 = vunpack.c.h.b16 %v4183
    %v4456 = vunpack.c.l.b16 %v4184
    %v4457 = vunpack.c.l.b16 %v4185
    %v4458 = vunpack.c.h.b16 %v4185
    %v4459 = vunpack.c.l.b16 %v4186
    %v4460 = vunpack.c.l.b16 %v4187
    %v4461 = vunpack.c.h.b16 %v4187
    %v4462 = vunpack.c.l.b16 %v4188
    %v4463 = vunpack.c.l.b16 %v4189
    %v4464 = vunpack.c.h.b16 %v4189
    %v4465 = vunpack.c.l.b16 %v4190
    %v4466 = vunpack.c.l.b16 %v4191
    %v4467 = vunpack.c.h.b16 %v4191
    %v4468 = vunpack.c.l.b16 %v4192
    %v4469 = vunpack.c.l.b16 %v4193
    %v4470 = vunpack.c.h.b16 %v4193
    %v4471 = vunpack.c.l.b16 %v4194
    %v4472 = vunpack.c.l.b16 %v4195
    %v4473 = vunpack.c.h.b16 %v4195
    %v4474 = vunpack.c.l.b16 %v4196
    %v4475 = vunpack.c.l.b16 %v4197
    %v4476 = vunpack.c.h.b16 %v4197
    %v4477 = vunpack.c.l.b16 %v4198
    %v4478 = vunpack.c.l.b16 %v4199
    %v4479 = vunpack.c.h.b16 %v4199
    %v4480 = vunpack.c.l.b16 %v4200
    %v4481 = vunpack.c.l.b16 %v4201
    %v4482 = vunpack.c.h.b16 %v4201
    %v4483 = vunpack.c.l.b16 %v4202
    %v4484 = vunpack.c.l.b16 %v4203
    %v4485 = vunpack.c.h.b16 %v4203
    %v4486 = vunpack.c.l.b16 %v4204
    %v4487 = vunpack.c.l.b16 %v4205
    %v4488 = vunpack.c.h.b16 %v4205
    %v4489 = vunpack.c.l.b16 %v4206
    %v4490 = vunpack.c.l.b16 %v4207
    %v4491 = vunpack.c.h.b16 %v4207
    %v4492 = vunpack.c.l.b16 %v4208
    %v4493 = vunpack.c.l.b16 %v4209
    %v4494 = vunpack.c.h.b16 %v4209
    %v4495 = vunpack.c.l.b16 %v4210
    %v4496 = vunpack.c.l.b16 %v4211
    %v4497 = vunpack.c.h.b16 %v4211
    %v4498 = vunpack.c.l.b16 %v4212
    %v4499 = vunpack.c.l.b16 %v4213
    %v4500 = vunpack.c.h.b16 %v4213
    %v4501 = vunpack.c.l.b16 %v4214
    %v4502 = vunpack.c.l.b16 %v4215
    %v4503 = vunpack.c.h.b16 %v4215
    %v4504 = vunpack.c.l.b16 %v4216
    %v4505 = vunpack.c.l.b16 %v4217
    %v4506 = vunpack.c.h.b16 %v4217
    %v4507 = vunpack.c.l.b16 %v4218
    %v4508 = vunpack.c.l.b16 %v4219
    %v4509 = vunpack.c.h.b16 %v4219
    %v4510 = vunpack.c.l.b16 %v4220
    %v4511 = vunpack.c.l.b16 %v4221
    %v4512 = vunpack.c.h.b16 %v4221
    %v4513 = vunpack.c.l.b16 %v4222
    %v4514 = vunpack.c.l.b16 %v4223
    %v4515 = vunpack.c.h.b16 %v4223
    %v4516 = vunpack.c.l.b16 %v4224
    %v4517 = vunpack.c.l.b16 %v4225
    %v4518 = vunpack.c.h.b16 %v4225
    %v4519 = vunpack.c.l.b16 %v4226
    %v4520 = vunpack.c.l.b16 %v4227
    %v4521 = vunpack.c.h.b16 %v4227
    %v4522 = vunpack.c.l.b16 %v4228
    %v4523 = vunpack.c.l.b16 %v4229
    %v4524 = vunpack.c.h.b16 %v4229
    %v4525 = vunpack.c.l.b16 %v4230
    %v4526 = vunpack.c.l.b16 %v4231
    %v4527 = vunpack.c.h.b16 %v4231
    %v4528 = vunpack.c.l.b16 %v4232
    %v4529 = vunpack.c.l.b16 %v4233
    %v4530 = vunpack.c.h.b16 %v4233
    %v4531 = vunpack.c.l.b16 %v4234
    %v4532 = vunpack.c.l.b16 %v4235
    %v4533 = vunpack.c.h.b16 %v4235
    %v4534 = vunpack.c.l.b16 %v4236
    %v4535 = vunpack.c.l.b16 %v4237
    %v4536 = vunpack.c.h.b16 %v4237
    %v4537 = vunpack.c.l.b16 %v4238
    %v4538 = vunpack.c.l.b16 %v4239
    %v4539 = vunpack.c.h.b16 %v4239
    %v4540 = vunpack.c.l.b16 %v4240
    %v4541 = vunpack.c.l.b16 %v4241
    %v4542 = vunpack.c.h.b16 %v4241
    %v4543 = vunpack.c.l.b16 %v4242
    %v4544 = vunpack.c.l.b16 %v4243
    %v4545 = vunpack.c.h.b16 %v4243
    %v4546 = vunpack.c.l.b16 %v4244
    %v4547 = vunpack.c.l.b16 %v4245
    %v4548 = vunpack.c.h.b16 %v4245
    %v4549 = vunpack.c.l.b16 %v4246
    %v4550 = vunpack.c.l.b16 %v4247
    %v4551 = vunpack.c.h.b16 %v4247
    %v4552 = vunpack.c.l.b16 %v4248
    %v4553 = vunpack.c.l.b16 %v4249
    %v4554 = vunpack.c.h.b16 %v4249
    %v4555 = vunpack.c.l.b16 %v4250
    %v4556 = vunpack.c.l.b16 %v4251
    %v4557 = vunpack.c.h.b16 %v4251
    %v4558 = vunpack.c.l.b16 %v4252
    %v4559 = vunpack.c.l.b16 %v4253
    %v4560 = vunpack.c.h.b16 %v4253
    %v4561 = vunpack.c.l.b16 %v4254
    %v4562 = vunpack.c.l.b16 %v4255
    %v4563 = vunpack.c.h.b16 %v4255
    %v4564 = vunpack.c.l.b16 %v4256
    %v4565 = vunpack.c.l.b16 %v4257
    %v4566 = vunpack.c.h.b16 %v4257
    %v4567 = vunpack.c.l.b16 %v4258
    %v4568 = vunpack.c.l.b16 %v4259
    %v4569 = vunpack.c.h.b16 %v4259
    %v4570 = vunpack.c.l.b16 %v4260
    %v4571 = vunpack.c.l.b16 %v4261
    %v4572 = vunpack.c.h.b16 %v4261
    %v4573 = vunpack.c.l.b16 %v4262
    %v4574 = vunpack.c.l.b16 %v4263
    %v4575 = vunpack.c.h.b16 %v4263
    %v4576 = vunpack.c.l.b16 %v4264
    %v4577 = vunpack.c.l.b16 %v4265
    %v4578 = vunpack.c.h.b16 %v4265
    %v4579 = vunpack.c.l.b16 %v4266
    %v4580 = vunpack.c.l.b16 %v4267
    %v4581 = vunpack.c.h.b16 %v4267
    %v4582 = vunpack.c.l.b16 %v4268
    %v4583 = vunpack.c.l.b16 %v4269
    %v4584 = vunpack.c.h.b16 %v4269
    %v4585 = vunpack.c.l.b16 %v4270
    %v4586 = vunpack.c.l.b16 %v4271
    %v4587 = vunpack.c.h.b16 %v4271
    %v4588 = vunpack.c.l.b16 %v4272
    %v4589 = vunpack.c.l.b16 %v4273
    %v4590 = vunpack.c.h.b16 %v4273
    %v4591 = vunpack.c.l.b16 %v4274
    %v4592 = vunpack.c.l.b16 %v4275
    %v4593 = vunpack.c.h.b16 %v4275
    %v4594 = vunpack.c.l.b16 %v4276
    %v4595 = vunpack.c.l.b16 %v4277
    %v4596 = vunpack.c.h.b16 %v4277
    %v4597 = vunpack.c.l.b16 %v4278
    %v4598 = vunpack.c.l.b16 %v4279
    %v4599 = vunpack.c.h.b16 %v4279
    %v4600 = vunpack.c.l.b16 %v4280
    %v4601 = vpack.c.b16 %v4412, %v4409
    %v4602 = vpack.c.b16 %v4413, %v4410
    %v4603 = vpack.c.b16 %v4414, %v4411
    %v4604 = vpack.c.b16 %v4418, %v4415
    %v4605 = vpack.c.b16 %v4419, %v4416
    %v4606 = vpack.c.b16 %v4420, %v4417
    %v4607 = vpack.c.b16 %v4424, %v4421
    %v4608 = vpack.c.b16 %v4425, %v4422
    %v4609 = vpack.c.b16 %v4426, %v4423
    %v4610 = vpack.c.b16 %v4430, %v4427
    %v4611 = vpack.c.b16 %v4431, %v4428
    %v4612 = vpack.c.b16 %v4432, %v4429
    %v4613 = vpack.c.b16 %v4436, %v4433
    %v4614 = vpack.c.b16 %v4437, %v4434
    %v4615 = vpack.c.b16 %v4438, %v4435
    %v4616 = vpack.c.b16 %v4442, %v4439
    %v4617 = vpack.c.b16 %v4443, %v4440
    %v4618 = vpack.c.b16 %v4444, %v4441
    %v4619 = vpack.c.b16 %v4448, %v4445
    %v4620 = vpack.c.b16 %v4449, %v4446
    %v4621 = vpack.c.b16 %v4450, %v4447
    %v4622 = vpack.c.b16 %v4454, %v4451
    %v4623 = vpack.c.b16 %v4455, %v4452
    %v4624 = vpack.c.b16 %v4456, %v4453
    %v4625 = vpack.c.b16 %v4460, %v4457
    %v4626 = vpack.c.b16 %v4461, %v4458
    %v4627 = vpack.c.b16 %v4462, %v4459
    %v4628 = vpack.c.b16 %v4466, %v4463
    %v4629 = vpack.c.b16 %v4467, %v4464
    %v4630 = vpack.c.b16 %v4468, %v4465
    %v4631 = vpack.c.b16 %v4472, %v4469
    %v4632 = vpack.c.b16 %v4473, %v4470
    %v4633 = vpack.c.b16 %v4474, %v4471
    %v4634 = vpack.c.b16 %v4478, %v4475
    %v4635 = vpack.c.b16 %v4479, %v4476
    %v4636 = vpack.c.b16 %v4480, %v4477
    %v4637 = vpack.c.b16 %v4484, %v4481
    %v4638 = vpack.c.b16 %v4485, %v4482
    %v4639 = vpack.c.b16 %v4486, %v4483
    %v4640 = vpack.c.b16 %v4490, %v4487
    %v4641 = vpack.c.b16 %v4491, %v4488
    %v4642 = vpack.c.b16 %v4492, %v4489
    %v4643 = vpack.c.b16 %v4496, %v4493
    %v4644 = vpack.c.b16 %v4497, %v4494
    %v4645 = vpack.c.b16 %v4498, %v4495
    %v4646 = vpack.c.b16 %v4502, %v4499
    %v4647 = vpack.c.b16 %v4503, %v4500
    %v4648 = vpack.c.b16 %v4504, %v4501
    %v4649 = vpack.c.b16 %v4508, %v4505
    %v4650 = vpack.c.b16 %v4509, %v4506
    %v4651 = vpack.c.b16 %v4510, %v4507
    %v4652 = vpack.c.b16 %v4514, %v4511
    %v4653 = vpack.c.b16 %v4515, %v4512
    %v4654 = vpack.c.b16 %v4516, %v4513
    %v4655 = vpack.c.b16 %v4520, %v4517
    %v4656 = vpack.c.b16 %v4521, %v4518
    %v4657 = vpack.c.b16 %v4522, %v4519
    %v4658 = vpack.c.b16 %v4526, %v4523
    %v4659 = vpack.c.b16 %v4527, %v4524
    %v4660 = vpack.c.b16 %v4528, %v4525
    %v4661 = vpack.c.b16 %v4532, %v4529
    %v4662 = vpack.c.b16 %v4533, %v4530
    %v4663 = vpack.c.b16 %v4534, %v4531
    %v4664 = vpack.c.b16 %v4538, %v4535
    %v4665 = vpack.c.b16 %v4539, %v4536
    %v4666 = vpack.c.b16 %v4540, %v4537
    %v4667 = vpack.c.b16 %v4544, %v4541
    %v4668 = vpack.c.b16 %v4545, %v4542
    %v4669 = vpack.c.b16 %v4546, %v4543
    %v4670 = vpack.c.b16 %v4550, %v4547
    %v4671 = vpack.c.b16 %v4551, %v4548
    %v4672 = vpack.c.b16 %v4552, %v4549
    %v4673 = vpack.c.b16 %v4556, %v4553
    %v4674 = vpack.c.b16 %v4557, %v4554
    %v4675 = vpack.c.b16 %v4558, %v4555
    %v4676 = vpack.c.b16 %v4562, %v4559
    %v4677 = vpack.c.b16 %v4563, %v4560
    %v4678 = vpack.c.b16 %v4564, %v4561
    %v4679 = vpack.c.b16 %v4568, %v4565
    %v4680 = vpack.c.b16 %v4569, %v4566
    %v4681 = vpack.c.b16 %v4570, %v4567
    %v4682 = vpack.c.b16 %v4574, %v4571
    %v4683 = vpack.c.b16 %v4575, %v4572
    %v4684 = vpack.c.b16 %v4576, %v4573
    %v4685 = vpack.c.b16 %v4580, %v4577
    %v4686 = vpack.c.b16 %v4581, %v4578
    %v4687 = vpack.c.b16 %v4582, %v4579
    %v4688 = vpack.c.b16 %v4586, %v4583
    %v4689 = vpack.c.b16 %v4587, %v4584
    %v4690 = vpack.c.b16 %v4588, %v4585
    %v4691 = vpack.c.b16 %v4592, %v4589
    %v4692 = vpack.c.b16 %v4593, %v4590
    %v4693 = vpack.c.b16 %v4594, %v4591
    %v4694 = vpack.c.b16 %v4598, %v4595
    %v4695 = vpack.c.b16 %v4599, %v4596
    %v4696 = vpack.c.b16 %v4600, %v4597
    %4793 = vmatprep.subr.bf16.mxu0 %v4602
    %4794 = vmatpush1.bf16.msra.mxu0 %v4601
    %4795 = vmatprep.subr.bf16.mxu0 %v4605
    %4796 = vmatpush1.bf16.msra.mxu0 %v4604
    %4797 = vmatprep.subr.bf16.mxu0 %v4608
    %4798 = vmatpush1.bf16.msra.mxu0 %v4607
    %4799 = vmatprep.subr.bf16.mxu0 %v4611
    %4800 = vmatpush1.bf16.msra.mxu0 %v4610
    %4801 = vmatprep.subr.bf16.mxu0 %v4614
    %4802 = vmatpush1.bf16.msra.mxu0 %v4613
    %4803 = vmatprep.subr.bf16.mxu0 %v4617
    %4804 = vmatpush1.bf16.msra.mxu0 %v4616
    %4805 = vmatprep.subr.bf16.mxu0 %v4620
    %4806 = vmatpush1.bf16.msra.mxu0 %v4619
    %4807 = vmatprep.subr.bf16.mxu0 %v4623
    %4808 = vmatpush1.bf16.msra.mxu0 %v4622
    %4809 = vmatprep.subr.bf16.mxu0 %v4626
    %4810 = vmatpush1.bf16.msra.mxu0 %v4625
    %4811 = vmatprep.subr.bf16.mxu0 %v4629
    %4812 = vmatpush1.bf16.msra.mxu0 %v4628
    %4813 = vmatprep.subr.bf16.mxu0 %v4632
    %4814 = vmatpush1.bf16.msra.mxu0 %v4631
    %4815 = vmatprep.subr.bf16.mxu0 %v4635
    %4816 = vmatpush1.bf16.msra.mxu0 %v4634
    %4817 = vmatprep.subr.bf16.mxu0 %v4638
    %4818 = vmatpush1.bf16.msra.mxu0 %v4637
    %4819 = vmatprep.subr.bf16.mxu0 %v4641
    %4820 = vmatpush1.bf16.msra.mxu0 %v4640
    %4821 = vmatprep.subr.bf16.mxu0 %v4644
    %4822 = vmatpush1.bf16.msra.mxu0 %v4643
    %4823 = vmatprep.subr.bf16.mxu0 %v4647
    %4824 = vmatpush1.bf16.msra.mxu0 %v4646
    %4825 = vmatprep.mubr.bf16.mxu0 %v4150
    %4826 = vmatmul.mubr.bf16.gmra.mrb[0].mxu0 %v4149
    %v4827 = vpop.f32.mrb[0].mxu0
    %v4828 = vadd.f32 0.0, %v4827
    %v4829 = vpop.f32.mrb[0].mxu0
    %v4830 = vadd.f32 0.0, %v4829
    %v4831 = vpop.f32.mrb[0].mxu0
    %v4832 = vadd.f32 0.0, %v4831
    %v4833 = vpop.f32.mrb[0].mxu0
    %v4834 = vadd.f32 0.0, %v4833
    %4835 = vdwg.mxu0
    %4836 = vmatprep.subr.bf16.mxu0 %v4650
    %4837 = vmatpush1.bf16.msra.mxu0 %v4649
    %4838 = vmatprep.subr.bf16.mxu0 %v4653
    %4839 = vmatpush1.bf16.msra.mxu0 %v4652
    %4840 = vmatprep.subr.bf16.mxu0 %v4656
    %4841 = vmatpush1.bf16.msra.mxu0 %v4655
    %4842 = vmatprep.subr.bf16.mxu0 %v4659
    %4843 = vmatpush1.bf16.msra.mxu0 %v4658
    %4844 = vmatprep.subr.bf16.mxu0 %v4662
    %4845 = vmatpush1.bf16.msra.mxu0 %v4661
    %4846 = vmatprep.subr.bf16.mxu0 %v4665
    %4847 = vmatpush1.bf16.msra.mxu0 %v4664
    %4848 = vmatprep.subr.bf16.mxu0 %v4668
    %4849 = vmatpush1.bf16.msra.mxu0 %v4667
    %4850 = vmatprep.subr.bf16.mxu0 %v4671
    %4851 = vmatpush1.bf16.msra.mxu0 %v4670
    %4852 = vmatprep.subr.bf16.mxu0 %v4674
    %4853 = vmatpush1.bf16.msra.mxu0 %v4673
    %4854 = vmatprep.subr.bf16.mxu0 %v4677
    %4855 = vmatpush1.bf16.msra.mxu0 %v4676
    %4856 = vmatprep.subr.bf16.mxu0 %v4680
    %4857 = vmatpush1.bf16.msra.mxu0 %v4679
    %4858 = vmatprep.subr.bf16.mxu0 %v4683
    %4859 = vmatpush1.bf16.msra.mxu0 %v4682
    %4860 = vmatprep.subr.bf16.mxu0 %v4686
    %4861 = vmatpush1.bf16.msra.mxu0 %v4685
    %4862 = vmatprep.subr.bf16.mxu0 %v4689
    %4863 = vmatpush1.bf16.msra.mxu0 %v4688
    %4864 = vmatprep.subr.bf16.mxu0 %v4692
    %4865 = vmatpush1.bf16.msra.mxu0 %v4691
    %4866 = vmatprep.subr.bf16.mxu0 %v4695
    %4867 = vmatpush1.bf16.msra.mxu0 %v4694
    %4868 = vmatprep.mubr.bf16.mxu0 %v4152
    %4869 = vmatmul.mubr.bf16.gmra.mrb[0].mxu0 %v4151
    %v4870 = vpop.f32.mrb[0].mxu0
    %v4871 = vadd.f32 %v4828, %v4870
    %v4872 = vpop.f32.mrb[0].mxu0
    %v4873 = vadd.f32 %v4830, %v4872
    %v4874 = vpop.f32.mrb[0].mxu0
    %v4875 = vadd.f32 %v4832, %v4874
    %v4876 = vpop.f32.mrb[0].mxu0
    %v4877 = vadd.f32 %v4834, %v4876
    %4878 = vdwg.mxu0
    %4879 = vmatprep.subr.bf16.mxu0 0
    %4880 = vmatpush1.bf16.msra.mxu0 %v4603
    %4881 = vmatprep.subr.bf16.mxu0 0
    %4882 = vmatpush1.bf16.msra.mxu0 %v4606
    %4883 = vmatprep.subr.bf16.mxu0 0
    %4884 = vmatpush1.bf16.msra.mxu0 %v4609
    %4885 = vmatprep.subr.bf16.mxu0 0
    %4886 = vmatpush1.bf16.msra.mxu0 %v4612
    %4887 = vmatprep.subr.bf16.mxu0 0
    %4888 = vmatpush1.bf16.msra.mxu0 %v4615
    %4889 = vmatprep.subr.bf16.mxu0 0
    %4890 = vmatpush1.bf16.msra.mxu0 %v4618
    %4891 = vmatprep.subr.bf16.mxu0 0
    %4892 = vmatpush1.bf16.msra.mxu0 %v4621
    %4893 = vmatprep.subr.bf16.mxu0 0
    %4894 = vmatpush1.bf16.msra.mxu0 %v4624
    %4895 = vmatprep.subr.bf16.mxu0 0
    %4896 = vmatpush1.bf16.msra.mxu0 %v4627
    %4897 = vmatprep.subr.bf16.mxu0 0
    %4898 = vmatpush1.bf16.msra.mxu0 %v4630
    %4899 = vmatprep.subr.bf16.mxu0 0
    %4900 = vmatpush1.bf16.msra.mxu0 %v4633
    %4901 = vmatprep.subr.bf16.mxu0 0
    %4902 = vmatpush1.bf16.msra.mxu0 %v4636
    %4903 = vmatprep.subr.bf16.mxu0 0
    %4904 = vmatpush1.bf16.msra.mxu0 %v4639
    %4905 = vmatprep.subr.bf16.mxu0 0
    %4906 = vmatpush1.bf16.msra.mxu0 %v4642
    %4907 = vmatprep.subr.bf16.mxu0 0
    %4908 = vmatpush1.bf16.msra.mxu0 %v4645
    %4909 = vmatprep.subr.bf16.mxu0 0
    %4910 = vmatpush1.bf16.msra.mxu0 %v4648
    %4911 = vmatprep.mubr.bf16.mxu0 %v4150
    %4912 = vmatmul.mubr.bf16.gmra.mrb[0].mxu0 %v4149
    %v4913 = vpop.f32.mrb[0].mxu0
    %v4914 = vadd.f32 0.0, %v4913
    %v4915 = vpop.f32.mrb[0].mxu0
    %v4916 = vpop.f32.mrb[0].mxu0
    %v4917 = vadd.f32 0.0, %v4916
    %v4918 = vpop.f32.mrb[0].mxu0
    %4919 = vdwg.mxu0
    %4920 = vmatprep.subr.bf16.mxu0 0
    %4921 = vmatpush1.bf16.msra.mxu0 %v4651
    %4922 = vmatprep.subr.bf16.mxu0 0
    %4923 = vmatpush1.bf16.msra.mxu0 %v4654
    %4924 = vmatprep.subr.bf16.mxu0 0
    %4925 = vmatpush1.bf16.msra.mxu0 %v4657
    %4926 = vmatprep.subr.bf16.mxu0 0
    %4927 = vmatpush1.bf16.msra.mxu0 %v4660
    %4928 = vmatprep.subr.bf16.mxu0 0
    %4929 = vmatpush1.bf16.msra.mxu0 %v4663
    %4930 = vmatprep.subr.bf16.mxu0 0
    %4931 = vmatpush1.bf16.msra.mxu0 %v4666
    %4932 = vmatprep.subr.bf16.mxu0 0
    %4933 = vmatpush1.bf16.msra.mxu0 %v4669
    %4934 = vmatprep.subr.bf16.mxu0 0
    %4935 = vmatpush1.bf16.msra.mxu0 %v4672
    %4936 = vmatprep.subr.bf16.mxu0 0
    %4937 = vmatpush1.bf16.msra.mxu0 %v4675
    %4938 = vmatprep.subr.bf16.mxu0 0
    %4939 = vmatpush1.bf16.msra.mxu0 %v4678
    %4940 = vmatprep.subr.bf16.mxu0 0
    %4941 = vmatpush1.bf16.msra.mxu0 %v4681
    %4942 = vmatprep.subr.bf16.mxu0 0
    %4943 = vmatpush1.bf16.msra.mxu0 %v4684
    %4944 = vmatprep.subr.bf16.mxu0 0
    %4945 = vmatpush1.bf16.msra.mxu0 %v4687
    %4946 = vmatprep.subr.bf16.mxu0 0
    %4947 = vmatpush1.bf16.msra.mxu0 %v4690
    %4948 = vmatprep.subr.bf16.mxu0 0
    %4949 = vmatpush1.bf16.msra.mxu0 %v4693
    %4950 = vmatprep.subr.bf16.mxu0 0
    %4951 = vmatpush1.bf16.msra.mxu0 %v4696
    %4952 = vmatprep.mubr.bf16.mxu0 %v4152
    %4953 = vmatmul.mubr.bf16.gmra.mrb[0].mxu0 %v4151
    %v4954 = vpop.f32.mrb[0].mxu0
    %v4955 = vadd.f32 %v4914, %v4954
    %v4956 = vpop.f32.mrb[0].mxu0
    %v4957 = vpop.f32.mrb[0].mxu0
    %v4958 = vadd.f32 %v4917, %v4957
    %v4959 = vpop.f32.mrb[0].mxu0
    %4960 = vdwg.mxu0
    %v4961 = vadd.f32 %v3249, %v4871
    %v4962 = vadd.f32 %v3251, %v4873
    %v4963 = vadd.f32 %v3333, %v4955
    %v4964 = vadd.f32 %v3253, %v4875
    %v4965 = vadd.f32 %v3255, %v4877
    %v4966 = vadd.f32 %v3336, %v4958
    %v4967 = vld [vmem:[#allocation10] sm:$0x7]
    %v4969 = vlaneseq
    %v4970 = vshrl.u32 %v4969, 7
    %v4971 = vsub.s32 0, %v4970
    %v4972 = vrot.slane %v4967, %v4971
    %v4973 = vlaneseq
    %v4974 = vshrl.u32 %v4973, 7
    %v4975 = vsub.s32 1, %v4974
    %v4976 = vrot.slane %v4967, %v4975
    %v4977 = vlaneseq
    %v4978 = vshrl.u32 %v4977, 7
    %v4979 = vsub.s32 2, %v4978
    %v4980 = vrot.slane %v4967, %v4979
    %v4984 = vadd.f32 %v4961, %v4972
    %v4985 = vadd.f32 %v4962, %v4976
    %v4986 = vadd.f32 %v4963, %v4980
    %v4987 = vadd.f32 %v4964, %v4972
    %v4988 = vadd.f32 %v4965, %v4976
    %v4989 = vadd.f32 %v4966, %v4980
    %4990 = vst [vmem:[#allocation11] sm:$0xff] %v4984
    %4991 = vst [vmem:[#allocation11 + $0x8] sm:$0xff] %v4985
    %4992 = vst [vmem:[#allocation11 + $0x10] sm:$0xff] %v4986
    %4993 = vst [vmem:[#allocation11 + $0x18] sm:$0xff] %v4987
    %4994 = vst [vmem:[#allocation11 + $0x20] sm:$0xff] %v4988
    %4995 = vst [vmem:[#allocation11 + $0x28] sm:$0xff] %v4989
    // Predicated region
    $region42: #{mlp_forward.1} parent=1 // pred_check
      _
    $region43: #{mlp_forward.1} parent=1 // pred_check_branch
      %4997 = sbr.rel (0) target = $region45
    $region44: #{mlp_forward.1} parent=1 // pred_region
      %s4999 = ssub.s32 768, 768
      %5000 = vsyncadd [#allocation4], %s4999
      %s5001 = sshll.u32 [#allocation11], 4
      %s5002 = int_to_ptr.vmem [resolvable:$true] %s5001
      %5007 = dma.vmem_to_hbm [thread:$0]  %s5002, 768, %s5, [#allocation4], 384, 384, 24
    $region45: #{mlp_forward.1} parent=1 // pred_fallthru
      _
    // Predicated region
    $region46: #{mlp_forward.1} parent=1 // pred_check
      _
    $region47: #{mlp_forward.1} parent=1 // pred_check_branch
      %5009 = sbr.rel (0) target = $region49
    $region48: #{mlp_forward.1} parent=1 // pred_region
      %5010 = dma.done [#allocation4], 768
    $region49: #{mlp_forward.1} parent=1 // pred_fallthru
      _
    %5011 = vsyncpa [#allocation3], 1
    %5012 = vsyncpa [#allocation6], 1
    %5013 = vsyncpa [#allocation9], 1
    %5014 = vsyncpa [#allocation4], 1

</llo_original>
